<compile_context>
chip_gen: v6e
topology: v6e:2x2x1
jax: 0.10.0
libtpu: 0.0.40
codegen_flags: <defaults>
</compile_context>

<pallas_src>
import functools

import jax
import jax.numpy as jnp
from jax import lax
from jax.experimental import pallas as pl
from jax.experimental.pallas import tpu as pltpu

_LANE = 128


# ---------------------------------------------------------------------------
# Pallas kernel: one grid step == one batch element
# ---------------------------------------------------------------------------
def _nb1d_kernel(dilated,
                 x_ref,
                 wp1_ref, b1_ref,          # conv3x1_1  (packed weight, bias)
                 wp2_ref, t1_ref,          # conv1x3_1  (bn1 scale folded in, shift)
                 wp3_ref, b3_ref,          # conv3x1_2  (dilated)
                 wp4_ref, t2_ref,          # conv1x3_2  (bn2 scale folded in, shift)
                 out_ref,
                 pk_ref):                  # (H, W, 3*Cp) bf16 scratch, reused 4x
    _, H, W, Cp = x_ref.shape
    mxu_dtype = pk_ref.dtype

    x = x_ref[0].astype(jnp.float32)                       # (H, W, Cp) residual copy

    def pack_h(val, d):
        """Pack taps [h-d, h, h+d] of `val` into the 3 lane blocks of pk_ref."""
        pk_ref[0:d, :, 0:Cp] = jnp.zeros((d, W, Cp), mxu_dtype)
        pk_ref[d:H, :, 0:Cp] = val[0:H - d]
        pk_ref[:, :, Cp:2 * Cp] = val
        pk_ref[0:H - d, :, 2 * Cp:3 * Cp] = val[d:H]
        pk_ref[H - d:H, :, 2 * Cp:3 * Cp] = jnp.zeros((d, W, Cp), mxu_dtype)

    def pack_w(val, d):
        """Pack taps [w-d, w, w+d] of `val` into the 3 lane blocks of pk_ref."""
        pk_ref[:, 0:d, 0:Cp] = jnp.zeros((H, d, Cp), mxu_dtype)
        pk_ref[:, d:W, 0:Cp] = val[:, 0:W - d]
        pk_ref[:, :, Cp:2 * Cp] = val
        pk_ref[:, 0:W - d, 2 * Cp:3 * Cp] = val[:, d:W]
        pk_ref[:, W - d:W, 2 * Cp:3 * Cp] = jnp.zeros((H, d, Cp), mxu_dtype)

    def conv(w_ref):
        # Single MXU matmul with K = 3*Cp; f32 accumulation.
        xp = pk_ref[...].reshape(H * W, 3 * Cp)            # layout no-op (W%8==0, lane%128==0)
        y = jnp.dot(xp, w_ref[...], preferred_element_type=jnp.float32)
        return y.reshape(H, W, Cp)

    # conv3x1_1 -> relu
    pack_h(x.astype(mxu_dtype), 1)
    o = conv(wp1_ref) + b1_ref[...]
    o = jnp.maximum(o, 0.0)

    # conv1x3_1 -> bn1 -> relu   (bn1 scale folded into wp2, bias+shift in t1)
    pack_w(o.astype(mxu_dtype), 1)
    o = conv(wp2_ref) + t1_ref[...]
    o = jnp.maximum(o, 0.0)

    # conv3x1_2 (dilated) -> relu
    pack_h(o.astype(mxu_dtype), dilated)
    o = conv(wp3_ref) + b3_ref[...]
    o = jnp.maximum(o, 0.0)

    # conv1x3_2 (dilated) -> bn2   (bn2 scale folded into wp4, bias+shift in t2)
    pack_w(o.astype(mxu_dtype), dilated)
    o = conv(wp4_ref) + t2_ref[...]

    # TODO(synk): nn.Dropout2d with p != 0 in training mode (stochastic channel
    #             masks) not implemented; p == 0 / eval mode -> identity.
    out_ref[0] = (o + x).astype(out_ref.dtype)             # residual add


# ---------------------------------------------------------------------------
# Wrapper: layout transposes, C-padding, weight packing, BN/bias folding
# ---------------------------------------------------------------------------
def non_bottleneck_1d_forward(x_nchw, params, dilated, *, mxu_dtype=jnp.bfloat16):
    N, C, H, W = x_nchw.shape
    eps = 0.001                                            # matches nn.BatchNorm2d(eps=0.001)
    Cp = max(_LANE, ((C + _LANE - 1) // _LANE) * _LANE)

    x = jnp.transpose(x_nchw, (0, 2, 3, 1))                # NCHW -> NHWC
    if Cp != C:
        x = jnp.pad(x, ((0, 0), (0, 0), (0, 0), (0, Cp - C)))

    def bn_fold(gamma, beta, mean, var):
        scale = gamma / jnp.sqrt(var + eps)
        shift = beta - mean * scale
        return scale, shift

    s1, t1 = bn_fold(*params["bn1"])
    s2, t2 = bn_fold(*params["bn2"])
    # Fold the conv1x3 biases into the BN shifts (their scales go into the weights).
    t1 = t1 + s1 * params["b13_1"]
    t2 = t2 + s2 * params["b13_2"]

    def pack_weight(w_oik, scale=None):
        # (O, I, K) -> packed (3*Cp, Cp), rows ordered [tap k][in-channel i], cols = out.
        w_kio = jnp.transpose(w_oik, (2, 1, 0)).astype(jnp.float32)   # (3, I, O)
        if scale is not None:
            w_kio = w_kio * scale[None, None, :]
        w_kio = jnp.pad(w_kio, ((0, 0), (0, Cp - C), (0, Cp - C)))
        return w_kio.reshape(3 * Cp, Cp).astype(mxu_dtype)

    wp1 = pack_weight(params["w31_1"][:, :, :, 0])
    wp2 = pack_weight(params["w13_1"][:, :, 0, :], scale=s1)
    wp3 = pack_weight(params["w31_2"][:, :, :, 0])
    wp4 = pack_weight(params["w13_2"][:, :, 0, :], scale=s2)

    def pad_vec(v):
        return jnp.pad(v.astype(jnp.float32), (0, Cp - C)).reshape(1, Cp)

    b1 = pad_vec(params["b31_1"])
    b3 = pad_vec(params["b31_2"])
    t1 = pad_vec(t1)
    t2 = pad_vec(t2)

    consts = [wp1, b1, wp2, t1, wp3, b3, wp4, t2]

    def full_spec(a):
        nd = a.ndim
        return pl.BlockSpec(a.shape, lambda n, nd=nd: (0,) * nd)

    in_specs = [pl.BlockSpec((1, H, W, Cp), lambda n: (n, 0, 0, 0))]
    in_specs += [full_spec(a) for a in consts]

    # Explicit VMEM budget: in/out blocks (double-buffered), packed scratch,
    # weights, plus headroom for f32 intermediates.
    img_f32 = H * W * Cp * 4
    packed_bytes = H * W * 3 * Cp * jnp.dtype(mxu_dtype).itemsize
    w_bytes = 4 * 3 * Cp * Cp * jnp.dtype(mxu_dtype).itemsize
    vmem_limit = 4 * img_f32 + 8 * img_f32 + packed_bytes + 2 * w_bytes + (2 << 20)
    vmem_limit = int(min(max(vmem_limit, 32 << 20), 64 << 20))

    grid_spec = pltpu.PrefetchScalarGridSpec(
        num_scalar_prefetch=0,
        grid=(N,),
        in_specs=in_specs,
        out_specs=pl.BlockSpec((1, H, W, Cp), lambda n: (n, 0, 0, 0)),
        scratch_shapes=[pltpu.VMEM((H, W, 3 * Cp), mxu_dtype)],
    )

    out = pl.pallas_call(
        functools.partial(_nb1d_kernel, dilated),
        out_shape=jax.ShapeDtypeStruct((N, H, W, Cp), x_nchw.dtype),
        grid_spec=grid_spec,
        compiler_params=pltpu.CompilerParams(
            dimension_semantics=("parallel",),
            vmem_limit_bytes=vmem_limit),
    )(x, *consts)

    out = out[..., :C]                                     # strip channel padding
    return jnp.transpose(out, (0, 3, 1, 2))                # NHWC -> NCHW


# ---------------------------------------------------------------------------
# Pure-JAX reference (NCHW, lax.conv_general_dilated) for correctness check
# ---------------------------------------------------------------------------
def reference_forward(x, params, dilated):
    eps = 0.001

    def conv(inp, w, b, pad, dil):
        y = lax.conv_general_dilated(
            inp, w, window_strides=(1, 1),
            padding=((pad[0], pad[0]), (pad[1], pad[1])),
            rhs_dilation=dil,
            dimension_numbers=("NCHW", "OIHW", "NCHW"))
        return y + b.reshape(1, -1, 1, 1)

    def bn(inp, g, b, m, v):
        g, b, m, v = (a.reshape(1, -1, 1, 1) for a in (g, b, m, v))
        return (inp - m) / jnp.sqrt(v + eps) * g + b

    o = conv(x, params["w31_1"], params["b31_1"], (1, 0), (1, 1))
    o = jnp.maximum(o, 0.0)
    o = conv(o, params["w13_1"], params["b13_1"], (0, 1), (1, 1))
    o = bn(o, *params["bn1"])
    o = jnp.maximum(o, 0.0)
    o = conv(o, params["w31_2"], params["b31_2"], (dilated, 0), (dilated, 1))
    o = jnp.maximum(o, 0.0)
    o = conv(o, params["w13_2"], params["b13_2"], (0, dilated), (1, dilated))
    o = bn(o, *params["bn2"])
    return o + x


def init_params(C, key):
    ks = jax.random.split(key, 8)
    return {
        "w31_1": 0.2 * jax.random.normal(ks[0], (C, C, 3, 1), jnp.float32),
        "b31_1": 0.05 * jax.random.normal(ks[1], (C,), jnp.float32),
        "w13_1": 0.2 * jax.random.normal(ks[2], (C, C, 1, 3), jnp.float32),
        "b13_1": 0.05 * jax.random.normal(ks[3], (C,), jnp.float32),
        "w31_2": 0.2 * jax.random.normal(ks[4], (C, C, 3, 1), jnp.float32),
        "b31_2": 0.05 * jax.random.normal(ks[5], (C,), jnp.float32),
        "w13_2": 0.2 * jax.random.normal(ks[6], (C, C, 1, 3), jnp.float32),
        "b13_2": 0.05 * jax.random.normal(ks[7], (C,), jnp.float32),
        # BatchNorm (gamma, beta, running_mean, running_var) — deterministic, non-trivial
        "bn1": (1.0 + 0.1 * jnp.arange(C, dtype=jnp.float32),
                0.05 * jnp.arange(C, dtype=jnp.float32),
                0.02 * jnp.arange(C, dtype=jnp.float32),
                1.0 + 0.2 * jnp.arange(C, dtype=jnp.float32)),
        "bn2": (1.0 - 0.05 * jnp.arange(C, dtype=jnp.float32),
                -0.03 * jnp.arange(C, dtype=jnp.float32),
                0.01 * jnp.arange(C, dtype=jnp.float32),
                1.0 + 0.1 * jnp.arange(C, dtype=jnp.float32)),
    }


if __name__ == "__main__":
    key = jax.random.PRNGKey(0)
    k_x, k_p = jax.random.split(key)

    N, C, H, W = 2, 4, 16, 16          # small NCHW shapes consistent with the module
    dilated = 2
    dropprob = 0.0                      # dropout.p == 0 -> identity branch in forward

    x = jax.random.normal(k_x, (N, C, H, W), jnp.float32)
    params = init_params(C, k_p)

    out = non_bottleneck_1d_forward(x, params, dilated)
    out = jax.block_until_ready(out)

    ref = reference_forward(x, params, dilated)
    assert out.shape == (N, C, H, W)
    # bf16 MXU operands (f32 accumulation) -> slightly looser tolerance than pure f32.
    max_err = jnp.max(jnp.abs(out - ref))
    assert jnp.allclose(out, ref, atol=2e-2, rtol=2e-2), f"max abs err {max_err}"

    print("KERNEL_OK")
</pallas_src>

<mosaic_0001>
module attributes {stable_mosaic.version = 11 : i64} {
  func.func @_nb1d_kernel(%arg0: i32, %arg1: memref<1x16x16x128xf32, #tpu.memory_space<vmem>>, %arg2: memref<384x128xbf16, #tpu.memory_space<vmem>>, %arg3: memref<1x128xf32, #tpu.memory_space<vmem>>, %arg4: memref<384x128xbf16, #tpu.memory_space<vmem>>, %arg5: memref<1x128xf32, #tpu.memory_space<vmem>>, %arg6: memref<384x128xbf16, #tpu.memory_space<vmem>>, %arg7: memref<1x128xf32, #tpu.memory_space<vmem>>, %arg8: memref<384x128xbf16, #tpu.memory_space<vmem>>, %arg9: memref<1x128xf32, #tpu.memory_space<vmem>>, %arg10: memref<1x16x16x128xf32, #tpu.memory_space<vmem>>, %arg11: memref<16x16x384xbf16, #tpu.memory_space<vmem>>) attributes {dimension_semantics = [#tpu.dimension_semantics<parallel>], iteration_bounds = array<i64: 2>, scalar_prefetch = 0 : i64, scratch_operands = 1 : i64, tpu.core_type = #tpu.core_type<tc>, window_params = [{transform_indices = @transform_0, window_bounds = array<i64: 1, 16, 16, 128>}, {pipeline_mode = #tpu.pipeline_mode<synchronous>, transform_indices = @transform_1, window_bounds = array<i64: 384, 128>}, {pipeline_mode = #tpu.pipeline_mode<synchronous>, transform_indices = @transform_2, window_bounds = array<i64: 1, 128>}, {pipeline_mode = #tpu.pipeline_mode<synchronous>, transform_indices = @transform_3, window_bounds = array<i64: 384, 128>}, {pipeline_mode = #tpu.pipeline_mode<synchronous>, transform_indices = @transform_4, window_bounds = array<i64: 1, 128>}, {pipeline_mode = #tpu.pipeline_mode<synchronous>, transform_indices = @transform_5, window_bounds = array<i64: 384, 128>}, {pipeline_mode = #tpu.pipeline_mode<synchronous>, transform_indices = @transform_6, window_bounds = array<i64: 1, 128>}, {pipeline_mode = #tpu.pipeline_mode<synchronous>, transform_indices = @transform_7, window_bounds = array<i64: 384, 128>}, {pipeline_mode = #tpu.pipeline_mode<synchronous>, transform_indices = @transform_8, window_bounds = array<i64: 1, 128>}, {transform_indices = @transform_9, window_bounds = array<i64: 1, 16, 16, 128>}]} {
    %c0 = arith.constant 0 : index
    %c0_0 = arith.constant 0 : index
    %c0_1 = arith.constant 0 : index
    %c0_2 = arith.constant 0 : index
    %0 = vector.load %arg1[%c0, %c0_0, %c0_1, %c0_2] : memref<1x16x16x128xf32, #tpu.memory_space<vmem>>, vector<1x16x16x128xf32>
    %1 = vector.shape_cast %0 : vector<1x16x16x128xf32> to vector<16x16x128xf32>
    %2 = arith.truncf %1 : vector<16x16x128xf32> to vector<16x16x128xbf16>
    %cst = arith.constant 0.000000e+00 : bf16
    %3 = vector.broadcast %cst : bf16 to vector<1x16x128xbf16>
    %c0_3 = arith.constant 0 : index
    %c0_4 = arith.constant 0 : index
    %c0_5 = arith.constant 0 : index
    %4 = vector.load %arg11[%c0_3, %c0_4, %c0_5] : memref<16x16x384xbf16, #tpu.memory_space<vmem>>, vector<1x16x128xbf16>
    tpu.vector_store %arg11[%c0_3, %c0_4, %c0_5], %3 {strides = array<i32>} : memref<16x16x384xbf16, #tpu.memory_space<vmem>>, vector<1x16x128xbf16>,
    %5 = vector.extract_strided_slice %2 {offsets = [0, 0, 0], sizes = [15, 16, 128], strides = [1, 1, 1]} : vector<16x16x128xbf16> to vector<15x16x128xbf16>
    %c1 = arith.constant 1 : index
    %c0_6 = arith.constant 0 : index
    %c0_7 = arith.constant 0 : index
    %6 = vector.load %arg11[%c1, %c0_6, %c0_7] : memref<16x16x384xbf16, #tpu.memory_space<vmem>>, vector<15x16x128xbf16>
    tpu.vector_store %arg11[%c1, %c0_6, %c0_7], %5 {strides = array<i32>} : memref<16x16x384xbf16, #tpu.memory_space<vmem>>, vector<15x16x128xbf16>,
    %c0_8 = arith.constant 0 : index
    %c0_9 = arith.constant 0 : index
    %c128 = arith.constant 128 : index
    %7 = vector.load %arg11[%c0_8, %c0_9, %c128] : memref<16x16x384xbf16, #tpu.memory_space<vmem>>, vector<16x16x128xbf16>
    tpu.vector_store %arg11[%c0_8, %c0_9, %c128], %2 {strides = array<i32>} : memref<16x16x384xbf16, #tpu.memory_space<vmem>>, vector<16x16x128xbf16>,
    %8 = vector.extract_strided_slice %2 {offsets = [1, 0, 0], sizes = [15, 16, 128], strides = [1, 1, 1]} : vector<16x16x128xbf16> to vector<15x16x128xbf16>
    %c0_10 = arith.constant 0 : index
    %c0_11 = arith.constant 0 : index
    %c256 = arith.constant 256 : index
    %9 = vector.load %arg11[%c0_10, %c0_11, %c256] : memref<16x16x384xbf16, #tpu.memory_space<vmem>>, vector<15x16x128xbf16>
    tpu.vector_store %arg11[%c0_10, %c0_11, %c256], %8 {strides = array<i32>} : memref<16x16x384xbf16, #tpu.memory_space<vmem>>, vector<15x16x128xbf16>,
    %cst_12 = arith.constant 0.000000e+00 : bf16
    %10 = vector.broadcast %cst_12 : bf16 to vector<1x16x128xbf16>
    %c15 = arith.constant 15 : index
    %c0_13 = arith.constant 0 : index
    %c256_14 = arith.constant 256 : index
    %11 = vector.load %arg11[%c15, %c0_13, %c256_14] : memref<16x16x384xbf16, #tpu.memory_space<vmem>>, vector<1x16x128xbf16>
    tpu.vector_store %arg11[%c15, %c0_13, %c256_14], %10 {strides = array<i32>} : memref<16x16x384xbf16, #tpu.memory_space<vmem>>, vector<1x16x128xbf16>,
    %c0_15 = arith.constant 0 : index
    %c0_16 = arith.constant 0 : index
    %c0_17 = arith.constant 0 : index
    %12 = vector.load %arg11[%c0_15, %c0_16, %c0_17] : memref<16x16x384xbf16, #tpu.memory_space<vmem>>, vector<16x16x384xbf16>
    %13 = vector.shape_cast %12 : vector<16x16x384xbf16> to vector<256x384xbf16>
    %c0_18 = arith.constant 0 : index
    %c0_19 = arith.constant 0 : index
    %14 = vector.load %arg2[%c0_18, %c0_19] : memref<384x128xbf16, #tpu.memory_space<vmem>>, vector<384x128xbf16>
    %cst_20 = arith.constant dense<0.000000e+00> : vector<256x128xf32>
    %15 = tpu.matmul %13, %14, %cst_20 {dimension_numbers = #tpu.dot_dimension_numbers<[1], [0], [0], [1], [0, 0, 1, 1], [], []>} : vector<256x384xbf16>, vector<384x128xbf16>, vector<256x128xf32> -> vector<256x128xf32>
    %16 = vector.shape_cast %15 : vector<256x128xf32> to vector<16x16x128xf32>
    %c0_21 = arith.constant 0 : index
    %c0_22 = arith.constant 0 : index
    %17 = vector.load %arg3[%c0_21, %c0_22] : memref<1x128xf32, #tpu.memory_space<vmem>>, vector<1x128xf32>
    %18 = vector.shape_cast %17 : vector<1x128xf32> to vector<1x1x128xf32>
    %19 = vector.broadcast %18 : vector<1x1x128xf32> to vector<16x16x128xf32>
    %20 = arith.addf %16, %19 : vector<16x16x128xf32>
    %cst_23 = arith.constant 0.000000e+00 : f32
    %21 = vector.broadcast %cst_23 : f32 to vector<16x16x128xf32>
    %22 = arith.maximumf %20, %21 : vector<16x16x128xf32>
    %23 = arith.truncf %22 : vector<16x16x128xf32> to vector<16x16x128xbf16>
    %cst_24 = arith.constant 0.000000e+00 : bf16
    %24 = vector.broadcast %cst_24 : bf16 to vector<16x1x128xbf16>
    %c0_25 = arith.constant 0 : index
    %c0_26 = arith.constant 0 : index
    %c0_27 = arith.constant 0 : index
    %25 = vector.load %arg11[%c0_25, %c0_26, %c0_27] : memref<16x16x384xbf16, #tpu.memory_space<vmem>>, vector<16x1x128xbf16>
    tpu.vector_store %arg11[%c0_25, %c0_26, %c0_27], %24 {strides = array<i32>} : memref<16x16x384xbf16, #tpu.memory_space<vmem>>, vector<16x1x128xbf16>,
    %26 = vector.extract_strided_slice %23 {offsets = [0, 0, 0], sizes = [16, 15, 128], strides = [1, 1, 1]} : vector<16x16x128xbf16> to vector<16x15x128xbf16>
    %c0_28 = arith.constant 0 : index
    %c1_29 = arith.constant 1 : index
    %c0_30 = arith.constant 0 : index
    %27 = vector.load %arg11[%c0_28, %c1_29, %c0_30] : memref<16x16x384xbf16, #tpu.memory_space<vmem>>, vector<16x15x128xbf16>
    tpu.vector_store %arg11[%c0_28, %c1_29, %c0_30], %26 {strides = array<i32>} : memref<16x16x384xbf16, #tpu.memory_space<vmem>>, vector<16x15x128xbf16>,
    %c0_31 = arith.constant 0 : index
    %c0_32 = arith.constant 0 : index
    %c128_33 = arith.constant 128 : index
    %28 = vector.load %arg11[%c0_31, %c0_32, %c128_33] : memref<16x16x384xbf16, #tpu.memory_space<vmem>>, vector<16x16x128xbf16>
    tpu.vector_store %arg11[%c0_31, %c0_32, %c128_33], %23 {strides = array<i32>} : memref<16x16x384xbf16, #tpu.memory_space<vmem>>, vector<16x16x128xbf16>,
    %29 = vector.extract_strided_slice %23 {offsets = [0, 1, 0], sizes = [16, 15, 128], strides = [1, 1, 1]} : vector<16x16x128xbf16> to vector<16x15x128xbf16>
    %c0_34 = arith.constant 0 : index
    %c0_35 = arith.constant 0 : index
    %c256_36 = arith.constant 256 : index
    %30 = vector.load %arg11[%c0_34, %c0_35, %c256_36] : memref<16x16x384xbf16, #tpu.memory_space<vmem>>, vector<16x15x128xbf16>
    tpu.vector_store %arg11[%c0_34, %c0_35, %c256_36], %29 {strides = array<i32>} : memref<16x16x384xbf16, #tpu.memory_space<vmem>>, vector<16x15x128xbf16>,
    %cst_37 = arith.constant 0.000000e+00 : bf16
    %31 = vector.broadcast %cst_37 : bf16 to vector<16x1x128xbf16>
    %c0_38 = arith.constant 0 : index
    %c15_39 = arith.constant 15 : index
    %c256_40 = arith.constant 256 : index
    %32 = vector.load %arg11[%c0_38, %c15_39, %c256_40] : memref<16x16x384xbf16, #tpu.memory_space<vmem>>, vector<16x1x128xbf16>
    tpu.vector_store %arg11[%c0_38, %c15_39, %c256_40], %31 {strides = array<i32>} : memref<16x16x384xbf16, #tpu.memory_space<vmem>>, vector<16x1x128xbf16>,
    %c0_41 = arith.constant 0 : index
    %c0_42 = arith.constant 0 : index
    %c0_43 = arith.constant 0 : index
    %33 = vector.load %arg11[%c0_41, %c0_42, %c0_43] : memref<16x16x384xbf16, #tpu.memory_space<vmem>>, vector<16x16x384xbf16>
    %34 = vector.shape_cast %33 : vector<16x16x384xbf16> to vector<256x384xbf16>
    %c0_44 = arith.constant 0 : index
    %c0_45 = arith.constant 0 : index
    %35 = vector.load %arg4[%c0_44, %c0_45] : memref<384x128xbf16, #tpu.memory_space<vmem>>, vector<384x128xbf16>
    %cst_46 = arith.constant dense<0.000000e+00> : vector<256x128xf32>
    %36 = tpu.matmul %34, %35, %cst_46 {dimension_numbers = #tpu.dot_dimension_numbers<[1], [0], [0], [1], [0, 0, 1, 1], [], []>} : vector<256x384xbf16>, vector<384x128xbf16>, vector<256x128xf32> -> vector<256x128xf32>
    %37 = vector.shape_cast %36 : vector<256x128xf32> to vector<16x16x128xf32>
    %c0_47 = arith.constant 0 : index
    %c0_48 = arith.constant 0 : index
    %38 = vector.load %arg5[%c0_47, %c0_48] : memref<1x128xf32, #tpu.memory_space<vmem>>, vector<1x128xf32>
    %39 = vector.shape_cast %38 : vector<1x128xf32> to vector<1x1x128xf32>
    %40 = vector.broadcast %39 : vector<1x1x128xf32> to vector<16x16x128xf32>
    %41 = arith.addf %37, %40 : vector<16x16x128xf32>
    %cst_49 = arith.constant 0.000000e+00 : f32
    %42 = vector.broadcast %cst_49 : f32 to vector<16x16x128xf32>
    %43 = arith.maximumf %41, %42 : vector<16x16x128xf32>
    %44 = arith.truncf %43 : vector<16x16x128xf32> to vector<16x16x128xbf16>
    %cst_50 = arith.constant 0.000000e+00 : bf16
    %45 = vector.broadcast %cst_50 : bf16 to vector<2x16x128xbf16>
    %c0_51 = arith.constant 0 : index
    %c0_52 = arith.constant 0 : index
    %c0_53 = arith.constant 0 : index
    %46 = vector.load %arg11[%c0_51, %c0_52, %c0_53] : memref<16x16x384xbf16, #tpu.memory_space<vmem>>, vector<2x16x128xbf16>
    tpu.vector_store %arg11[%c0_51, %c0_52, %c0_53], %45 {strides = array<i32>} : memref<16x16x384xbf16, #tpu.memory_space<vmem>>, vector<2x16x128xbf16>,
    %47 = vector.extract_strided_slice %44 {offsets = [0, 0, 0], sizes = [14, 16, 128], strides = [1, 1, 1]} : vector<16x16x128xbf16> to vector<14x16x128xbf16>
    %c2 = arith.constant 2 : index
    %c0_54 = arith.constant 0 : index
    %c0_55 = arith.constant 0 : index
    %48 = vector.load %arg11[%c2, %c0_54, %c0_55] : memref<16x16x384xbf16, #tpu.memory_space<vmem>>, vector<14x16x128xbf16>
    tpu.vector_store %arg11[%c2, %c0_54, %c0_55], %47 {strides = array<i32>} : memref<16x16x384xbf16, #tpu.memory_space<vmem>>, vector<14x16x128xbf16>,
    %c0_56 = arith.constant 0 : index
    %c0_57 = arith.constant 0 : index
    %c128_58 = arith.constant 128 : index
    %49 = vector.load %arg11[%c0_56, %c0_57, %c128_58] : memref<16x16x384xbf16, #tpu.memory_space<vmem>>, vector<16x16x128xbf16>
    tpu.vector_store %arg11[%c0_56, %c0_57, %c128_58], %44 {strides = array<i32>} : memref<16x16x384xbf16, #tpu.memory_space<vmem>>, vector<16x16x128xbf16>,
    %50 = vector.extract_strided_slice %44 {offsets = [2, 0, 0], sizes = [14, 16, 128], strides = [1, 1, 1]} : vector<16x16x128xbf16> to vector<14x16x128xbf16>
    %c0_59 = arith.constant 0 : index
    %c0_60 = arith.constant 0 : index
    %c256_61 = arith.constant 256 : index
    %51 = vector.load %arg11[%c0_59, %c0_60, %c256_61] : memref<16x16x384xbf16, #tpu.memory_space<vmem>>, vector<14x16x128xbf16>
    tpu.vector_store %arg11[%c0_59, %c0_60, %c256_61], %50 {strides = array<i32>} : memref<16x16x384xbf16, #tpu.memory_space<vmem>>, vector<14x16x128xbf16>,
    %cst_62 = arith.constant 0.000000e+00 : bf16
    %52 = vector.broadcast %cst_62 : bf16 to vector<2x16x128xbf16>
    %c14 = arith.constant 14 : index
    %c0_63 = arith.constant 0 : index
    %c256_64 = arith.constant 256 : index
    %53 = vector.load %arg11[%c14, %c0_63, %c256_64] : memref<16x16x384xbf16, #tpu.memory_space<vmem>>, vector<2x16x128xbf16>
    tpu.vector_store %arg11[%c14, %c0_63, %c256_64], %52 {strides = array<i32>} : memref<16x16x384xbf16, #tpu.memory_space<vmem>>, vector<2x16x128xbf16>,
    %c0_65 = arith.constant 0 : index
    %c0_66 = arith.constant 0 : index
    %c0_67 = arith.constant 0 : index
    %54 = vector.load %arg11[%c0_65, %c0_66, %c0_67] : memref<16x16x384xbf16, #tpu.memory_space<vmem>>, vector<16x16x384xbf16>
    %55 = vector.shape_cast %54 : vector<16x16x384xbf16> to vector<256x384xbf16>
    %c0_68 = arith.constant 0 : index
    %c0_69 = arith.constant 0 : index
    %56 = vector.load %arg6[%c0_68, %c0_69] : memref<384x128xbf16, #tpu.memory_space<vmem>>, vector<384x128xbf16>
    %cst_70 = arith.constant dense<0.000000e+00> : vector<256x128xf32>
    %57 = tpu.matmul %55, %56, %cst_70 {dimension_numbers = #tpu.dot_dimension_numbers<[1], [0], [0], [1], [0, 0, 1, 1], [], []>} : vector<256x384xbf16>, vector<384x128xbf16>, vector<256x128xf32> -> vector<256x128xf32>
    %58 = vector.shape_cast %57 : vector<256x128xf32> to vector<16x16x128xf32>
    %c0_71 = arith.constant 0 : index
    %c0_72 = arith.constant 0 : index
    %59 = vector.load %arg7[%c0_71, %c0_72] : memref<1x128xf32, #tpu.memory_space<vmem>>, vector<1x128xf32>
    %60 = vector.shape_cast %59 : vector<1x128xf32> to vector<1x1x128xf32>
    %61 = vector.broadcast %60 : vector<1x1x128xf32> to vector<16x16x128xf32>
    %62 = arith.addf %58, %61 : vector<16x16x128xf32>
    %cst_73 = arith.constant 0.000000e+00 : f32
    %63 = vector.broadcast %cst_73 : f32 to vector<16x16x128xf32>
    %64 = arith.maximumf %62, %63 : vector<16x16x128xf32>
    %65 = arith.truncf %64 : vector<16x16x128xf32> to vector<16x16x128xbf16>
    %cst_74 = arith.constant 0.000000e+00 : bf16
    %66 = vector.broadcast %cst_74 : bf16 to vector<16x2x128xbf16>
    %c0_75 = arith.constant 0 : index
    %c0_76 = arith.constant 0 : index
    %c0_77 = arith.constant 0 : index
    %67 = vector.load %arg11[%c0_75, %c0_76, %c0_77] : memref<16x16x384xbf16, #tpu.memory_space<vmem>>, vector<16x2x128xbf16>
    tpu.vector_store %arg11[%c0_75, %c0_76, %c0_77], %66 {strides = array<i32>} : memref<16x16x384xbf16, #tpu.memory_space<vmem>>, vector<16x2x128xbf16>,
    %68 = vector.extract_strided_slice %65 {offsets = [0, 0, 0], sizes = [16, 14, 128], strides = [1, 1, 1]} : vector<16x16x128xbf16> to vector<16x14x128xbf16>
    %c0_78 = arith.constant 0 : index
    %c2_79 = arith.constant 2 : index
    %c0_80 = arith.constant 0 : index
    %69 = vector.load %arg11[%c0_78, %c2_79, %c0_80] : memref<16x16x384xbf16, #tpu.memory_space<vmem>>, vector<16x14x128xbf16>
    tpu.vector_store %arg11[%c0_78, %c2_79, %c0_80], %68 {strides = array<i32>} : memref<16x16x384xbf16, #tpu.memory_space<vmem>>, vector<16x14x128xbf16>,
    %c0_81 = arith.constant 0 : index
    %c0_82 = arith.constant 0 : index
    %c128_83 = arith.constant 128 : index
    %70 = vector.load %arg11[%c0_81, %c0_82, %c128_83] : memref<16x16x384xbf16, #tpu.memory_space<vmem>>, vector<16x16x128xbf16>
    tpu.vector_store %arg11[%c0_81, %c0_82, %c128_83], %65 {strides = array<i32>} : memref<16x16x384xbf16, #tpu.memory_space<vmem>>, vector<16x16x128xbf16>,
    %71 = vector.extract_strided_slice %65 {offsets = [0, 2, 0], sizes = [16, 14, 128], strides = [1, 1, 1]} : vector<16x16x128xbf16> to vector<16x14x128xbf16>
    %c0_84 = arith.constant 0 : index
    %c0_85 = arith.constant 0 : index
    %c256_86 = arith.constant 256 : index
    %72 = vector.load %arg11[%c0_84, %c0_85, %c256_86] : memref<16x16x384xbf16, #tpu.memory_space<vmem>>, vector<16x14x128xbf16>
    tpu.vector_store %arg11[%c0_84, %c0_85, %c256_86], %71 {strides = array<i32>} : memref<16x16x384xbf16, #tpu.memory_space<vmem>>, vector<16x14x128xbf16>,
    %cst_87 = arith.constant 0.000000e+00 : bf16
    %73 = vector.broadcast %cst_87 : bf16 to vector<16x2x128xbf16>
    %c0_88 = arith.constant 0 : index
    %c14_89 = arith.constant 14 : index
    %c256_90 = arith.constant 256 : index
    %74 = vector.load %arg11[%c0_88, %c14_89, %c256_90] : memref<16x16x384xbf16, #tpu.memory_space<vmem>>, vector<16x2x128xbf16>
    tpu.vector_store %arg11[%c0_88, %c14_89, %c256_90], %73 {strides = array<i32>} : memref<16x16x384xbf16, #tpu.memory_space<vmem>>, vector<16x2x128xbf16>,
    %c0_91 = arith.constant 0 : index
    %c0_92 = arith.constant 0 : index
    %c0_93 = arith.constant 0 : index
    %75 = vector.load %arg11[%c0_91, %c0_92, %c0_93] : memref<16x16x384xbf16, #tpu.memory_space<vmem>>, vector<16x16x384xbf16>
    %76 = vector.shape_cast %75 : vector<16x16x384xbf16> to vector<256x384xbf16>
    %c0_94 = arith.constant 0 : index
    %c0_95 = arith.constant 0 : index
    %77 = vector.load %arg8[%c0_94, %c0_95] : memref<384x128xbf16, #tpu.memory_space<vmem>>, vector<384x128xbf16>
    %cst_96 = arith.constant dense<0.000000e+00> : vector<256x128xf32>
    %78 = tpu.matmul %76, %77, %cst_96 {dimension_numbers = #tpu.dot_dimension_numbers<[1], [0], [0], [1], [0, 0, 1, 1], [], []>} : vector<256x384xbf16>, vector<384x128xbf16>, vector<256x128xf32> -> vector<256x128xf32>
    %79 = vector.shape_cast %78 : vector<256x128xf32> to vector<16x16x128xf32>
    %c0_97 = arith.constant 0 : index
    %c0_98 = arith.constant 0 : index
    %80 = vector.load %arg9[%c0_97, %c0_98] : memref<1x128xf32, #tpu.memory_space<vmem>>, vector<1x128xf32>
    %81 = vector.shape_cast %80 : vector<1x128xf32> to vector<1x1x128xf32>
    %82 = vector.broadcast %81 : vector<1x1x128xf32> to vector<16x16x128xf32>
    %83 = arith.addf %79, %82 : vector<16x16x128xf32>
    %84 = arith.addf %83, %1 : vector<16x16x128xf32>
    %c0_99 = arith.constant 0 : index
    %c0_100 = arith.constant 0 : index
    %c0_101 = arith.constant 0 : index
    %c0_102 = arith.constant 0 : index
    %85 = vector.load %arg10[%c0_99, %c0_100, %c0_101, %c0_102] : memref<1x16x16x128xf32, #tpu.memory_space<vmem>>, vector<1x16x16x128xf32>
    %86 = vector.shape_cast %85 : vector<1x16x16x128xf32> to vector<16x16x128xf32>
    %87 = vector.shape_cast %84 : vector<16x16x128xf32> to vector<1x16x16x128xf32>
    tpu.vector_store %arg10[%c0_99, %c0_100, %c0_101, %c0_102], %87 {strides = array<i32>} : memref<1x16x16x128xf32, #tpu.memory_space<vmem>>, vector<1x16x16x128xf32>,
    return
  }
  func.func @transform_0(%arg0: i32) -> (i32, i32, i32, i32) {
    %c0_i32 = arith.constant 0 : i32
    %c0_i32_0 = arith.constant 0 : i32
    %c0_i32_1 = arith.constant 0 : i32
    %c0_i32_2 = arith.constant 0 : i32
    return %arg0, %c0_i32, %c0_i32_0, %c0_i32_1 : i32, i32, i32, i32
  }
  func.func @transform_1(%arg0: i32) -> (i32, i32) {
    %c0_i32 = arith.constant 0 : i32
    %c0_i32_0 = arith.constant 0 : i32
    %c0_i32_1 = arith.constant 0 : i32
    return %c0_i32, %c0_i32_0 : i32, i32
  }
  func.func @transform_2(%arg0: i32) -> (i32, i32) {
    %c0_i32 = arith.constant 0 : i32
    %c0_i32_0 = arith.constant 0 : i32
    %c0_i32_1 = arith.constant 0 : i32
    return %c0_i32, %c0_i32_0 : i32, i32
  }
  func.func @transform_3(%arg0: i32) -> (i32, i32) {
    %c0_i32 = arith.constant 0 : i32
    %c0_i32_0 = arith.constant 0 : i32
    %c0_i32_1 = arith.constant 0 : i32
    return %c0_i32, %c0_i32_0 : i32, i32
  }
  func.func @transform_4(%arg0: i32) -> (i32, i32) {
    %c0_i32 = arith.constant 0 : i32
    %c0_i32_0 = arith.constant 0 : i32
    %c0_i32_1 = arith.constant 0 : i32
    return %c0_i32, %c0_i32_0 : i32, i32
  }
  func.func @transform_5(%arg0: i32) -> (i32, i32) {
    %c0_i32 = arith.constant 0 : i32
    %c0_i32_0 = arith.constant 0 : i32
    %c0_i32_1 = arith.constant 0 : i32
    return %c0_i32, %c0_i32_0 : i32, i32
  }
  func.func @transform_6(%arg0: i32) -> (i32, i32) {
    %c0_i32 = arith.constant 0 : i32
    %c0_i32_0 = arith.constant 0 : i32
    %c0_i32_1 = arith.constant 0 : i32
    return %c0_i32, %c0_i32_0 : i32, i32
  }
  func.func @transform_7(%arg0: i32) -> (i32, i32) {
    %c0_i32 = arith.constant 0 : i32
    %c0_i32_0 = arith.constant 0 : i32
    %c0_i32_1 = arith.constant 0 : i32
    return %c0_i32, %c0_i32_0 : i32, i32
  }
  func.func @transform_8(%arg0: i32) -> (i32, i32) {
    %c0_i32 = arith.constant 0 : i32
    %c0_i32_0 = arith.constant 0 : i32
    %c0_i32_1 = arith.constant 0 : i32
    return %c0_i32, %c0_i32_0 : i32, i32
  }
  func.func @transform_9(%arg0: i32) -> (i32, i32, i32, i32) {
    %c0_i32 = arith.constant 0 : i32
    %c0_i32_0 = arith.constant 0 : i32
    %c0_i32_1 = arith.constant 0 : i32
    %c0_i32_2 = arith.constant 0 : i32
    return %arg0, %c0_i32, %c0_i32_0, %c0_i32_1 : i32, i32, i32, i32
  }
}

</mosaic_0001>

<llo_original>
// kernel: tpu_custom_call.1
$region0: #{tpu_custom_call.1}
  #allocation0 [shape = 'u32[]', space=smem, size = 0x4, offset = 0x4, fixed_abs, tag = 'smem constant byte address 0x4 - core index']
  #allocation1 [shape = 'u32[144,128]{1,0:T(1,128)}', space=vmem, size = 0x12000, scoped, tag = 'internal scratch']
  #allocation2 [shape = 'bf16[16,16,384]{2,1,0:T(8,128)(2,1)}', space=vmem, size = 0x30000, scoped, tag = 'scratch operand']
  %s0 = inlined_call_operand.hbm [shape: f32[2,16,16,128], index: 0, kind: input, shape index: {}]
  %s1 = inlined_call_operand.hbm [shape: bf16[384,128], index: 1, kind: input, shape index: {}]
  %s2 = inlined_call_operand.vmem [shape: f32[1,128], index: 2, kind: input, shape index: {}]
  %s3 = inlined_call_operand.hbm [shape: bf16[384,128], index: 3, kind: input, shape index: {}]
  %s4 = inlined_call_operand.vmem [shape: f32[1,128], index: 4, kind: input, shape index: {}]
  %s5 = inlined_call_operand.hbm [shape: bf16[384,128], index: 5, kind: input, shape index: {}]
  %s6 = inlined_call_operand.vmem [shape: f32[1,128], index: 6, kind: input, shape index: {}]
  %s7 = inlined_call_operand.hbm [shape: bf16[384,128], index: 7, kind: input, shape index: {}]
  %s8 = inlined_call_operand.vmem [shape: f32[1,128], index: 8, kind: input, shape index: {}]
  %s9 = inlined_call_operand.hbm [shape: f32[2,16,16,128], index: 9, kind: output, shape index: {}]
  %s10 = sld [smem:[#allocation0]]
  $region89: #{tpu_custom_call.1} parent=0
    _
  %s12 = ssub.s32 1, %s10
  %s13 = scalar_select 0, %s12, %s10
  $region1: #{tpu_custom_call.1} parent=0
    #allocation3 [shape = 'u8[262144]{0}', space=vmem, size = 0x40000, scoped, tag = 'input window, operand 0']
    #allocation4 [shape = 's32[2]{0}', space=sflag, size = 0x8, scoped, tag = 'scoped memory for tpu_custom_call.1']
    #allocation5 [shape = 's32[2]{0}', space=sflag, size = 0x8, scoped, tag = 'scoped memory for tpu_custom_call.1']
    #allocation6 [shape = 'u8[98304]{0}', space=vmem, size = 0x18000, scoped, tag = 'input window, operand 1, single buffered']
    #allocation7 [shape = 's32[1]{0}', space=sflag, size = 0x4, scoped, tag = 'scoped memory for tpu_custom_call.1']
    #allocation8 [shape = 'u8[98304]{0}', space=vmem, size = 0x18000, scoped, tag = 'input window, operand 3, single buffered']
    #allocation9 [shape = 'u8[98304]{0}', space=vmem, size = 0x18000, scoped, tag = 'input window, operand 5, single buffered']
    #allocation10 [shape = 's32[1]{0}', space=sflag, size = 0x4, scoped, tag = 'scoped memory for tpu_custom_call.1']
    #allocation11 [shape = 'u8[98304]{0}', space=vmem, size = 0x18000, scoped, tag = 'input window, operand 7, single buffered']
    #allocation12 [shape = 'u8[262144]{0}', space=vmem, size = 0x40000, scoped, tag = 'output window, operand 0']
    %14 = vsyncpa [#allocation4], 0
    %s15 = scalar_lea.sflag [#allocation4], 1
    %16 = vsyncpa %s15, 0
    %17 = vsyncpa [#allocation7], 0
    %18 = vsyncpa [#allocation10], 0
    %19 = vsyncpa [#allocation5], 0
    %s20 = scalar_lea.sflag [#allocation5], 1
    %21 = vsyncpa %s20, 0
    loop: start=0, step=1, limit=4
    $region2: #{tpu_custom_call.1} parent=1 // loop_pre_header
      _
    $region3: #{tpu_custom_call.1} parent=1 // loop_header
      %s23 = sphi 0, %s27
      %p24 = scmp.ge.s32.totalorder %s23, 4
      %s33 = sphi 0, %s35
      %s36 = sphi 0, %s33
      %s37 = sphi 0, %s36
      %s53 = sphi 0, %s37
      %s57 = sphi 0, %s57
      %s59 = sphi 0, %s57
      %s60 = sphi 0, %s59
      %s74 = sphi 0, %s60
      %s78 = sphi 0, %s78
      %s80 = sphi 0, %s78
      %s81 = sphi 0, %s80
      %s95 = sphi 0, %s81
      %s99 = sphi 0, %s99
      %s101 = sphi 0, %s99
      %s102 = sphi 0, %s101
      %s116 = sphi 0, %s102
      %s120 = sphi 0, %s120
      %s122 = sphi 0, %s120
      %s123 = sphi 0, %s122
      %s137 = sphi 0, %s123
      %s141 = sphi 0, %s141
      %s143 = sphi 0, %s141
      %s144 = sphi 0, %s143
      %s158 = sphi 0, %s144
      %s162 = sphi 0, %s162
      %s164 = sphi 0, %s162
      %s165 = sphi 0, %s164
      %s179 = sphi 0, %s165
      %s183 = sphi 0, %s183
      %s185 = sphi 0, %s183
      %s186 = sphi 0, %s185
      %s200 = sphi 0, %s186
      %s204 = sphi 0, %s204
      %s206 = sphi 0, %s204
      %s207 = sphi 0, %s206
      %s221 = sphi 0, %s207
      %s227 = sphi 0, %s229
      %s230 = sphi 0, %s227
      %s231 = sphi 0, %s230
      %s247 = sphi 0, %s231
    $region4: #{tpu_custom_call.1} parent=1 // loop_header_branch
      %26 = sbr.rel (%p24) target = $region8
    $region5: #{tpu_custom_call.1} parent=1 // loop_body
      %s28 = ssub.s32 %s23, 1
      %s29 = ssub.s32 %s23, 2
      %s30 = sadd.s32 %s23, 1
      %s31 = ssub.s32 %s23, %s30
      %p32 = scmp.eq.s32.totalorder %s31, 0
      %s34 = sadd.s32 %s33, 1
      %s35 = scalar_select %p32, %s33, %s34
      %p38 = pneg %p32
      %p39 = scmp.eq.s32.totalorder %s23, 1
      %p40 = por %p38, %p39
      %p41 = scmp.ne.s32.totalorder %s33, %s36
      %p42 = scmp.eq.s32.totalorder %s23, 0
      %p43 = por %p41, %p42
      %p44 = scmp.ne.s32.totalorder %s33, %s36
      %p45 = scmp.eq.s32.totalorder %s28, 1
      %p46 = por %p44, %p45
      %p47 = scmp.ne.s32.totalorder %s36, %s37
      %p48 = scmp.eq.s32.totalorder %s28, 0
      %p49 = por %p47, %p48
      %p50 = scmp.ne.s32.totalorder %s36, %s37
      %p51 = scmp.eq.s32.totalorder %s29, 1
      %p52 = por %p50, %p51
      %p54 = scmp.ne.s32.totalorder %s37, %s53
      %p55 = scmp.eq.s32.totalorder %s29, 0
      %p56 = por %p54, %p55
      %s58 = sadd.s32 %s57, 1
      %p61 = scmp.eq.s32.totalorder %s23, 1
      %p62 = scmp.ne.s32.totalorder %s57, %s59
      %p63 = scmp.eq.s32.totalorder %s23, 0
      %p64 = por %p62, %p63
      %p65 = scmp.ne.s32.totalorder %s57, %s59
      %p66 = scmp.eq.s32.totalorder %s28, 1
      %p67 = por %p65, %p66
      %p68 = scmp.ne.s32.totalorder %s59, %s60
      %p69 = scmp.eq.s32.totalorder %s28, 0
      %p70 = por %p68, %p69
      %p71 = scmp.ne.s32.totalorder %s59, %s60
      %p72 = scmp.eq.s32.totalorder %s29, 1
      %p73 = por %p71, %p72
      %p75 = scmp.ne.s32.totalorder %s60, %s74
      %p76 = scmp.eq.s32.totalorder %s29, 0
      %p77 = por %p75, %p76
      %s79 = sadd.s32 %s78, 1
      %p82 = scmp.eq.s32.totalorder %s23, 1
      %p83 = scmp.ne.s32.totalorder %s78, %s80
      %p84 = scmp.eq.s32.totalorder %s23, 0
      %p85 = por %p83, %p84
      %p86 = scmp.ne.s32.totalorder %s78, %s80
      %p87 = scmp.eq.s32.totalorder %s28, 1
      %p88 = por %p86, %p87
      %p89 = scmp.ne.s32.totalorder %s80, %s81
      %p90 = scmp.eq.s32.totalorder %s28, 0
      %p91 = por %p89, %p90
      %p92 = scmp.ne.s32.totalorder %s80, %s81
      %p93 = scmp.eq.s32.totalorder %s29, 1
      %p94 = por %p92, %p93
      %p96 = scmp.ne.s32.totalorder %s81, %s95
      %p97 = scmp.eq.s32.totalorder %s29, 0
      %p98 = por %p96, %p97
      %s100 = sadd.s32 %s99, 1
      %p103 = scmp.eq.s32.totalorder %s23, 1
      %p104 = scmp.ne.s32.totalorder %s99, %s101
      %p105 = scmp.eq.s32.totalorder %s23, 0
      %p106 = por %p104, %p105
      %p107 = scmp.ne.s32.totalorder %s99, %s101
      %p108 = scmp.eq.s32.totalorder %s28, 1
      %p109 = por %p107, %p108
      %p110 = scmp.ne.s32.totalorder %s101, %s102
      %p111 = scmp.eq.s32.totalorder %s28, 0
      %p112 = por %p110, %p111
      %p113 = scmp.ne.s32.totalorder %s101, %s102
      %p114 = scmp.eq.s32.totalorder %s29, 1
      %p115 = por %p113, %p114
      %p117 = scmp.ne.s32.totalorder %s102, %s116
      %p118 = scmp.eq.s32.totalorder %s29, 0
      %p119 = por %p117, %p118
      %s121 = sadd.s32 %s120, 1
      %p124 = scmp.eq.s32.totalorder %s23, 1
      %p125 = scmp.ne.s32.totalorder %s120, %s122
      %p126 = scmp.eq.s32.totalorder %s23, 0
      %p127 = por %p125, %p126
      %p128 = scmp.ne.s32.totalorder %s120, %s122
      %p129 = scmp.eq.s32.totalorder %s28, 1
      %p130 = por %p128, %p129
      %p131 = scmp.ne.s32.totalorder %s122, %s123
      %p132 = scmp.eq.s32.totalorder %s28, 0
      %p133 = por %p131, %p132
      %p134 = scmp.ne.s32.totalorder %s122, %s123
      %p135 = scmp.eq.s32.totalorder %s29, 1
      %p136 = por %p134, %p135
      %p138 = scmp.ne.s32.totalorder %s123, %s137
      %p139 = scmp.eq.s32.totalorder %s29, 0
      %p140 = por %p138, %p139
      %s142 = sadd.s32 %s141, 1
      %p145 = scmp.eq.s32.totalorder %s23, 1
      %p146 = scmp.ne.s32.totalorder %s141, %s143
      %p147 = scmp.eq.s32.totalorder %s23, 0
      %p148 = por %p146, %p147
      %p149 = scmp.ne.s32.totalorder %s141, %s143
      %p150 = scmp.eq.s32.totalorder %s28, 1
      %p151 = por %p149, %p150
      %p152 = scmp.ne.s32.totalorder %s143, %s144
      %p153 = scmp.eq.s32.totalorder %s28, 0
      %p154 = por %p152, %p153
      %p155 = scmp.ne.s32.totalorder %s143, %s144
      %p156 = scmp.eq.s32.totalorder %s29, 1
      %p157 = por %p155, %p156
      %p159 = scmp.ne.s32.totalorder %s144, %s158
      %p160 = scmp.eq.s32.totalorder %s29, 0
      %p161 = por %p159, %p160
      %s163 = sadd.s32 %s162, 1
      %p166 = scmp.eq.s32.totalorder %s23, 1
      %p167 = scmp.ne.s32.totalorder %s162, %s164
      %p168 = scmp.eq.s32.totalorder %s23, 0
      %p169 = por %p167, %p168
      %p170 = scmp.ne.s32.totalorder %s162, %s164
      %p171 = scmp.eq.s32.totalorder %s28, 1
      %p172 = por %p170, %p171
      %p173 = scmp.ne.s32.totalorder %s164, %s165
      %p174 = scmp.eq.s32.totalorder %s28, 0
      %p175 = por %p173, %p174
      %p176 = scmp.ne.s32.totalorder %s164, %s165
      %p177 = scmp.eq.s32.totalorder %s29, 1
      %p178 = por %p176, %p177
      %p180 = scmp.ne.s32.totalorder %s165, %s179
      %p181 = scmp.eq.s32.totalorder %s29, 0
      %p182 = por %p180, %p181
      %s184 = sadd.s32 %s183, 1
      %p187 = scmp.eq.s32.totalorder %s23, 1
      %p188 = scmp.ne.s32.totalorder %s183, %s185
      %p189 = scmp.eq.s32.totalorder %s23, 0
      %p190 = por %p188, %p189
      %p191 = scmp.ne.s32.totalorder %s183, %s185
      %p192 = scmp.eq.s32.totalorder %s28, 1
      %p193 = por %p191, %p192
      %p194 = scmp.ne.s32.totalorder %s185, %s186
      %p195 = scmp.eq.s32.totalorder %s28, 0
      %p196 = por %p194, %p195
      %p197 = scmp.ne.s32.totalorder %s185, %s186
      %p198 = scmp.eq.s32.totalorder %s29, 1
      %p199 = por %p197, %p198
      %p201 = scmp.ne.s32.totalorder %s186, %s200
      %p202 = scmp.eq.s32.totalorder %s29, 0
      %p203 = por %p201, %p202
      %s205 = sadd.s32 %s204, 1
      %p208 = scmp.eq.s32.totalorder %s23, 1
      %p209 = scmp.ne.s32.totalorder %s204, %s206
      %p210 = scmp.eq.s32.totalorder %s23, 0
      %p211 = por %p209, %p210
      %p212 = scmp.ne.s32.totalorder %s204, %s206
      %p213 = scmp.eq.s32.totalorder %s28, 1
      %p214 = por %p212, %p213
      %p215 = scmp.ne.s32.totalorder %s206, %s207
      %p216 = scmp.eq.s32.totalorder %s28, 0
      %p217 = por %p215, %p216
      %p218 = scmp.ne.s32.totalorder %s206, %s207
      %p219 = scmp.eq.s32.totalorder %s29, 1
      %p220 = por %p218, %p219
      %p222 = scmp.ne.s32.totalorder %s207, %s221
      %p223 = scmp.eq.s32.totalorder %s29, 0
      %p224 = por %p222, %p223
      %s225 = ssub.s32 %s23, %s30
      %p226 = scmp.eq.s32.totalorder %s225, 0
      %s228 = sadd.s32 %s227, 1
      %s229 = scalar_select %p226, %s227, %s228
      %p232 = pneg %p226
      %p233 = scmp.eq.s32.totalorder %s23, 1
      %p234 = por %p232, %p233
      %p235 = scmp.ne.s32.totalorder %s227, %s230
      %p236 = scmp.eq.s32.totalorder %s23, 0
      %p237 = por %p235, %p236
      %p238 = scmp.ne.s32.totalorder %s227, %s230
      %p239 = scmp.eq.s32.totalorder %s28, 1
      %p240 = por %p238, %p239
      %p241 = scmp.ne.s32.totalorder %s230, %s231
      %p242 = scmp.eq.s32.totalorder %s28, 0
      %p243 = por %p241, %p242
      %p244 = scmp.ne.s32.totalorder %s230, %s231
      %p245 = scmp.eq.s32.totalorder %s29, 1
      %p246 = por %p244, %p245
      %p248 = scmp.ne.s32.totalorder %s231, %s247
      %p249 = scmp.eq.s32.totalorder %s29, 0
      %p250 = por %p248, %p249
      %p251 = scmp.le.s32.totalorder 1, %s23
      %p252 = scmp.lt.s32.totalorder %s23, 3
      %p253 = pnand %p251, %p252
      %p254 = pneg %p253
      // Predicated region
      $region9: #{tpu_custom_call.1} parent=5 // pred_check
        _
      $region10: #{tpu_custom_call.1} parent=5 // pred_check_branch
        %256 = sbr.rel (%p253) target = $region12
      $region11: #{tpu_custom_call.1} parent=5 // pred_region
        %s257 = ssub.s32 %s23, 1
        // Predicated region
        $region13: #{tpu_custom_call.1} parent=11 // pred_check
          %p258 = pneg %p70
        $region14: #{tpu_custom_call.1} parent=11 // pred_check_branch
          %260 = sbr.rel (%p258) target = $region16
        $region15: #{tpu_custom_call.1} parent=11 // pred_region
          %s262 = ssub.s32 3072, 3072
          %263 = vsyncadd [#allocation7], %s262
          %s264 = sshll.u32 [#allocation6], 4
          %s265 = int_to_ptr.vmem [resolvable:$true] %s264
          %270 = dma.hbm_to_vmem [thread:$0]  %s1, 3072, %s265, [#allocation7], 64, 64, 4
        $region16: #{tpu_custom_call.1} parent=11 // pred_fallthru
          _
        // Predicated region
        $region17: #{tpu_custom_call.1} parent=11 // pred_check
          %p271 = pneg %p91
        $region18: #{tpu_custom_call.1} parent=11 // pred_check_branch
          %273 = sbr.rel (%p271) target = $region20
        $region19: #{tpu_custom_call.1} parent=11 // pred_region
          _
        $region20: #{tpu_custom_call.1} parent=11 // pred_fallthru
          _
        // Predicated region
        $region21: #{tpu_custom_call.1} parent=11 // pred_check
          %p274 = pneg %p112
        $region22: #{tpu_custom_call.1} parent=11 // pred_check_branch
          %276 = sbr.rel (%p274) target = $region24
        $region23: #{tpu_custom_call.1} parent=11 // pred_region
          %s278 = ssub.s32 3072, 3072
          %279 = vsyncadd [#allocation7], %s278
          %s280 = sshll.u32 [#allocation8], 4
          %s281 = int_to_ptr.vmem [resolvable:$true] %s280
          %286 = dma.hbm_to_vmem [thread:$0]  %s3, 3072, %s281, [#allocation7], 64, 64, 4
        $region24: #{tpu_custom_call.1} parent=11 // pred_fallthru
          _
        // Predicated region
        $region25: #{tpu_custom_call.1} parent=11 // pred_check
          %p287 = pneg %p133
        $region26: #{tpu_custom_call.1} parent=11 // pred_check_branch
          %289 = sbr.rel (%p287) target = $region28
        $region27: #{tpu_custom_call.1} parent=11 // pred_region
          _
        $region28: #{tpu_custom_call.1} parent=11 // pred_fallthru
          _
        // Predicated region
        $region29: #{tpu_custom_call.1} parent=11 // pred_check
          %p290 = pneg %p154
        $region30: #{tpu_custom_call.1} parent=11 // pred_check_branch
          %292 = sbr.rel (%p290) target = $region32
        $region31: #{tpu_custom_call.1} parent=11 // pred_region
          %s294 = ssub.s32 3072, 3072
          %295 = vsyncadd [#allocation10], %s294
          %s296 = sshll.u32 [#allocation9], 4
          %s297 = int_to_ptr.vmem [resolvable:$true] %s296
          %302 = dma.hbm_to_vmem [thread:$0]  %s5, 3072, %s297, [#allocation10], 64, 64, 4
        $region32: #{tpu_custom_call.1} parent=11 // pred_fallthru
          _
        // Predicated region
        $region33: #{tpu_custom_call.1} parent=11 // pred_check
          %p303 = pneg %p175
        $region34: #{tpu_custom_call.1} parent=11 // pred_check_branch
          %305 = sbr.rel (%p303) target = $region36
        $region35: #{tpu_custom_call.1} parent=11 // pred_region
          _
        $region36: #{tpu_custom_call.1} parent=11 // pred_fallthru
          _
        // Predicated region
        $region37: #{tpu_custom_call.1} parent=11 // pred_check
          %p306 = pneg %p196
        $region38: #{tpu_custom_call.1} parent=11 // pred_check_branch
          %308 = sbr.rel (%p306) target = $region40
        $region39: #{tpu_custom_call.1} parent=11 // pred_region
          %s310 = ssub.s32 3072, 3072
          %311 = vsyncadd [#allocation10], %s310
          %s312 = sshll.u32 [#allocation11], 4
          %s313 = int_to_ptr.vmem [resolvable:$true] %s312
          %318 = dma.hbm_to_vmem [thread:$0]  %s7, 3072, %s313, [#allocation10], 64, 64, 4
        $region40: #{tpu_custom_call.1} parent=11 // pred_fallthru
          _
        // Predicated region
        $region41: #{tpu_custom_call.1} parent=11 // pred_check
          %p319 = pneg %p217
        $region42: #{tpu_custom_call.1} parent=11 // pred_check_branch
          %321 = sbr.rel (%p319) target = $region44
        $region43: #{tpu_custom_call.1} parent=11 // pred_region
          _
        $region44: #{tpu_custom_call.1} parent=11 // pred_fallthru
          _
      $region12: #{tpu_custom_call.1} parent=5 // pred_fallthru
        _
      %p322 = scmp.lt.s32.totalorder %s23, 2
      // Predicated region
      $region45: #{tpu_custom_call.1} parent=5 // pred_check
        %p323 = pneg %p322
      $region46: #{tpu_custom_call.1} parent=5 // pred_check_branch
        %325 = sbr.rel (%p323) target = $region48
      $region47: #{tpu_custom_call.1} parent=5 // pred_region
        // Predicated region
        $region49: #{tpu_custom_call.1} parent=47 // pred_check
          %p326 = pneg %p43
        $region50: #{tpu_custom_call.1} parent=47 // pred_check_branch
          %328 = sbr.rel (%p326) target = $region52
        $region51: #{tpu_custom_call.1} parent=47 // pred_region
          %s329 = sand.u32 %s33, 1
          %s330 = scalar_lea.sflag [#allocation4], %s329
          %s331 = sand.u32 %s33, 1
          %s332 = smul.addr %s331, 256
          %s333 = scalar_lea.vmem [#allocation3], %s332
          %s335 = ssub.s32 4096, 4096
          %336 = vsyncadd %s330, %s335
          %s337 = smul.addr %s23, 32
          %s338 = smul.addr %s337, 128
          %s339 = scalar_lea.hbm %s0, %s338
          %s340 = sshll.u32 %s333, 4
          %s341 = int_to_ptr.vmem [resolvable:$true] %s340
          %346 = dma.hbm_to_vmem [thread:$0]  %s339, 4096, %s341, %s330, 128, 128, 8
        $region52: #{tpu_custom_call.1} parent=47 // pred_fallthru
          _
      $region48: #{tpu_custom_call.1} parent=5 // pred_fallthru
        _
      %p347 = scmp.le.s32.totalorder 1, %s23
      %p348 = scmp.lt.s32.totalorder %s23, 3
      %p349 = pnand %p347, %p348
      %p350 = pneg %p349
      // Predicated region
      $region53: #{tpu_custom_call.1} parent=5 // pred_check
        _
      $region54: #{tpu_custom_call.1} parent=5 // pred_check_branch
        %352 = sbr.rel (%p349) target = $region56
      $region55: #{tpu_custom_call.1} parent=5 // pred_region
        %s353 = ssub.s32 %s23, 1
        %s354 = sand.u32 %s36, 1
        %s355 = scalar_lea.sflag [#allocation4], %s354
        %s356 = sand.u32 %s36, 1
        %s357 = smul.addr %s356, 256
        %s358 = scalar_lea.vmem [#allocation3], %s357
        // Predicated region
        $region57: #{tpu_custom_call.1} parent=55 // pred_check
          %p359 = pneg %p49
        $region58: #{tpu_custom_call.1} parent=55 // pred_check_branch
          %361 = sbr.rel (%p359) target = $region60
        $region59: #{tpu_custom_call.1} parent=55 // pred_region
          %362 = dma.done %s355, 4096
        $region60: #{tpu_custom_call.1} parent=55 // pred_fallthru
          _
        // Predicated region
        $region61: #{tpu_custom_call.1} parent=55 // pred_check
          %p363 = pneg %p70
        $region62: #{tpu_custom_call.1} parent=55 // pred_check_branch
          %365 = sbr.rel (%p363) target = $region64
        $region63: #{tpu_custom_call.1} parent=55 // pred_region
          %366 = dma.done [#allocation7], 3072
        $region64: #{tpu_custom_call.1} parent=55 // pred_fallthru
          _
        // Predicated region
        $region65: #{tpu_custom_call.1} parent=55 // pred_check
          %p367 = pneg %p112
        $region66: #{tpu_custom_call.1} parent=55 // pred_check_branch
          %369 = sbr.rel (%p367) target = $region68
        $region67: #{tpu_custom_call.1} parent=55 // pred_region
          %370 = dma.done [#allocation7], 3072
        $region68: #{tpu_custom_call.1} parent=55 // pred_fallthru
          _
        // Predicated region
        $region69: #{tpu_custom_call.1} parent=55 // pred_check
          %p371 = pneg %p154
        $region70: #{tpu_custom_call.1} parent=55 // pred_check_branch
          %373 = sbr.rel (%p371) target = $region72
        $region71: #{tpu_custom_call.1} parent=55 // pred_region
          %374 = dma.done [#allocation10], 3072
        $region72: #{tpu_custom_call.1} parent=55 // pred_fallthru
          _
        // Predicated region
        $region73: #{tpu_custom_call.1} parent=55 // pred_check
          %p375 = pneg %p196
        $region74: #{tpu_custom_call.1} parent=55 // pred_check_branch
          %377 = sbr.rel (%p375) target = $region76
        $region75: #{tpu_custom_call.1} parent=55 // pred_region
          %378 = dma.done [#allocation10], 3072
        $region76: #{tpu_custom_call.1} parent=55 // pred_fallthru
          _
        %s379 = sand.u32 %s36, 1
        %s380 = scalar_lea.sflag [#allocation4], %s379
        %s381 = sand.u32 %s36, 1
        %s382 = smul.addr %s381, 256
        %s383 = scalar_lea.vmem [#allocation3], %s382
        %p384 = pneg %p49
        %p385 = pneg %p46
        %p386 = pneg %p70
        %p387 = pneg %p67
        %p388 = pneg %p91
        %p389 = pneg %p88
        %p390 = pneg %p112
        %p391 = pneg %p109
        %p392 = pneg %p133
        %p393 = pneg %p130
        %p394 = pneg %p154
        %p395 = pneg %p151
        %p396 = pneg %p175
        %p397 = pneg %p172
        %p398 = pneg %p196
        %p399 = pneg %p193
        %p400 = pneg %p217
        %p401 = pneg %p214
        %p402 = pneg %p243
        %p403 = pneg %p240
        %s404 = sand.u32 %s230, 1
        %s405 = scalar_lea.sflag [#allocation5], %s404
        %s406 = sand.u32 %s230, 1
        %s407 = smul.addr %s406, 256
        %s408 = scalar_lea.vmem [#allocation12], %s407
        %v410 = vld [vmem:[%s358] sm:$0xff]
        %v411 = vld [vmem:[%s358 + $0x8] sm:$0xff]
        %v412 = vld [vmem:[%s358 + $0x10] sm:$0xff]
        %v413 = vld [vmem:[%s358 + $0x18] sm:$0xff]
        %v414 = vld [vmem:[%s358 + $0x20] sm:$0xff]
        %v415 = vld [vmem:[%s358 + $0x28] sm:$0xff]
        %v416 = vld [vmem:[%s358 + $0x30] sm:$0xff]
        %v417 = vld [vmem:[%s358 + $0x38] sm:$0xff]
        %v418 = vld [vmem:[%s358 + $0x40] sm:$0xff]
        %v419 = vld [vmem:[%s358 + $0x48] sm:$0xff]
        %v420 = vld [vmem:[%s358 + $0x50] sm:$0xff]
        %v421 = vld [vmem:[%s358 + $0x58] sm:$0xff]
        %v422 = vld [vmem:[%s358 + $0x60] sm:$0xff]
        %v423 = vld [vmem:[%s358 + $0x68] sm:$0xff]
        %v424 = vld [vmem:[%s358 + $0x70] sm:$0xff]
        %v425 = vld [vmem:[%s358 + $0x78] sm:$0xff]
        %v426 = vld [vmem:[%s358 + $0x80] sm:$0xff]
        %v427 = vld [vmem:[%s358 + $0x88] sm:$0xff]
        %v428 = vld [vmem:[%s358 + $0x90] sm:$0xff]
        %v429 = vld [vmem:[%s358 + $0x98] sm:$0xff]
        %v430 = vld [vmem:[%s358 + $0xa0] sm:$0xff]
        %v431 = vld [vmem:[%s358 + $0xa8] sm:$0xff]
        %v432 = vld [vmem:[%s358 + $0xb0] sm:$0xff]
        %v433 = vld [vmem:[%s358 + $0xb8] sm:$0xff]
        %v434 = vld [vmem:[%s358 + $0xc0] sm:$0xff]
        %v435 = vld [vmem:[%s358 + $0xc8] sm:$0xff]
        %v436 = vld [vmem:[%s358 + $0xd0] sm:$0xff]
        %v437 = vld [vmem:[%s358 + $0xd8] sm:$0xff]
        %v438 = vld [vmem:[%s358 + $0xe0] sm:$0xff]
        %v439 = vld [vmem:[%s358 + $0xe8] sm:$0xff]
        %v440 = vld [vmem:[%s358 + $0xf0] sm:$0xff]
        %v441 = vld [vmem:[%s358 + $0xf8] sm:$0xff]
        %v442 = vpack.c.bf16 %v411, %v410
        %v443 = vpack.c.bf16 %v413, %v412
        %v444 = vpack.c.bf16 %v415, %v414
        %v445 = vpack.c.bf16 %v417, %v416
        %v446 = vpack.c.bf16 %v419, %v418
        %v447 = vpack.c.bf16 %v421, %v420
        %v448 = vpack.c.bf16 %v423, %v422
        %v449 = vpack.c.bf16 %v425, %v424
        %v450 = vpack.c.bf16 %v427, %v426
        %v451 = vpack.c.bf16 %v429, %v428
        %v452 = vpack.c.bf16 %v431, %v430
        %v453 = vpack.c.bf16 %v433, %v432
        %v454 = vpack.c.bf16 %v435, %v434
        %v455 = vpack.c.bf16 %v437, %v436
        %v456 = vpack.c.bf16 %v439, %v438
        %v457 = vpack.c.bf16 %v441, %v440
        %458 = vst [vmem:[#allocation2] sm:$0xf] 0
        %459 = vst [vmem:[#allocation2 + $0xc] sm:$0xf] 0
        %v475 = vunpack.c.l.b16 %v442
        %v476 = vunpack.c.h.b16 %v442
        %v477 = vunpack.c.l.b16 %v443
        %v478 = vunpack.c.h.b16 %v443
        %v479 = vunpack.c.l.b16 %v444
        %v480 = vunpack.c.h.b16 %v444
        %v481 = vunpack.c.l.b16 %v445
        %v482 = vunpack.c.h.b16 %v445
        %v483 = vunpack.c.l.b16 %v446
        %v484 = vunpack.c.h.b16 %v446
        %v485 = vunpack.c.l.b16 %v447
        %v486 = vunpack.c.h.b16 %v447
        %v487 = vunpack.c.l.b16 %v448
        %v488 = vunpack.c.h.b16 %v448
        %v489 = vunpack.c.l.b16 %v449
        %v490 = vunpack.c.h.b16 %v449
        %v491 = vunpack.c.l.b16 %v450
        %v492 = vunpack.c.h.b16 %v450
        %v493 = vunpack.c.l.b16 %v451
        %v494 = vunpack.c.h.b16 %v451
        %v495 = vunpack.c.l.b16 %v452
        %v496 = vunpack.c.h.b16 %v452
        %v497 = vunpack.c.l.b16 %v453
        %v498 = vunpack.c.h.b16 %v453
        %v499 = vunpack.c.l.b16 %v454
        %v500 = vunpack.c.h.b16 %v454
        %v501 = vunpack.c.l.b16 %v455
        %v502 = vunpack.c.h.b16 %v455
        %v503 = vunpack.c.l.b16 %v456
        %v504 = vunpack.c.h.b16 %v456
        %v505 = vpack.c.b16 %v475, %v475
        %v506 = vpack.c.b16 %v476, %v476
        %v507 = vpack.c.b16 %v477, %v477
        %v508 = vpack.c.b16 %v478, %v478
        %v509 = vpack.c.b16 %v479, %v479
        %v510 = vpack.c.b16 %v480, %v480
        %v511 = vpack.c.b16 %v481, %v481
        %v512 = vpack.c.b16 %v482, %v482
        %v513 = vpack.c.b16 %v483, %v483
        %v514 = vpack.c.b16 %v484, %v484
        %v515 = vpack.c.b16 %v485, %v485
        %v516 = vpack.c.b16 %v486, %v486
        %v517 = vpack.c.b16 %v487, %v487
        %v518 = vpack.c.b16 %v488, %v488
        %v519 = vpack.c.b16 %v489, %v489
        %v520 = vpack.c.b16 %v490, %v490
        %v521 = vpack.c.b16 %v491, %v491
        %v522 = vpack.c.b16 %v492, %v492
        %v523 = vpack.c.b16 %v493, %v493
        %v524 = vpack.c.b16 %v494, %v494
        %v525 = vpack.c.b16 %v495, %v495
        %v526 = vpack.c.b16 %v496, %v496
        %v527 = vpack.c.b16 %v497, %v497
        %v528 = vpack.c.b16 %v498, %v498
        %v529 = vpack.c.b16 %v499, %v499
        %v530 = vpack.c.b16 %v500, %v500
        %v531 = vpack.c.b16 %v501, %v501
        %v532 = vpack.c.b16 %v502, %v502
        %v533 = vpack.c.b16 %v503, %v503
        %v534 = vpack.c.b16 %v504, %v504
        %s565 = scalar_lea.vmem [#allocation2], 24
        %566 = vst [vmem:[%s565] sm:$0xf] %v505
        %567 = vst [vmem:[%s565 + $0xc] sm:$0xf] %v506
        %568 = vst [vmem:[%s565 + $0x18] sm:$0xf] %v507
        %569 = vst [vmem:[%s565 + $0x24] sm:$0xf] %v508
        %570 = vst [vmem:[%s565 + $0x30] sm:$0xf] %v509
        %571 = vst [vmem:[%s565 + $0x3c] sm:$0xf] %v510
        %572 = vst [vmem:[%s565 + $0x48] sm:$0xf] %v511
        %573 = vst [vmem:[%s565 + $0x54] sm:$0xf] %v512
        %574 = vst [vmem:[%s565 + $0x60] sm:$0xf] %v513
        %575 = vst [vmem:[%s565 + $0x6c] sm:$0xf] %v514
        %576 = vst [vmem:[%s565 + $0x78] sm:$0xf] %v515
        %577 = vst [vmem:[%s565 + $0x84] sm:$0xf] %v516
        %578 = vst [vmem:[%s565 + $0x90] sm:$0xf] %v517
        %579 = vst [vmem:[%s565 + $0x9c] sm:$0xf] %v518
        %580 = vst [vmem:[%s565 + $0xa8] sm:$0xf] %v519
        %581 = vst [vmem:[%s565 + $0xb4] sm:$0xf] %v520
        %582 = vst [vmem:[%s565 + $0xc0] sm:$0xf] %v521
        %583 = vst [vmem:[%s565 + $0xcc] sm:$0xf] %v522
        %584 = vst [vmem:[%s565 + $0xd8] sm:$0xf] %v523
        %585 = vst [vmem:[%s565 + $0xe4] sm:$0xf] %v524
        %586 = vst [vmem:[%s565 + $0xf0] sm:$0xf] %v525
        %587 = vst [vmem:[%s565 + $0xfc] sm:$0xf] %v526
        %588 = vst [vmem:[%s565 + $0x108] sm:$0xf] %v527
        %589 = vst [vmem:[%s565 + $0x114] sm:$0xf] %v528
        %590 = vst [vmem:[%s565 + $0x120] sm:$0xf] %v529
        %591 = vst [vmem:[%s565 + $0x12c] sm:$0xf] %v530
        %592 = vst [vmem:[%s565 + $0x138] sm:$0xf] %v531
        %593 = vst [vmem:[%s565 + $0x144] sm:$0xf] %v532
        %594 = vst [vmem:[%s565 + $0x150] sm:$0xf] %v533
        %595 = vst [vmem:[%s565 + $0x15c] sm:$0xf] %v534
        %v597 = vunpack.c.l.b16 %v457
        %v598 = vunpack.c.h.b16 %v457
        %v599 = vpack.c.b16 %v597, %v597
        %v600 = vpack.c.b16 %v598, %v598
        %603 = vst [vmem:[#allocation2 + $0x4] sm:$0xf] %v505
        %604 = vst [vmem:[#allocation2 + $0x10] sm:$0xf] %v506
        %605 = vst [vmem:[#allocation2 + $0x1c] sm:$0xf] %v507
        %606 = vst [vmem:[#allocation2 + $0x28] sm:$0xf] %v508
        %607 = vst [vmem:[#allocation2 + $0x34] sm:$0xf] %v509
        %608 = vst [vmem:[#allocation2 + $0x40] sm:$0xf] %v510
        %609 = vst [vmem:[#allocation2 + $0x4c] sm:$0xf] %v511
        %610 = vst [vmem:[#allocation2 + $0x58] sm:$0xf] %v512
        %611 = vst [vmem:[#allocation2 + $0x64] sm:$0xf] %v513
        %612 = vst [vmem:[#allocation2 + $0x70] sm:$0xf] %v514
        %613 = vst [vmem:[#allocation2 + $0x7c] sm:$0xf] %v515
        %614 = vst [vmem:[#allocation2 + $0x88] sm:$0xf] %v516
        %615 = vst [vmem:[#allocation2 + $0x94] sm:$0xf] %v517
        %616 = vst [vmem:[#allocation2 + $0xa0] sm:$0xf] %v518
        %617 = vst [vmem:[#allocation2 + $0xac] sm:$0xf] %v519
        %618 = vst [vmem:[#allocation2 + $0xb8] sm:$0xf] %v520
        %619 = vst [vmem:[#allocation2 + $0xc4] sm:$0xf] %v521
        %620 = vst [vmem:[#allocation2 + $0xd0] sm:$0xf] %v522
        %621 = vst [vmem:[#allocation2 + $0xdc] sm:$0xf] %v523
        %622 = vst [vmem:[#allocation2 + $0xe8] sm:$0xf] %v524
        %623 = vst [vmem:[#allocation2 + $0xf4] sm:$0xf] %v525
        %624 = vst [vmem:[#allocation2 + $0x100] sm:$0xf] %v526
        %625 = vst [vmem:[#allocation2 + $0x10c] sm:$0xf] %v527
        %626 = vst [vmem:[#allocation2 + $0x118] sm:$0xf] %v528
        %627 = vst [vmem:[#allocation2 + $0x124] sm:$0xf] %v529
        %628 = vst [vmem:[#allocation2 + $0x130] sm:$0xf] %v530
        %629 = vst [vmem:[#allocation2 + $0x13c] sm:$0xf] %v531
        %630 = vst [vmem:[#allocation2 + $0x148] sm:$0xf] %v532
        %631 = vst [vmem:[#allocation2 + $0x154] sm:$0xf] %v533
        %632 = vst [vmem:[#allocation2 + $0x160] sm:$0xf] %v534
        %633 = vst [vmem:[#allocation2 + $0x16c] sm:$0xf] %v599
        %634 = vst [vmem:[#allocation2 + $0x178] sm:$0xf] %v600
        %635 = vst [vmem:[#allocation2 + $0x8] sm:$0xf] %v507
        %636 = vst [vmem:[#allocation2 + $0x14] sm:$0xf] %v508
        %637 = vst [vmem:[#allocation2 + $0x20] sm:$0xf] %v509
        %638 = vst [vmem:[#allocation2 + $0x2c] sm:$0xf] %v510
        %639 = vst [vmem:[#allocation2 + $0x38] sm:$0xf] %v511
        %640 = vst [vmem:[#allocation2 + $0x44] sm:$0xf] %v512
        %641 = vst [vmem:[#allocation2 + $0x50] sm:$0xf] %v513
        %642 = vst [vmem:[#allocation2 + $0x5c] sm:$0xf] %v514
        %643 = vst [vmem:[#allocation2 + $0x68] sm:$0xf] %v515
        %644 = vst [vmem:[#allocation2 + $0x74] sm:$0xf] %v516
        %645 = vst [vmem:[#allocation2 + $0x80] sm:$0xf] %v517
        %646 = vst [vmem:[#allocation2 + $0x8c] sm:$0xf] %v518
        %647 = vst [vmem:[#allocation2 + $0x98] sm:$0xf] %v519
        %648 = vst [vmem:[#allocation2 + $0xa4] sm:$0xf] %v520
        %649 = vst [vmem:[#allocation2 + $0xb0] sm:$0xf] %v521
        %650 = vst [vmem:[#allocation2 + $0xbc] sm:$0xf] %v522
        %651 = vst [vmem:[#allocation2 + $0xc8] sm:$0xf] %v523
        %652 = vst [vmem:[#allocation2 + $0xd4] sm:$0xf] %v524
        %653 = vst [vmem:[#allocation2 + $0xe0] sm:$0xf] %v525
        %654 = vst [vmem:[#allocation2 + $0xec] sm:$0xf] %v526
        %655 = vst [vmem:[#allocation2 + $0xf8] sm:$0xf] %v527
        %656 = vst [vmem:[#allocation2 + $0x104] sm:$0xf] %v528
        %657 = vst [vmem:[#allocation2 + $0x110] sm:$0xf] %v529
        %658 = vst [vmem:[#allocation2 + $0x11c] sm:$0xf] %v530
        %659 = vst [vmem:[#allocation2 + $0x128] sm:$0xf] %v531
        %660 = vst [vmem:[#allocation2 + $0x134] sm:$0xf] %v532
        %661 = vst [vmem:[#allocation2 + $0x140] sm:$0xf] %v533
        %662 = vst [vmem:[#allocation2 + $0x14c] sm:$0xf] %v534
        %663 = vst [vmem:[#allocation2 + $0x158] sm:$0xf] %v599
        %664 = vst [vmem:[#allocation2 + $0x164] sm:$0xf] %v600
        %s665 = scalar_lea.vmem [#allocation2], 360
        %666 = vst [vmem:[%s665 + $0x8] sm:$0xf] 0
        %667 = vst [vmem:[%s665 + $0x14] sm:$0xf] 0
        %v668 = vld [vmem:[#allocation2] sm:$0xff]
        %v669 = vld [vmem:[#allocation2 + $0x8] sm:$0xf]
        %v670 = vld [vmem:[#allocation2 + $0xc] sm:$0xff]
        %v671 = vld [vmem:[#allocation2 + $0x14] sm:$0xf]
        %v672 = vld [vmem:[#allocation2 + $0x18] sm:$0xff]
        %v673 = vld [vmem:[#allocation2 + $0x20] sm:$0xf]
        %v674 = vld [vmem:[#allocation2 + $0x24] sm:$0xff]
        %v675 = vld [vmem:[#allocation2 + $0x2c] sm:$0xf]
        %v676 = vld [vmem:[#allocation2 + $0x30] sm:$0xff]
        %v677 = vld [vmem:[#allocation2 + $0x38] sm:$0xf]
        %v678 = vld [vmem:[#allocation2 + $0x3c] sm:$0xff]
        %v679 = vld [vmem:[#allocation2 + $0x44] sm:$0xf]
        %v680 = vld [vmem:[#allocation2 + $0x48] sm:$0xff]
        %v681 = vld [vmem:[#allocation2 + $0x50] sm:$0xf]
        %v682 = vld [vmem:[#allocation2 + $0x54] sm:$0xff]
        %v683 = vld [vmem:[#allocation2 + $0x5c] sm:$0xf]
        %v684 = vld [vmem:[#allocation2 + $0x60] sm:$0xff]
        %v685 = vld [vmem:[#allocation2 + $0x68] sm:$0xf]
        %v686 = vld [vmem:[#allocation2 + $0x6c] sm:$0xff]
        %v687 = vld [vmem:[#allocation2 + $0x74] sm:$0xf]
        %v688 = vld [vmem:[#allocation2 + $0x78] sm:$0xff]
        %v689 = vld [vmem:[#allocation2 + $0x80] sm:$0xf]
        %v690 = vld [vmem:[#allocation2 + $0x84] sm:$0xff]
        %v691 = vld [vmem:[#allocation2 + $0x8c] sm:$0xf]
        %v692 = vld [vmem:[#allocation2 + $0x90] sm:$0xff]
        %v693 = vld [vmem:[#allocation2 + $0x98] sm:$0xf]
        %v694 = vld [vmem:[#allocation2 + $0x9c] sm:$0xff]
        %v695 = vld [vmem:[#allocation2 + $0xa4] sm:$0xf]
        %v696 = vld [vmem:[#allocation2 + $0xa8] sm:$0xff]
        %v697 = vld [vmem:[#allocation2 + $0xb0] sm:$0xf]
        %v698 = vld [vmem:[#allocation2 + $0xb4] sm:$0xff]
        %v699 = vld [vmem:[#allocation2 + $0xbc] sm:$0xf]
        %v700 = vld [vmem:[#allocation2 + $0xc0] sm:$0xff]
        %v701 = vld [vmem:[#allocation2 + $0xc8] sm:$0xf]
        %v702 = vld [vmem:[#allocation2 + $0xcc] sm:$0xff]
        %v703 = vld [vmem:[#allocation2 + $0xd4] sm:$0xf]
        %v704 = vld [vmem:[#allocation2 + $0xd8] sm:$0xff]
        %v705 = vld [vmem:[#allocation2 + $0xe0] sm:$0xf]
        %v706 = vld [vmem:[#allocation2 + $0xe4] sm:$0xff]
        %v707 = vld [vmem:[#allocation2 + $0xec] sm:$0xf]
        %v708 = vld [vmem:[#allocation2 + $0xf0] sm:$0xff]
        %v709 = vld [vmem:[#allocation2 + $0xf8] sm:$0xf]
        %v710 = vld [vmem:[#allocation2 + $0xfc] sm:$0xff]
        %v711 = vld [vmem:[#allocation2 + $0x104] sm:$0xf]
        %v712 = vld [vmem:[#allocation2 + $0x108] sm:$0xff]
        %v713 = vld [vmem:[#allocation2 + $0x110] sm:$0xf]
        %v714 = vld [vmem:[#allocation2 + $0x114] sm:$0xff]
        %v715 = vld [vmem:[#allocation2 + $0x11c] sm:$0xf]
        %v716 = vld [vmem:[#allocation2 + $0x120] sm:$0xff]
        %v717 = vld [vmem:[#allocation2 + $0x128] sm:$0xf]
        %v718 = vld [vmem:[#allocation2 + $0x12c] sm:$0xff]
        %v719 = vld [vmem:[#allocation2 + $0x134] sm:$0xf]
        %v720 = vld [vmem:[#allocation2 + $0x138] sm:$0xff]
        %v721 = vld [vmem:[#allocation2 + $0x140] sm:$0xf]
        %v722 = vld [vmem:[#allocation2 + $0x144] sm:$0xff]
        %v723 = vld [vmem:[#allocation2 + $0x14c] sm:$0xf]
        %v724 = vld [vmem:[#allocation2 + $0x150] sm:$0xff]
        %v725 = vld [vmem:[#allocation2 + $0x158] sm:$0xf]
        %v726 = vld [vmem:[#allocation2 + $0x15c] sm:$0xff]
        %v727 = vld [vmem:[#allocation2 + $0x164] sm:$0xf]
        %v728 = vld [vmem:[#allocation2 + $0x168] sm:$0xff]
        %v729 = vld [vmem:[#allocation2 + $0x170] sm:$0xf]
        %v730 = vld [vmem:[#allocation2 + $0x174] sm:$0xff]
        %v731 = vld [vmem:[#allocation2 + $0x17c] sm:$0xf]
        %v732 = vld [vmem:[#allocation6] sm:$0xf]
        %v733 = vld [vmem:[#allocation6 + $0x4] sm:$0xf]
        %v734 = vld [vmem:[#allocation6 + $0x8] sm:$0xf]
        %v735 = vld [vmem:[#allocation6 + $0xc] sm:$0xf]
        %v736 = vld [vmem:[#allocation6 + $0x10] sm:$0xf]
        %v737 = vld [vmem:[#allocation6 + $0x14] sm:$0xf]
        %v738 = vld [vmem:[#allocation6 + $0x18] sm:$0xf]
        %v739 = vld [vmem:[#allocation6 + $0x1c] sm:$0xf]
        %v740 = vld [vmem:[#allocation6 + $0x20] sm:$0xf]
        %v741 = vld [vmem:[#allocation6 + $0x24] sm:$0xf]
        %v742 = vld [vmem:[#allocation6 + $0x28] sm:$0xf]
        %v743 = vld [vmem:[#allocation6 + $0x2c] sm:$0xf]
        %v744 = vld [vmem:[#allocation6 + $0x30] sm:$0xf]
        %v745 = vld [vmem:[#allocation6 + $0x34] sm:$0xf]
        %v746 = vld [vmem:[#allocation6 + $0x38] sm:$0xf]
        %v747 = vld [vmem:[#allocation6 + $0x3c] sm:$0xf]
        %v748 = vld [vmem:[#allocation6 + $0x40] sm:$0xf]
        %v749 = vld [vmem:[#allocation6 + $0x44] sm:$0xf]
        %v750 = vld [vmem:[#allocation6 + $0x48] sm:$0xf]
        %v751 = vld [vmem:[#allocation6 + $0x4c] sm:$0xf]
        %v752 = vld [vmem:[#allocation6 + $0x50] sm:$0xf]
        %v753 = vld [vmem:[#allocation6 + $0x54] sm:$0xf]
        %v754 = vld [vmem:[#allocation6 + $0x58] sm:$0xf]
        %v755 = vld [vmem:[#allocation6 + $0x5c] sm:$0xf]
        %v756 = vld [vmem:[#allocation6 + $0x60] sm:$0xf]
        %v757 = vld [vmem:[#allocation6 + $0x64] sm:$0xf]
        %v758 = vld [vmem:[#allocation6 + $0x68] sm:$0xf]
        %v759 = vld [vmem:[#allocation6 + $0x6c] sm:$0xf]
        %v760 = vld [vmem:[#allocation6 + $0x70] sm:$0xf]
        %v761 = vld [vmem:[#allocation6 + $0x74] sm:$0xf]
        %v762 = vld [vmem:[#allocation6 + $0x78] sm:$0xf]
        %v763 = vld [vmem:[#allocation6 + $0x7c] sm:$0xf]
        %v764 = vld [vmem:[#allocation6 + $0x80] sm:$0xf]
        %v765 = vld [vmem:[#allocation6 + $0x84] sm:$0xf]
        %v766 = vld [vmem:[#allocation6 + $0x88] sm:$0xf]
        %v767 = vld [vmem:[#allocation6 + $0x8c] sm:$0xf]
        %v768 = vld [vmem:[#allocation6 + $0x90] sm:$0xf]
        %v769 = vld [vmem:[#allocation6 + $0x94] sm:$0xf]
        %v770 = vld [vmem:[#allocation6 + $0x98] sm:$0xf]
        %v771 = vld [vmem:[#allocation6 + $0x9c] sm:$0xf]
        %v772 = vld [vmem:[#allocation6 + $0xa0] sm:$0xf]
        %v773 = vld [vmem:[#allocation6 + $0xa4] sm:$0xf]
        %v774 = vld [vmem:[#allocation6 + $0xa8] sm:$0xf]
        %v775 = vld [vmem:[#allocation6 + $0xac] sm:$0xf]
        %v776 = vld [vmem:[#allocation6 + $0xb0] sm:$0xf]
        %v777 = vld [vmem:[#allocation6 + $0xb4] sm:$0xf]
        %v778 = vld [vmem:[#allocation6 + $0xb8] sm:$0xf]
        %v779 = vld [vmem:[#allocation6 + $0xbc] sm:$0xf]
        %v844 = vunpack.c.l.b16 %v668
        %v845 = vunpack.c.h.b16 %v668
        %v846 = vunpack.c.l.b16 %v669
        %v847 = vunpack.c.l.b16 %v670
        %v848 = vunpack.c.h.b16 %v670
        %v849 = vunpack.c.l.b16 %v671
        %v850 = vunpack.c.l.b16 %v672
        %v851 = vunpack.c.h.b16 %v672
        %v852 = vunpack.c.l.b16 %v673
        %v853 = vunpack.c.l.b16 %v674
        %v854 = vunpack.c.h.b16 %v674
        %v855 = vunpack.c.l.b16 %v675
        %v856 = vunpack.c.l.b16 %v676
        %v857 = vunpack.c.h.b16 %v676
        %v858 = vunpack.c.l.b16 %v677
        %v859 = vunpack.c.l.b16 %v678
        %v860 = vunpack.c.h.b16 %v678
        %v861 = vunpack.c.l.b16 %v679
        %v862 = vunpack.c.l.b16 %v680
        %v863 = vunpack.c.h.b16 %v680
        %v864 = vunpack.c.l.b16 %v681
        %v865 = vunpack.c.l.b16 %v682
        %v866 = vunpack.c.h.b16 %v682
        %v867 = vunpack.c.l.b16 %v683
        %v868 = vunpack.c.l.b16 %v684
        %v869 = vunpack.c.h.b16 %v684
        %v870 = vunpack.c.l.b16 %v685
        %v871 = vunpack.c.l.b16 %v686
        %v872 = vunpack.c.h.b16 %v686
        %v873 = vunpack.c.l.b16 %v687
        %v874 = vunpack.c.l.b16 %v688
        %v875 = vunpack.c.h.b16 %v688
        %v876 = vunpack.c.l.b16 %v689
        %v877 = vunpack.c.l.b16 %v690
        %v878 = vunpack.c.h.b16 %v690
        %v879 = vunpack.c.l.b16 %v691
        %v880 = vunpack.c.l.b16 %v692
        %v881 = vunpack.c.h.b16 %v692
        %v882 = vunpack.c.l.b16 %v693
        %v883 = vunpack.c.l.b16 %v694
        %v884 = vunpack.c.h.b16 %v694
        %v885 = vunpack.c.l.b16 %v695
        %v886 = vunpack.c.l.b16 %v696
        %v887 = vunpack.c.h.b16 %v696
        %v888 = vunpack.c.l.b16 %v697
        %v889 = vunpack.c.l.b16 %v698
        %v890 = vunpack.c.h.b16 %v698
        %v891 = vunpack.c.l.b16 %v699
        %v892 = vunpack.c.l.b16 %v700
        %v893 = vunpack.c.h.b16 %v700
        %v894 = vunpack.c.l.b16 %v701
        %v895 = vunpack.c.l.b16 %v702
        %v896 = vunpack.c.h.b16 %v702
        %v897 = vunpack.c.l.b16 %v703
        %v898 = vunpack.c.l.b16 %v704
        %v899 = vunpack.c.h.b16 %v704
        %v900 = vunpack.c.l.b16 %v705
        %v901 = vunpack.c.l.b16 %v706
        %v902 = vunpack.c.h.b16 %v706
        %v903 = vunpack.c.l.b16 %v707
        %v904 = vunpack.c.l.b16 %v708
        %v905 = vunpack.c.h.b16 %v708
        %v906 = vunpack.c.l.b16 %v709
        %v907 = vunpack.c.l.b16 %v710
        %v908 = vunpack.c.h.b16 %v710
        %v909 = vunpack.c.l.b16 %v711
        %v910 = vunpack.c.l.b16 %v712
        %v911 = vunpack.c.h.b16 %v712
        %v912 = vunpack.c.l.b16 %v713
        %v913 = vunpack.c.l.b16 %v714
        %v914 = vunpack.c.h.b16 %v714
        %v915 = vunpack.c.l.b16 %v715
        %v916 = vunpack.c.l.b16 %v716
        %v917 = vunpack.c.h.b16 %v716
        %v918 = vunpack.c.l.b16 %v717
        %v919 = vunpack.c.l.b16 %v718
        %v920 = vunpack.c.h.b16 %v718
        %v921 = vunpack.c.l.b16 %v719
        %v922 = vunpack.c.l.b16 %v720
        %v923 = vunpack.c.h.b16 %v720
        %v924 = vunpack.c.l.b16 %v721
        %v925 = vunpack.c.l.b16 %v722
        %v926 = vunpack.c.h.b16 %v722
        %v927 = vunpack.c.l.b16 %v723
        %v928 = vunpack.c.l.b16 %v724
        %v929 = vunpack.c.h.b16 %v724
        %v930 = vunpack.c.l.b16 %v725
        %v931 = vunpack.c.l.b16 %v726
        %v932 = vunpack.c.h.b16 %v726
        %v933 = vunpack.c.l.b16 %v727
        %v934 = vunpack.c.l.b16 %v728
        %v935 = vunpack.c.h.b16 %v728
        %v936 = vunpack.c.l.b16 %v729
        %v937 = vunpack.c.l.b16 %v730
        %v938 = vunpack.c.h.b16 %v730
        %v939 = vunpack.c.l.b16 %v731
        %v940 = vpack.c.b16 %v847, %v844
        %v941 = vpack.c.b16 %v848, %v845
        %v942 = vpack.c.b16 %v849, %v846
        %v943 = vpack.c.b16 %v853, %v850
        %v944 = vpack.c.b16 %v854, %v851
        %v945 = vpack.c.b16 %v855, %v852
        %v946 = vpack.c.b16 %v859, %v856
        %v947 = vpack.c.b16 %v860, %v857
        %v948 = vpack.c.b16 %v861, %v858
        %v949 = vpack.c.b16 %v865, %v862
        %v950 = vpack.c.b16 %v866, %v863
        %v951 = vpack.c.b16 %v867, %v864
        %v952 = vpack.c.b16 %v871, %v868
        %v953 = vpack.c.b16 %v872, %v869
        %v954 = vpack.c.b16 %v873, %v870
        %v955 = vpack.c.b16 %v877, %v874
        %v956 = vpack.c.b16 %v878, %v875
        %v957 = vpack.c.b16 %v879, %v876
        %v958 = vpack.c.b16 %v883, %v880
        %v959 = vpack.c.b16 %v884, %v881
        %v960 = vpack.c.b16 %v885, %v882
        %v961 = vpack.c.b16 %v889, %v886
        %v962 = vpack.c.b16 %v890, %v887
        %v963 = vpack.c.b16 %v891, %v888
        %v964 = vpack.c.b16 %v895, %v892
        %v965 = vpack.c.b16 %v896, %v893
        %v966 = vpack.c.b16 %v897, %v894
        %v967 = vpack.c.b16 %v901, %v898
        %v968 = vpack.c.b16 %v902, %v899
        %v969 = vpack.c.b16 %v903, %v900
        %v970 = vpack.c.b16 %v907, %v904
        %v971 = vpack.c.b16 %v908, %v905
        %v972 = vpack.c.b16 %v909, %v906
        %v973 = vpack.c.b16 %v913, %v910
        %v974 = vpack.c.b16 %v914, %v911
        %v975 = vpack.c.b16 %v915, %v912
        %v976 = vpack.c.b16 %v919, %v916
        %v977 = vpack.c.b16 %v920, %v917
        %v978 = vpack.c.b16 %v921, %v918
        %v979 = vpack.c.b16 %v925, %v922
        %v980 = vpack.c.b16 %v926, %v923
        %v981 = vpack.c.b16 %v927, %v924
        %v982 = vpack.c.b16 %v931, %v928
        %v983 = vpack.c.b16 %v932, %v929
        %v984 = vpack.c.b16 %v933, %v930
        %v985 = vpack.c.b16 %v937, %v934
        %v986 = vpack.c.b16 %v938, %v935
        %v987 = vpack.c.b16 %v939, %v936
        %v1084 = vunpack.c.l.b16 %v732
        %v1085 = vunpack.c.l.b16 %v733
        %v1086 = vunpack.c.l.b16 %v734
        %v1087 = vunpack.c.l.b16 %v735
        %v1088 = vunpack.c.l.b16 %v736
        %v1089 = vunpack.c.l.b16 %v737
        %v1090 = vunpack.c.l.b16 %v738
        %v1091 = vunpack.c.l.b16 %v739
        %v1092 = vunpack.c.l.b16 %v740
        %v1093 = vunpack.c.l.b16 %v741
        %v1094 = vunpack.c.l.b16 %v742
        %v1095 = vunpack.c.l.b16 %v743
        %v1096 = vunpack.c.l.b16 %v744
        %v1097 = vunpack.c.l.b16 %v745
        %v1098 = vunpack.c.l.b16 %v746
        %v1099 = vunpack.c.l.b16 %v747
        %v1100 = vunpack.c.l.b16 %v748
        %v1101 = vunpack.c.l.b16 %v749
        %v1102 = vunpack.c.l.b16 %v750
        %v1103 = vunpack.c.l.b16 %v751
        %v1104 = vunpack.c.l.b16 %v752
        %v1105 = vunpack.c.l.b16 %v753
        %v1106 = vunpack.c.l.b16 %v754
        %v1107 = vunpack.c.l.b16 %v755
        %v1108 = vunpack.c.l.b16 %v756
        %v1109 = vunpack.c.l.b16 %v757
        %v1110 = vunpack.c.l.b16 %v758
        %v1111 = vunpack.c.l.b16 %v759
        %v1112 = vunpack.c.l.b16 %v760
        %v1113 = vunpack.c.l.b16 %v761
        %v1114 = vunpack.c.l.b16 %v762
        %v1115 = vunpack.c.l.b16 %v763
        %v1116 = vunpack.c.l.b16 %v764
        %v1117 = vunpack.c.l.b16 %v765
        %v1118 = vunpack.c.l.b16 %v766
        %v1119 = vunpack.c.l.b16 %v767
        %v1120 = vunpack.c.l.b16 %v768
        %v1121 = vunpack.c.l.b16 %v769
        %v1122 = vunpack.c.l.b16 %v770
        %v1123 = vunpack.c.l.b16 %v771
        %v1124 = vunpack.c.l.b16 %v772
        %v1125 = vunpack.c.l.b16 %v773
        %v1126 = vunpack.c.l.b16 %v774
        %v1127 = vunpack.c.l.b16 %v775
        %v1128 = vunpack.c.l.b16 %v776
        %v1129 = vunpack.c.l.b16 %v777
        %v1130 = vunpack.c.l.b16 %v778
        %v1131 = vunpack.c.l.b16 %v779
        %v1132 = vpack.c.b16 %v1085, %v1084
        %v1133 = vpack.c.b16 %v1087, %v1086
        %v1134 = vpack.c.b16 %v1089, %v1088
        %v1135 = vpack.c.b16 %v1091, %v1090
        %v1136 = vpack.c.b16 %v1093, %v1092
        %v1137 = vpack.c.b16 %v1095, %v1094
        %v1138 = vpack.c.b16 %v1097, %v1096
        %v1139 = vpack.c.b16 %v1099, %v1098
        %v1140 = vpack.c.b16 %v1101, %v1100
        %v1141 = vpack.c.b16 %v1103, %v1102
        %v1142 = vpack.c.b16 %v1105, %v1104
        %v1143 = vpack.c.b16 %v1107, %v1106
        %v1144 = vpack.c.b16 %v1109, %v1108
        %v1145 = vpack.c.b16 %v1111, %v1110
        %v1146 = vpack.c.b16 %v1113, %v1112
        %v1147 = vpack.c.b16 %v1115, %v1114
        %v1148 = vpack.c.b16 %v1117, %v1116
        %v1149 = vpack.c.b16 %v1119, %v1118
        %v1150 = vpack.c.b16 %v1121, %v1120
        %v1151 = vpack.c.b16 %v1123, %v1122
        %v1152 = vpack.c.b16 %v1125, %v1124
        %v1153 = vpack.c.b16 %v1127, %v1126
        %v1154 = vpack.c.b16 %v1129, %v1128
        %v1155 = vpack.c.b16 %v1131, %v1130
        %1180 = vmatprep.subr.bf16.mxu0 0
        %1181 = vmatpush1.bf16.msra.mxu0 %v1139
        %1182 = vmatprep.subr.bf16.mxu0 0
        %1183 = vmatpush1.bf16.msra.mxu0 %v1138
        %1184 = vmatprep.subr.bf16.mxu0 0
        %1185 = vmatpush1.bf16.msra.mxu0 %v1137
        %1186 = vmatprep.subr.bf16.mxu0 0
        %1187 = vmatpush1.bf16.msra.mxu0 %v1136
        %1188 = vmatprep.subr.bf16.mxu0 0
        %1189 = vmatpush1.bf16.msra.mxu0 %v1135
        %1190 = vmatprep.subr.bf16.mxu0 0
        %1191 = vmatpush1.bf16.msra.mxu0 %v1134
        %1192 = vmatprep.subr.bf16.mxu0 0
        %1193 = vmatpush1.bf16.msra.mxu0 %v1133
        %1194 = vmatprep.subr.bf16.mxu0 0
        %1195 = vmatpush1.bf16.msra.mxu0 %v1132
        %1196 = vmatprep.subr.bf16.mxu0 0
        %1197 = vmatpush2.bf16.msra.mxu0 %v1147
        %1198 = vmatprep.subr.bf16.mxu0 0
        %1199 = vmatpush2.bf16.msra.mxu0 %v1146
        %1200 = vmatprep.subr.bf16.mxu0 0
        %1201 = vmatpush2.bf16.msra.mxu0 %v1145
        %1202 = vmatprep.subr.bf16.mxu0 0
        %1203 = vmatpush2.bf16.msra.mxu0 %v1144
        %1204 = vmatprep.subr.bf16.mxu0 0
        %1205 = vmatpush2.bf16.msra.mxu0 %v1143
        %1206 = vmatprep.subr.bf16.mxu0 0
        %1207 = vmatpush2.bf16.msra.mxu0 %v1142
        %1208 = vmatprep.subr.bf16.mxu0 0
        %1209 = vmatpush2.bf16.msra.mxu0 %v1141
        %1210 = vmatprep.subr.bf16.mxu0 0
        %1211 = vmatpush2.bf16.msra.mxu0 %v1140
        %1212 = vmatprep.mubr.bf16.mxu0 %v941
        %1213 = vmatmul.mubr.bf16.gmra.mxu0 %v940
        %v1214 = vpop.f32.mrf.mxu0
        %v1215 = vadd.f32 0.0, %v1214
        %v1216 = vpop.f32.mrf.mxu0
        %v1217 = vpop.f32.mrf.mxu0
        %v1218 = vadd.f32 0.0, %v1217
        %v1219 = vpop.f32.mrf.mxu0
        %1220 = vmatprep.mubr.bf16.mxu0 %v944
        %1221 = vmatmul.mubr.bf16.gmra.mxu0 %v943
        %v1222 = vpop.f32.mrf.mxu0
        %v1223 = vadd.f32 0.0, %v1222
        %v1224 = vpop.f32.mrf.mxu0
        %v1225 = vpop.f32.mrf.mxu0
        %v1226 = vadd.f32 0.0, %v1225
        %v1227 = vpop.f32.mrf.mxu0
        %1228 = vmatprep.mubr.bf16.mxu0 %v947
        %1229 = vmatmul.mubr.bf16.gmra.mxu0 %v946
        %v1230 = vpop.f32.mrf.mxu0
        %v1231 = vadd.f32 0.0, %v1230
        %v1232 = vpop.f32.mrf.mxu0
        %v1233 = vpop.f32.mrf.mxu0
        %v1234 = vadd.f32 0.0, %v1233
        %v1235 = vpop.f32.mrf.mxu0
        %1236 = vmatprep.mubr.bf16.mxu0 %v950
        %1237 = vmatmul.mubr.bf16.gmra.mxu0 %v949
        %v1238 = vpop.f32.mrf.mxu0
        %v1239 = vadd.f32 0.0, %v1238
        %v1240 = vpop.f32.mrf.mxu0
        %v1241 = vpop.f32.mrf.mxu0
        %v1242 = vadd.f32 0.0, %v1241
        %v1243 = vpop.f32.mrf.mxu0
        %1244 = vmatprep.mubr.bf16.mxu0 %v953
        %1245 = vmatmul.mubr.bf16.gmra.mxu0 %v952
        %v1246 = vpop.f32.mrf.mxu0
        %v1247 = vadd.f32 0.0, %v1246
        %v1248 = vpop.f32.mrf.mxu0
        %v1249 = vpop.f32.mrf.mxu0
        %v1250 = vadd.f32 0.0, %v1249
        %v1251 = vpop.f32.mrf.mxu0
        %1252 = vmatprep.mubr.bf16.mxu0 %v956
        %1253 = vmatmul.mubr.bf16.gmra.mxu0 %v955
        %v1254 = vpop.f32.mrf.mxu0
        %v1255 = vadd.f32 0.0, %v1254
        %v1256 = vpop.f32.mrf.mxu0
        %v1257 = vpop.f32.mrf.mxu0
        %v1258 = vadd.f32 0.0, %v1257
        %v1259 = vpop.f32.mrf.mxu0
        %1260 = vmatprep.mubr.bf16.mxu0 %v959
        %1261 = vmatmul.mubr.bf16.gmra.mxu0 %v958
        %v1262 = vpop.f32.mrf.mxu0
        %v1263 = vadd.f32 0.0, %v1262
        %v1264 = vpop.f32.mrf.mxu0
        %v1265 = vpop.f32.mrf.mxu0
        %v1266 = vadd.f32 0.0, %v1265
        %v1267 = vpop.f32.mrf.mxu0
        %1268 = vmatprep.mubr.bf16.mxu0 %v962
        %1269 = vmatmul.mubr.bf16.gmra.mxu0 %v961
        %v1270 = vpop.f32.mrf.mxu0
        %v1271 = vadd.f32 0.0, %v1270
        %v1272 = vpop.f32.mrf.mxu0
        %v1273 = vpop.f32.mrf.mxu0
        %v1274 = vadd.f32 0.0, %v1273
        %v1275 = vpop.f32.mrf.mxu0
        %1276 = vmatprep.mubr.bf16.mxu0 %v965
        %1277 = vmatmul.mubr.bf16.gmra.mxu0 %v964
        %v1278 = vpop.f32.mrf.mxu0
        %v1279 = vadd.f32 0.0, %v1278
        %v1280 = vpop.f32.mrf.mxu0
        %v1281 = vpop.f32.mrf.mxu0
        %v1282 = vadd.f32 0.0, %v1281
        %v1283 = vpop.f32.mrf.mxu0
        %1284 = vmatprep.mubr.bf16.mxu0 %v968
        %1285 = vmatmul.mubr.bf16.gmra.mxu0 %v967
        %v1286 = vpop.f32.mrf.mxu0
        %v1287 = vadd.f32 0.0, %v1286
        %v1288 = vpop.f32.mrf.mxu0
        %v1289 = vpop.f32.mrf.mxu0
        %v1290 = vadd.f32 0.0, %v1289
        %v1291 = vpop.f32.mrf.mxu0
        %1292 = vmatprep.mubr.bf16.mxu0 %v971
        %1293 = vmatmul.mubr.bf16.gmra.mxu0 %v970
        %v1294 = vpop.f32.mrf.mxu0
        %v1295 = vadd.f32 0.0, %v1294
        %v1296 = vpop.f32.mrf.mxu0
        %v1297 = vpop.f32.mrf.mxu0
        %v1298 = vadd.f32 0.0, %v1297
        %v1299 = vpop.f32.mrf.mxu0
        %1300 = vmatprep.mubr.bf16.mxu0 %v974
        %1301 = vmatmul.mubr.bf16.gmra.mxu0 %v973
        %v1302 = vpop.f32.mrf.mxu0
        %v1303 = vadd.f32 0.0, %v1302
        %v1304 = vpop.f32.mrf.mxu0
        %v1305 = vpop.f32.mrf.mxu0
        %v1306 = vadd.f32 0.0, %v1305
        %v1307 = vpop.f32.mrf.mxu0
        %1308 = vmatprep.mubr.bf16.mxu0 %v977
        %1309 = vmatmul.mubr.bf16.gmra.mxu0 %v976
        %v1310 = vpop.f32.mrf.mxu0
        %v1311 = vadd.f32 0.0, %v1310
        %v1312 = vpop.f32.mrf.mxu0
        %v1313 = vpop.f32.mrf.mxu0
        %v1314 = vadd.f32 0.0, %v1313
        %v1315 = vpop.f32.mrf.mxu0
        %1316 = vmatprep.mubr.bf16.mxu0 %v980
        %1317 = vmatmul.mubr.bf16.gmra.mxu0 %v979
        %v1318 = vpop.f32.mrf.mxu0
        %v1319 = vadd.f32 0.0, %v1318
        %v1320 = vpop.f32.mrf.mxu0
        %v1321 = vpop.f32.mrf.mxu0
        %v1322 = vadd.f32 0.0, %v1321
        %v1323 = vpop.f32.mrf.mxu0
        %1324 = vmatprep.mubr.bf16.mxu0 %v983
        %1325 = vmatmul.mubr.bf16.gmra.mxu0 %v982
        %v1326 = vpop.f32.mrf.mxu0
        %v1327 = vadd.f32 0.0, %v1326
        %v1328 = vpop.f32.mrf.mxu0
        %v1329 = vpop.f32.mrf.mxu0
        %v1330 = vadd.f32 0.0, %v1329
        %v1331 = vpop.f32.mrf.mxu0
        %1332 = vmatprep.mubr.bf16.mxu0 %v986
        %1333 = vmatmul.mubr.bf16.gmra.mxu0 %v985
        %v1334 = vpop.f32.mrf.mxu0
        %v1335 = vadd.f32 0.0, %v1334
        %v1336 = vpop.f32.mrf.mxu0
        %v1337 = vpop.f32.mrf.mxu0
        %v1338 = vadd.f32 0.0, %v1337
        %v1339 = vpop.f32.mrf.mxu0
        %1340 = vdwg.mxu0
        %1341 = vmatprep.subr.bf16.mxu0 0
        %1342 = vmatpush1.bf16.msra.mxu0 %v1155
        %1343 = vmatprep.subr.bf16.mxu0 0
        %1344 = vmatpush1.bf16.msra.mxu0 %v1154
        %1345 = vmatprep.subr.bf16.mxu0 0
        %1346 = vmatpush1.bf16.msra.mxu0 %v1153
        %1347 = vmatprep.subr.bf16.mxu0 0
        %1348 = vmatpush1.bf16.msra.mxu0 %v1152
        %1349 = vmatprep.subr.bf16.mxu0 0
        %1350 = vmatpush1.bf16.msra.mxu0 %v1151
        %1351 = vmatprep.subr.bf16.mxu0 0
        %1352 = vmatpush1.bf16.msra.mxu0 %v1150
        %1353 = vmatprep.subr.bf16.mxu0 0
        %1354 = vmatpush1.bf16.msra.mxu0 %v1149
        %1355 = vmatprep.subr.bf16.mxu0 0
        %1356 = vmatpush1.bf16.msra.mxu0 %v1148
        %1357 = vmatprep.subr.bf16.mxu0 0
        %1358 = vmatpush2.bf16.msra.mxu0 0
        %1359 = vmatprep.subr.bf16.mxu0 0
        %1360 = vmatpush2.bf16.msra.mxu0 0
        %1361 = vmatprep.subr.bf16.mxu0 0
        %1362 = vmatpush2.bf16.msra.mxu0 0
        %1363 = vmatprep.subr.bf16.mxu0 0
        %1364 = vmatpush2.bf16.msra.mxu0 0
        %1365 = vmatprep.subr.bf16.mxu0 0
        %1366 = vmatpush2.bf16.msra.mxu0 0
        %1367 = vmatprep.subr.bf16.mxu0 0
        %1368 = vmatpush2.bf16.msra.mxu0 0
        %1369 = vmatprep.subr.bf16.mxu0 0
        %1370 = vmatpush2.bf16.msra.mxu0 0
        %1371 = vmatprep.subr.bf16.mxu0 0
        %1372 = vmatpush2.bf16.msra.mxu0 0
        %1373 = vmatprep.mubr.bf16.mxu0 0
        %1374 = vmatmul.mubr.bf16.gmra.mxu0 %v942
        %v1375 = vpop.f32.mrf.mxu0
        %v1376 = vadd.f32 %v1215, %v1375
        %v1377 = vpop.f32.mrf.mxu0
        %v1378 = vpop.f32.mrf.mxu0
        %v1379 = vadd.f32 %v1218, %v1378
        %v1380 = vpop.f32.mrf.mxu0
        %1381 = vmatprep.mubr.bf16.mxu0 0
        %1382 = vmatmul.mubr.bf16.gmra.mxu0 %v945
        %v1383 = vpop.f32.mrf.mxu0
        %v1384 = vadd.f32 %v1223, %v1383
        %v1385 = vpop.f32.mrf.mxu0
        %v1386 = vpop.f32.mrf.mxu0
        %v1387 = vadd.f32 %v1226, %v1386
        %v1388 = vpop.f32.mrf.mxu0
        %1389 = vmatprep.mubr.bf16.mxu0 0
        %1390 = vmatmul.mubr.bf16.gmra.mxu0 %v948
        %v1391 = vpop.f32.mrf.mxu0
        %v1392 = vadd.f32 %v1231, %v1391
        %v1393 = vpop.f32.mrf.mxu0
        %v1394 = vpop.f32.mrf.mxu0
        %v1395 = vadd.f32 %v1234, %v1394
        %v1396 = vpop.f32.mrf.mxu0
        %1397 = vmatprep.mubr.bf16.mxu0 0
        %1398 = vmatmul.mubr.bf16.gmra.mxu0 %v951
        %v1399 = vpop.f32.mrf.mxu0
        %v1400 = vadd.f32 %v1239, %v1399
        %v1401 = vpop.f32.mrf.mxu0
        %v1402 = vpop.f32.mrf.mxu0
        %v1403 = vadd.f32 %v1242, %v1402
        %v1404 = vpop.f32.mrf.mxu0
        %1405 = vmatprep.mubr.bf16.mxu0 0
        %1406 = vmatmul.mubr.bf16.gmra.mxu0 %v954
        %v1407 = vpop.f32.mrf.mxu0
        %v1408 = vadd.f32 %v1247, %v1407
        %v1409 = vpop.f32.mrf.mxu0
        %v1410 = vpop.f32.mrf.mxu0
        %v1411 = vadd.f32 %v1250, %v1410
        %v1412 = vpop.f32.mrf.mxu0
        %1413 = vmatprep.mubr.bf16.mxu0 0
        %1414 = vmatmul.mubr.bf16.gmra.mxu0 %v957
        %v1415 = vpop.f32.mrf.mxu0
        %v1416 = vadd.f32 %v1255, %v1415
        %v1417 = vpop.f32.mrf.mxu0
        %v1418 = vpop.f32.mrf.mxu0
        %v1419 = vadd.f32 %v1258, %v1418
        %v1420 = vpop.f32.mrf.mxu0
        %1421 = vmatprep.mubr.bf16.mxu0 0
        %1422 = vmatmul.mubr.bf16.gmra.mxu0 %v960
        %v1423 = vpop.f32.mrf.mxu0
        %v1424 = vadd.f32 %v1263, %v1423
        %v1425 = vpop.f32.mrf.mxu0
        %v1426 = vpop.f32.mrf.mxu0
        %v1427 = vadd.f32 %v1266, %v1426
        %v1428 = vpop.f32.mrf.mxu0
        %1429 = vmatprep.mubr.bf16.mxu0 0
        %1430 = vmatmul.mubr.bf16.gmra.mxu0 %v963
        %v1431 = vpop.f32.mrf.mxu0
        %v1432 = vadd.f32 %v1271, %v1431
        %v1433 = vpop.f32.mrf.mxu0
        %v1434 = vpop.f32.mrf.mxu0
        %v1435 = vadd.f32 %v1274, %v1434
        %v1436 = vpop.f32.mrf.mxu0
        %1437 = vmatprep.mubr.bf16.mxu0 0
        %1438 = vmatmul.mubr.bf16.gmra.mxu0 %v966
        %v1439 = vpop.f32.mrf.mxu0
        %v1440 = vadd.f32 %v1279, %v1439
        %v1441 = vpop.f32.mrf.mxu0
        %v1442 = vpop.f32.mrf.mxu0
        %v1443 = vadd.f32 %v1282, %v1442
        %v1444 = vpop.f32.mrf.mxu0
        %1445 = vmatprep.mubr.bf16.mxu0 0
        %1446 = vmatmul.mubr.bf16.gmra.mxu0 %v969
        %v1447 = vpop.f32.mrf.mxu0
        %v1448 = vadd.f32 %v1287, %v1447
        %v1449 = vpop.f32.mrf.mxu0
        %v1450 = vpop.f32.mrf.mxu0
        %v1451 = vadd.f32 %v1290, %v1450
        %v1452 = vpop.f32.mrf.mxu0
        %1453 = vmatprep.mubr.bf16.mxu0 0
        %1454 = vmatmul.mubr.bf16.gmra.mxu0 %v972
        %v1455 = vpop.f32.mrf.mxu0
        %v1456 = vadd.f32 %v1295, %v1455
        %v1457 = vpop.f32.mrf.mxu0
        %v1458 = vpop.f32.mrf.mxu0
        %v1459 = vadd.f32 %v1298, %v1458
        %v1460 = vpop.f32.mrf.mxu0
        %1461 = vmatprep.mubr.bf16.mxu0 0
        %1462 = vmatmul.mubr.bf16.gmra.mxu0 %v975
        %v1463 = vpop.f32.mrf.mxu0
        %v1464 = vadd.f32 %v1303, %v1463
        %v1465 = vpop.f32.mrf.mxu0
        %v1466 = vpop.f32.mrf.mxu0
        %v1467 = vadd.f32 %v1306, %v1466
        %v1468 = vpop.f32.mrf.mxu0
        %1469 = vmatprep.mubr.bf16.mxu0 0
        %1470 = vmatmul.mubr.bf16.gmra.mxu0 %v978
        %v1471 = vpop.f32.mrf.mxu0
        %v1472 = vadd.f32 %v1311, %v1471
        %v1473 = vpop.f32.mrf.mxu0
        %v1474 = vpop.f32.mrf.mxu0
        %v1475 = vadd.f32 %v1314, %v1474
        %v1476 = vpop.f32.mrf.mxu0
        %1477 = vmatprep.mubr.bf16.mxu0 0
        %1478 = vmatmul.mubr.bf16.gmra.mxu0 %v981
        %v1479 = vpop.f32.mrf.mxu0
        %v1480 = vadd.f32 %v1319, %v1479
        %v1481 = vpop.f32.mrf.mxu0
        %v1482 = vpop.f32.mrf.mxu0
        %v1483 = vadd.f32 %v1322, %v1482
        %v1484 = vpop.f32.mrf.mxu0
        %1485 = vmatprep.mubr.bf16.mxu0 0
        %1486 = vmatmul.mubr.bf16.gmra.mxu0 %v984
        %v1487 = vpop.f32.mrf.mxu0
        %v1488 = vadd.f32 %v1327, %v1487
        %v1489 = vpop.f32.mrf.mxu0
        %v1490 = vpop.f32.mrf.mxu0
        %v1491 = vadd.f32 %v1330, %v1490
        %v1492 = vpop.f32.mrf.mxu0
        %1493 = vmatprep.mubr.bf16.mxu0 0
        %1494 = vmatmul.mubr.bf16.gmra.mxu0 %v987
        %v1495 = vpop.f32.mrf.mxu0
        %v1496 = vadd.f32 %v1335, %v1495
        %v1497 = vpop.f32.mrf.mxu0
        %v1498 = vpop.f32.mrf.mxu0
        %v1499 = vadd.f32 %v1338, %v1498
        %v1500 = vpop.f32.mrf.mxu0
        %1501 = vdwg.mxu0
        %v1502 = vld [vmem:[%s2] sm:$0x1]
        %v1504 = vlaneseq
        %v1505 = vshrl.u32 %v1504, 7
        %v1506 = vsub.s32 0, %v1505
        %v1507 = vrot.slane %v1502, %v1506
        %v1509 = vadd.f32 %v1376, %v1507
        %v1510 = vadd.f32 %v1379, %v1507
        %v1511 = vadd.f32 %v1384, %v1507
        %v1512 = vadd.f32 %v1387, %v1507
        %v1513 = vadd.f32 %v1392, %v1507
        %v1514 = vadd.f32 %v1395, %v1507
        %v1515 = vadd.f32 %v1400, %v1507
        %v1516 = vadd.f32 %v1403, %v1507
        %v1517 = vadd.f32 %v1408, %v1507
        %v1518 = vadd.f32 %v1411, %v1507
        %v1519 = vadd.f32 %v1416, %v1507
        %v1520 = vadd.f32 %v1419, %v1507
        %v1521 = vadd.f32 %v1424, %v1507
        %v1522 = vadd.f32 %v1427, %v1507
        %v1523 = vadd.f32 %v1432, %v1507
        %v1524 = vadd.f32 %v1435, %v1507
        %v1525 = vadd.f32 %v1440, %v1507
        %v1526 = vadd.f32 %v1443, %v1507
        %v1527 = vadd.f32 %v1448, %v1507
        %v1528 = vadd.f32 %v1451, %v1507
        %v1529 = vadd.f32 %v1456, %v1507
        %v1530 = vadd.f32 %v1459, %v1507
        %v1531 = vadd.f32 %v1464, %v1507
        %v1532 = vadd.f32 %v1467, %v1507
        %v1533 = vadd.f32 %v1472, %v1507
        %v1534 = vadd.f32 %v1475, %v1507
        %v1535 = vadd.f32 %v1480, %v1507
        %v1536 = vadd.f32 %v1483, %v1507
        %v1537 = vadd.f32 %v1488, %v1507
        %v1538 = vadd.f32 %v1491, %v1507
        %v1539 = vadd.f32 %v1496, %v1507
        %v1540 = vadd.f32 %v1499, %v1507
        %v1541 = vmax.f32 %v1509, 0.0
        %v1542 = vmax.f32 %v1510, 0.0
        %v1543 = vmax.f32 %v1511, 0.0
        %v1544 = vmax.f32 %v1512, 0.0
        %v1545 = vmax.f32 %v1513, 0.0
        %v1546 = vmax.f32 %v1514, 0.0
        %v1547 = vmax.f32 %v1515, 0.0
        %v1548 = vmax.f32 %v1516, 0.0
        %v1549 = vmax.f32 %v1517, 0.0
        %v1550 = vmax.f32 %v1518, 0.0
        %v1551 = vmax.f32 %v1519, 0.0
        %v1552 = vmax.f32 %v1520, 0.0
        %v1553 = vmax.f32 %v1521, 0.0
        %v1554 = vmax.f32 %v1522, 0.0
        %v1555 = vmax.f32 %v1523, 0.0
        %v1556 = vmax.f32 %v1524, 0.0
        %v1557 = vmax.f32 %v1525, 0.0
        %v1558 = vmax.f32 %v1526, 0.0
        %v1559 = vmax.f32 %v1527, 0.0
        %v1560 = vmax.f32 %v1528, 0.0
        %v1561 = vmax.f32 %v1529, 0.0
        %v1562 = vmax.f32 %v1530, 0.0
        %v1563 = vmax.f32 %v1531, 0.0
        %v1564 = vmax.f32 %v1532, 0.0
        %v1565 = vmax.f32 %v1533, 0.0
        %v1566 = vmax.f32 %v1534, 0.0
        %v1567 = vmax.f32 %v1535, 0.0
        %v1568 = vmax.f32 %v1536, 0.0
        %v1569 = vmax.f32 %v1537, 0.0
        %v1570 = vmax.f32 %v1538, 0.0
        %v1571 = vmax.f32 %v1539, 0.0
        %v1572 = vmax.f32 %v1540, 0.0
        %v1573 = vpack.c.bf16 %v1542, %v1541
        %v1574 = vpack.c.bf16 %v1544, %v1543
        %v1575 = vpack.c.bf16 %v1546, %v1545
        %v1576 = vpack.c.bf16 %v1548, %v1547
        %v1577 = vpack.c.bf16 %v1550, %v1549
        %v1578 = vpack.c.bf16 %v1552, %v1551
        %v1579 = vpack.c.bf16 %v1554, %v1553
        %v1580 = vpack.c.bf16 %v1556, %v1555
        %v1581 = vpack.c.bf16 %v1558, %v1557
        %v1582 = vpack.c.bf16 %v1560, %v1559
        %v1583 = vpack.c.bf16 %v1562, %v1561
        %v1584 = vpack.c.bf16 %v1564, %v1563
        %v1585 = vpack.c.bf16 %v1566, %v1565
        %v1586 = vpack.c.bf16 %v1568, %v1567
        %v1587 = vpack.c.bf16 %v1570, %v1569
        %v1588 = vpack.c.bf16 %v1572, %v1571
        %vm1589 = vcmask 1040384
        %vm1590 = vsmask.f32 256
        %vm1591 = vmand %vm1589, %vm1590
        %v1592 = vld [vmem:[#allocation2] sm:$0x1]
        %v1593 = vsel %vm1591, 0, %v1592
        %1594 = vst [vmem:[#allocation2] sm:$0x1] %v1593
        %v1595 = vld [vmem:[#allocation2 + $0x18] sm:$0x1]
        %v1596 = vsel %vm1591, 0, %v1595
        %1597 = vst [vmem:[#allocation2 + $0x18] sm:$0x1] %v1596
        %v1598 = vld [vmem:[#allocation2 + $0x30] sm:$0x1]
        %v1599 = vsel %vm1591, 0, %v1598
        %1600 = vst [vmem:[#allocation2 + $0x30] sm:$0x1] %v1599
        %v1601 = vld [vmem:[#allocation2 + $0x48] sm:$0x1]
        %v1602 = vsel %vm1591, 0, %v1601
        %1603 = vst [vmem:[#allocation2 + $0x48] sm:$0x1] %v1602
        %v1604 = vld [vmem:[#allocation2 + $0x60] sm:$0x1]
        %v1605 = vsel %vm1591, 0, %v1604
        %1606 = vst [vmem:[#allocation2 + $0x60] sm:$0x1] %v1605
        %v1607 = vld [vmem:[#allocation2 + $0x78] sm:$0x1]
        %v1608 = vsel %vm1591, 0, %v1607
        %1609 = vst [vmem:[#allocation2 + $0x78] sm:$0x1] %v1608
        %v1610 = vld [vmem:[#allocation2 + $0x90] sm:$0x1]
        %v1611 = vsel %vm1591, 0, %v1610
        %1612 = vst [vmem:[#allocation2 + $0x90] sm:$0x1] %v1611
        %v1613 = vld [vmem:[#allocation2 + $0xa8] sm:$0x1]
        %v1614 = vsel %vm1591, 0, %v1613
        %1615 = vst [vmem:[#allocation2 + $0xa8] sm:$0x1] %v1614
        %v1616 = vld [vmem:[#allocation2 + $0xc0] sm:$0x1]
        %v1617 = vsel %vm1591, 0, %v1616
        %1618 = vst [vmem:[#allocation2 + $0xc0] sm:$0x1] %v1617
        %v1619 = vld [vmem:[#allocation2 + $0xd8] sm:$0x1]
        %v1620 = vsel %vm1591, 0, %v1619
        %1621 = vst [vmem:[#allocation2 + $0xd8] sm:$0x1] %v1620
        %v1622 = vld [vmem:[#allocation2 + $0xf0] sm:$0x1]
        %v1623 = vsel %vm1591, 0, %v1622
        %1624 = vst [vmem:[#allocation2 + $0xf0] sm:$0x1] %v1623
        %v1625 = vld [vmem:[#allocation2 + $0x108] sm:$0x1]
        %v1626 = vsel %vm1591, 0, %v1625
        %1627 = vst [vmem:[#allocation2 + $0x108] sm:$0x1] %v1626
        %v1628 = vld [vmem:[#allocation2 + $0x120] sm:$0x1]
        %v1629 = vsel %vm1591, 0, %v1628
        %1630 = vst [vmem:[#allocation2 + $0x120] sm:$0x1] %v1629
        %v1631 = vld [vmem:[#allocation2 + $0x138] sm:$0x1]
        %v1632 = vsel %vm1591, 0, %v1631
        %1633 = vst [vmem:[#allocation2 + $0x138] sm:$0x1] %v1632
        %v1634 = vld [vmem:[#allocation2 + $0x150] sm:$0x1]
        %v1635 = vsel %vm1591, 0, %v1634
        %1636 = vst [vmem:[#allocation2 + $0x150] sm:$0x1] %v1635
        %v1637 = vld [vmem:[#allocation2 + $0x168] sm:$0x1]
        %v1638 = vsel %vm1591, 0, %v1637
        %1639 = vst [vmem:[#allocation2 + $0x168] sm:$0x1] %v1638
        %v1656 = vunpack.c.l.b16 %v1573
        %v1657 = vunpack.c.h.b16 %v1573
        %v1658 = vunpack.c.l.b16 %v1574
        %v1659 = vunpack.c.h.b16 %v1574
        %v1660 = vunpack.c.l.b16 %v1575
        %v1661 = vunpack.c.h.b16 %v1575
        %v1662 = vunpack.c.l.b16 %v1576
        %v1663 = vunpack.c.h.b16 %v1576
        %v1664 = vunpack.c.l.b16 %v1577
        %v1665 = vunpack.c.h.b16 %v1577
        %v1666 = vunpack.c.l.b16 %v1578
        %v1667 = vunpack.c.h.b16 %v1578
        %v1668 = vunpack.c.l.b16 %v1579
        %v1669 = vunpack.c.h.b16 %v1579
        %v1670 = vunpack.c.l.b16 %v1580
        %v1671 = vunpack.c.h.b16 %v1580
        %v1672 = vunpack.c.l.b16 %v1581
        %v1673 = vunpack.c.h.b16 %v1581
        %v1674 = vunpack.c.l.b16 %v1582
        %v1675 = vunpack.c.h.b16 %v1582
        %v1676 = vunpack.c.l.b16 %v1583
        %v1677 = vunpack.c.h.b16 %v1583
        %v1678 = vunpack.c.l.b16 %v1584
        %v1679 = vunpack.c.h.b16 %v1584
        %v1680 = vunpack.c.l.b16 %v1585
        %v1681 = vunpack.c.h.b16 %v1585
        %v1682 = vunpack.c.l.b16 %v1586
        %v1683 = vunpack.c.h.b16 %v1586
        %v1684 = vunpack.c.l.b16 %v1587
        %v1685 = vunpack.c.h.b16 %v1587
        %v1686 = vunpack.c.l.b16 %v1588
        %v1687 = vunpack.c.h.b16 %v1588
        %v1688 = vpack.c.b16 %v1656, %v1656
        %v1689 = vpack.c.b16 %v1657, %v1657
        %v1690 = vpack.c.b16 %v1658, %v1658
        %v1691 = vpack.c.b16 %v1659, %v1659
        %v1692 = vpack.c.b16 %v1660, %v1660
        %v1693 = vpack.c.b16 %v1661, %v1661
        %v1694 = vpack.c.b16 %v1662, %v1662
        %v1695 = vpack.c.b16 %v1663, %v1663
        %v1696 = vpack.c.b16 %v1664, %v1664
        %v1697 = vpack.c.b16 %v1665, %v1665
        %v1698 = vpack.c.b16 %v1666, %v1666
        %v1699 = vpack.c.b16 %v1667, %v1667
        %v1700 = vpack.c.b16 %v1668, %v1668
        %v1701 = vpack.c.b16 %v1669, %v1669
        %v1702 = vpack.c.b16 %v1670, %v1670
        %v1703 = vpack.c.b16 %v1671, %v1671
        %v1704 = vpack.c.b16 %v1672, %v1672
        %v1705 = vpack.c.b16 %v1673, %v1673
        %v1706 = vpack.c.b16 %v1674, %v1674
        %v1707 = vpack.c.b16 %v1675, %v1675
        %v1708 = vpack.c.b16 %v1676, %v1676
        %v1709 = vpack.c.b16 %v1677, %v1677
        %v1710 = vpack.c.b16 %v1678, %v1678
        %v1711 = vpack.c.b16 %v1679, %v1679
        %v1712 = vpack.c.b16 %v1680, %v1680
        %v1713 = vpack.c.b16 %v1681, %v1681
        %v1714 = vpack.c.b16 %v1682, %v1682
        %v1715 = vpack.c.b16 %v1683, %v1683
        %v1716 = vpack.c.b16 %v1684, %v1684
        %v1717 = vpack.c.b16 %v1685, %v1685
        %v1718 = vpack.c.b16 %v1686, %v1686
        %v1719 = vpack.c.b16 %v1687, %v1687
        %vm1720 = vsmask.f32 4368
        %vm1721 = vmor %vm1590, %vm1720
        %v1723 = vshrl.u32 %v1688, 16
        %v1725 = vrot.slane %v1723, 7
        %v1726 = vshll.u32 %v1688, 16
        %v1728 = vor.u32 %v1725, %v1726
        %v1729 = vrot.slane %v1725, 4
        %v1731 = vshrl.u32 %v1689, 16
        %v1733 = vrot.slane %v1731, 7
        %v1734 = vshll.u32 %v1689, 16
        %v1736 = vor.u32 %v1733, %v1734
        %v1737 = vsel %vm1721, %v1729, %v1736
        %v1739 = vshrl.u32 %v1690, 16
        %v1741 = vrot.slane %v1739, 7
        %v1742 = vshll.u32 %v1690, 16
        %v1744 = vor.u32 %v1741, %v1742
        %v1745 = vrot.slane %v1741, 4
        %v1747 = vshrl.u32 %v1691, 16
        %v1749 = vrot.slane %v1747, 7
        %v1750 = vshll.u32 %v1691, 16
        %v1752 = vor.u32 %v1749, %v1750
        %v1753 = vsel %vm1721, %v1745, %v1752
        %v1755 = vshrl.u32 %v1692, 16
        %v1757 = vrot.slane %v1755, 7
        %v1758 = vshll.u32 %v1692, 16
        %v1760 = vor.u32 %v1757, %v1758
        %v1761 = vrot.slane %v1757, 4
        %v1763 = vshrl.u32 %v1693, 16
        %v1765 = vrot.slane %v1763, 7
        %v1766 = vshll.u32 %v1693, 16
        %v1768 = vor.u32 %v1765, %v1766
        %v1769 = vsel %vm1721, %v1761, %v1768
        %v1771 = vshrl.u32 %v1694, 16
        %v1773 = vrot.slane %v1771, 7
        %v1774 = vshll.u32 %v1694, 16
        %v1776 = vor.u32 %v1773, %v1774
        %v1777 = vrot.slane %v1773, 4
        %v1779 = vshrl.u32 %v1695, 16
        %v1781 = vrot.slane %v1779, 7
        %v1782 = vshll.u32 %v1695, 16
        %v1784 = vor.u32 %v1781, %v1782
        %v1785 = vsel %vm1721, %v1777, %v1784
        %v1787 = vshrl.u32 %v1696, 16
        %v1789 = vrot.slane %v1787, 7
        %v1790 = vshll.u32 %v1696, 16
        %v1792 = vor.u32 %v1789, %v1790
        %v1793 = vrot.slane %v1789, 4
        %v1795 = vshrl.u32 %v1697, 16
        %v1797 = vrot.slane %v1795, 7
        %v1798 = vshll.u32 %v1697, 16
        %v1800 = vor.u32 %v1797, %v1798
        %v1801 = vsel %vm1721, %v1793, %v1800
        %v1803 = vshrl.u32 %v1698, 16
        %v1805 = vrot.slane %v1803, 7
        %v1806 = vshll.u32 %v1698, 16
        %v1808 = vor.u32 %v1805, %v1806
        %v1809 = vrot.slane %v1805, 4
        %v1811 = vshrl.u32 %v1699, 16
        %v1813 = vrot.slane %v1811, 7
        %v1814 = vshll.u32 %v1699, 16
        %v1816 = vor.u32 %v1813, %v1814
        %v1817 = vsel %vm1721, %v1809, %v1816
        %v1819 = vshrl.u32 %v1700, 16
        %v1821 = vrot.slane %v1819, 7
        %v1822 = vshll.u32 %v1700, 16
        %v1824 = vor.u32 %v1821, %v1822
        %v1825 = vrot.slane %v1821, 4
        %v1827 = vshrl.u32 %v1701, 16
        %v1829 = vrot.slane %v1827, 7
        %v1830 = vshll.u32 %v1701, 16
        %v1832 = vor.u32 %v1829, %v1830
        %v1833 = vsel %vm1721, %v1825, %v1832
        %v1835 = vshrl.u32 %v1702, 16
        %v1837 = vrot.slane %v1835, 7
        %v1838 = vshll.u32 %v1702, 16
        %v1840 = vor.u32 %v1837, %v1838
        %v1841 = vrot.slane %v1837, 4
        %v1843 = vshrl.u32 %v1703, 16
        %v1845 = vrot.slane %v1843, 7
        %v1846 = vshll.u32 %v1703, 16
        %v1848 = vor.u32 %v1845, %v1846
        %v1849 = vsel %vm1721, %v1841, %v1848
        %v1851 = vshrl.u32 %v1704, 16
        %v1853 = vrot.slane %v1851, 7
        %v1854 = vshll.u32 %v1704, 16
        %v1856 = vor.u32 %v1853, %v1854
        %v1857 = vrot.slane %v1853, 4
        %v1859 = vshrl.u32 %v1705, 16
        %v1861 = vrot.slane %v1859, 7
        %v1862 = vshll.u32 %v1705, 16
        %v1864 = vor.u32 %v1861, %v1862
        %v1865 = vsel %vm1721, %v1857, %v1864
        %v1867 = vshrl.u32 %v1706, 16
        %v1869 = vrot.slane %v1867, 7
        %v1870 = vshll.u32 %v1706, 16
        %v1872 = vor.u32 %v1869, %v1870
        %v1873 = vrot.slane %v1869, 4
        %v1875 = vshrl.u32 %v1707, 16
        %v1877 = vrot.slane %v1875, 7
        %v1878 = vshll.u32 %v1707, 16
        %v1880 = vor.u32 %v1877, %v1878
        %v1881 = vsel %vm1721, %v1873, %v1880
        %v1883 = vshrl.u32 %v1708, 16
        %v1885 = vrot.slane %v1883, 7
        %v1886 = vshll.u32 %v1708, 16
        %v1888 = vor.u32 %v1885, %v1886
        %v1889 = vrot.slane %v1885, 4
        %v1891 = vshrl.u32 %v1709, 16
        %v1893 = vrot.slane %v1891, 7
        %v1894 = vshll.u32 %v1709, 16
        %v1896 = vor.u32 %v1893, %v1894
        %v1897 = vsel %vm1721, %v1889, %v1896
        %v1899 = vshrl.u32 %v1710, 16
        %v1901 = vrot.slane %v1899, 7
        %v1902 = vshll.u32 %v1710, 16
        %v1904 = vor.u32 %v1901, %v1902
        %v1905 = vrot.slane %v1901, 4
        %v1907 = vshrl.u32 %v1711, 16
        %v1909 = vrot.slane %v1907, 7
        %v1910 = vshll.u32 %v1711, 16
        %v1912 = vor.u32 %v1909, %v1910
        %v1913 = vsel %vm1721, %v1905, %v1912
        %v1915 = vshrl.u32 %v1712, 16
        %v1917 = vrot.slane %v1915, 7
        %v1918 = vshll.u32 %v1712, 16
        %v1920 = vor.u32 %v1917, %v1918
        %v1921 = vrot.slane %v1917, 4
        %v1923 = vshrl.u32 %v1713, 16
        %v1925 = vrot.slane %v1923, 7
        %v1926 = vshll.u32 %v1713, 16
        %v1928 = vor.u32 %v1925, %v1926
        %v1929 = vsel %vm1721, %v1921, %v1928
        %v1931 = vshrl.u32 %v1714, 16
        %v1933 = vrot.slane %v1931, 7
        %v1934 = vshll.u32 %v1714, 16
        %v1936 = vor.u32 %v1933, %v1934
        %v1937 = vrot.slane %v1933, 4
        %v1939 = vshrl.u32 %v1715, 16
        %v1941 = vrot.slane %v1939, 7
        %v1942 = vshll.u32 %v1715, 16
        %v1944 = vor.u32 %v1941, %v1942
        %v1945 = vsel %vm1721, %v1937, %v1944
        %v1947 = vshrl.u32 %v1716, 16
        %v1949 = vrot.slane %v1947, 7
        %v1950 = vshll.u32 %v1716, 16
        %v1952 = vor.u32 %v1949, %v1950
        %v1953 = vrot.slane %v1949, 4
        %v1955 = vshrl.u32 %v1717, 16
        %v1957 = vrot.slane %v1955, 7
        %v1958 = vshll.u32 %v1717, 16
        %v1960 = vor.u32 %v1957, %v1958
        %v1961 = vsel %vm1721, %v1953, %v1960
        %v1963 = vshrl.u32 %v1718, 16
        %v1965 = vrot.slane %v1963, 7
        %v1966 = vshll.u32 %v1718, 16
        %v1968 = vor.u32 %v1965, %v1966
        %v1969 = vrot.slane %v1965, 4
        %v1971 = vshrl.u32 %v1719, 16
        %v1973 = vrot.slane %v1971, 7
        %v1974 = vshll.u32 %v1719, 16
        %v1976 = vor.u32 %v1973, %v1974
        %v1977 = vsel %vm1721, %v1969, %v1976
        %vm2010 = vcmask 1043456
        %vm2011 = vsmask.f32 7938
        %vm2012 = vmand %vm2010, %vm2011
        %v2013 = vld [vmem:[#allocation2] sm:$0xf]
        %v2014 = vsel %vm2012, %v1728, %v2013
        %2015 = vst [vmem:[#allocation2] sm:$0xf] %v2014
        %2016 = vst [vmem:[#allocation2 + $0xc] sm:$0xf] %v1737
        %v2017 = vld [vmem:[#allocation2 + $0x18] sm:$0xf]
        %v2018 = vsel %vm2012, %v1744, %v2017
        %2019 = vst [vmem:[#allocation2 + $0x18] sm:$0xf] %v2018
        %2020 = vst [vmem:[#allocation2 + $0x24] sm:$0xf] %v1753
        %v2021 = vld [vmem:[#allocation2 + $0x30] sm:$0xf]
        %v2022 = vsel %vm2012, %v1760, %v2021
        %2023 = vst [vmem:[#allocation2 + $0x30] sm:$0xf] %v2022
        %2024 = vst [vmem:[#allocation2 + $0x3c] sm:$0xf] %v1769
        %v2025 = vld [vmem:[#allocation2 + $0x48] sm:$0xf]
        %v2026 = vsel %vm2012, %v1776, %v2025
        %2027 = vst [vmem:[#allocation2 + $0x48] sm:$0xf] %v2026
        %2028 = vst [vmem:[#allocation2 + $0x54] sm:$0xf] %v1785
        %v2029 = vld [vmem:[#allocation2 + $0x60] sm:$0xf]
        %v2030 = vsel %vm2012, %v1792, %v2029
        %2031 = vst [vmem:[#allocation2 + $0x60] sm:$0xf] %v2030
        %2032 = vst [vmem:[#allocation2 + $0x6c] sm:$0xf] %v1801
        %v2033 = vld [vmem:[#allocation2 + $0x78] sm:$0xf]
        %v2034 = vsel %vm2012, %v1808, %v2033
        %2035 = vst [vmem:[#allocation2 + $0x78] sm:$0xf] %v2034
        %2036 = vst [vmem:[#allocation2 + $0x84] sm:$0xf] %v1817
        %v2037 = vld [vmem:[#allocation2 + $0x90] sm:$0xf]
        %v2038 = vsel %vm2012, %v1824, %v2037
        %2039 = vst [vmem:[#allocation2 + $0x90] sm:$0xf] %v2038
        %2040 = vst [vmem:[#allocation2 + $0x9c] sm:$0xf] %v1833
        %v2041 = vld [vmem:[#allocation2 + $0xa8] sm:$0xf]
        %v2042 = vsel %vm2012, %v1840, %v2041
        %2043 = vst [vmem:[#allocation2 + $0xa8] sm:$0xf] %v2042
        %2044 = vst [vmem:[#allocation2 + $0xb4] sm:$0xf] %v1849
        %v2045 = vld [vmem:[#allocation2 + $0xc0] sm:$0xf]
        %v2046 = vsel %vm2012, %v1856, %v2045
        %2047 = vst [vmem:[#allocation2 + $0xc0] sm:$0xf] %v2046
        %2048 = vst [vmem:[#allocation2 + $0xcc] sm:$0xf] %v1865
        %v2049 = vld [vmem:[#allocation2 + $0xd8] sm:$0xf]
        %v2050 = vsel %vm2012, %v1872, %v2049
        %2051 = vst [vmem:[#allocation2 + $0xd8] sm:$0xf] %v2050
        %2052 = vst [vmem:[#allocation2 + $0xe4] sm:$0xf] %v1881
        %v2053 = vld [vmem:[#allocation2 + $0xf0] sm:$0xf]
        %v2054 = vsel %vm2012, %v1888, %v2053
        %2055 = vst [vmem:[#allocation2 + $0xf0] sm:$0xf] %v2054
        %2056 = vst [vmem:[#allocation2 + $0xfc] sm:$0xf] %v1897
        %v2057 = vld [vmem:[#allocation2 + $0x108] sm:$0xf]
        %v2058 = vsel %vm2012, %v1904, %v2057
        %2059 = vst [vmem:[#allocation2 + $0x108] sm:$0xf] %v2058
        %2060 = vst [vmem:[#allocation2 + $0x114] sm:$0xf] %v1913
        %v2061 = vld [vmem:[#allocation2 + $0x120] sm:$0xf]
        %v2062 = vsel %vm2012, %v1920, %v2061
        %2063 = vst [vmem:[#allocation2 + $0x120] sm:$0xf] %v2062
        %2064 = vst [vmem:[#allocation2 + $0x12c] sm:$0xf] %v1929
        %v2065 = vld [vmem:[#allocation2 + $0x138] sm:$0xf]
        %v2066 = vsel %vm2012, %v1936, %v2065
        %2067 = vst [vmem:[#allocation2 + $0x138] sm:$0xf] %v2066
        %2068 = vst [vmem:[#allocation2 + $0x144] sm:$0xf] %v1945
        %v2069 = vld [vmem:[#allocation2 + $0x150] sm:$0xf]
        %v2070 = vsel %vm2012, %v1952, %v2069
        %2071 = vst [vmem:[#allocation2 + $0x150] sm:$0xf] %v2070
        %2072 = vst [vmem:[#allocation2 + $0x15c] sm:$0xf] %v1961
        %v2073 = vld [vmem:[#allocation2 + $0x168] sm:$0xf]
        %v2074 = vsel %vm2012, %v1968, %v2073
        %2075 = vst [vmem:[#allocation2 + $0x168] sm:$0xf] %v2074
        %2076 = vst [vmem:[#allocation2 + $0x174] sm:$0xf] %v1977
        %2109 = vst [vmem:[#allocation2 + $0x4] sm:$0xf] %v1688
        %2110 = vst [vmem:[#allocation2 + $0x10] sm:$0xf] %v1689
        %2111 = vst [vmem:[#allocation2 + $0x1c] sm:$0xf] %v1690
        %2112 = vst [vmem:[#allocation2 + $0x28] sm:$0xf] %v1691
        %2113 = vst [vmem:[#allocation2 + $0x34] sm:$0xf] %v1692
        %2114 = vst [vmem:[#allocation2 + $0x40] sm:$0xf] %v1693
        %2115 = vst [vmem:[#allocation2 + $0x4c] sm:$0xf] %v1694
        %2116 = vst [vmem:[#allocation2 + $0x58] sm:$0xf] %v1695
        %2117 = vst [vmem:[#allocation2 + $0x64] sm:$0xf] %v1696
        %2118 = vst [vmem:[#allocation2 + $0x70] sm:$0xf] %v1697
        %2119 = vst [vmem:[#allocation2 + $0x7c] sm:$0xf] %v1698
        %2120 = vst [vmem:[#allocation2 + $0x88] sm:$0xf] %v1699
        %2121 = vst [vmem:[#allocation2 + $0x94] sm:$0xf] %v1700
        %2122 = vst [vmem:[#allocation2 + $0xa0] sm:$0xf] %v1701
        %2123 = vst [vmem:[#allocation2 + $0xac] sm:$0xf] %v1702
        %2124 = vst [vmem:[#allocation2 + $0xb8] sm:$0xf] %v1703
        %2125 = vst [vmem:[#allocation2 + $0xc4] sm:$0xf] %v1704
        %2126 = vst [vmem:[#allocation2 + $0xd0] sm:$0xf] %v1705
        %2127 = vst [vmem:[#allocation2 + $0xdc] sm:$0xf] %v1706
        %2128 = vst [vmem:[#allocation2 + $0xe8] sm:$0xf] %v1707
        %2129 = vst [vmem:[#allocation2 + $0xf4] sm:$0xf] %v1708
        %2130 = vst [vmem:[#allocation2 + $0x100] sm:$0xf] %v1709
        %2131 = vst [vmem:[#allocation2 + $0x10c] sm:$0xf] %v1710
        %2132 = vst [vmem:[#allocation2 + $0x118] sm:$0xf] %v1711
        %2133 = vst [vmem:[#allocation2 + $0x124] sm:$0xf] %v1712
        %2134 = vst [vmem:[#allocation2 + $0x130] sm:$0xf] %v1713
        %2135 = vst [vmem:[#allocation2 + $0x13c] sm:$0xf] %v1714
        %2136 = vst [vmem:[#allocation2 + $0x148] sm:$0xf] %v1715
        %2137 = vst [vmem:[#allocation2 + $0x154] sm:$0xf] %v1716
        %2138 = vst [vmem:[#allocation2 + $0x160] sm:$0xf] %v1717
        %2139 = vst [vmem:[#allocation2 + $0x16c] sm:$0xf] %v1718
        %2140 = vst [vmem:[#allocation2 + $0x178] sm:$0xf] %v1719
        %vm2141 = vsmask.f32 3328
        %vm2142 = vsmask.f32 7440
        %vm2143 = vmor %vm2141, %vm2142
        %v2144 = vrot.slane %v1723, 4
        %v2145 = vrot.slane %v1726, 5
        %v2146 = vor.u32 %v2144, %v2145
        %v2147 = vrot.slane %v2146, 4
        %v2148 = vrot.slane %v1734, 5
        %v2149 = vsel %vm2143, %v2147, %v2148
        %v2150 = vrot.slane %v1731, 4
        %v2151 = vor.u32 %v2150, %v2148
        %v2152 = vrot.slane %v2151, 4
        %v2153 = vrot.slane %v1739, 4
        %v2154 = vrot.slane %v1742, 5
        %v2155 = vor.u32 %v2153, %v2154
        %v2156 = vrot.slane %v2155, 4
        %v2157 = vrot.slane %v1750, 5
        %v2158 = vsel %vm2143, %v2156, %v2157
        %v2159 = vrot.slane %v1747, 4
        %v2160 = vor.u32 %v2159, %v2157
        %v2161 = vrot.slane %v2160, 4
        %v2162 = vrot.slane %v1755, 4
        %v2163 = vrot.slane %v1758, 5
        %v2164 = vor.u32 %v2162, %v2163
        %v2165 = vrot.slane %v2164, 4
        %v2166 = vrot.slane %v1766, 5
        %v2167 = vsel %vm2143, %v2165, %v2166
        %v2168 = vrot.slane %v1763, 4
        %v2169 = vor.u32 %v2168, %v2166
        %v2170 = vrot.slane %v2169, 4
        %v2171 = vrot.slane %v1771, 4
        %v2172 = vrot.slane %v1774, 5
        %v2173 = vor.u32 %v2171, %v2172
        %v2174 = vrot.slane %v2173, 4
        %v2175 = vrot.slane %v1782, 5
        %v2176 = vsel %vm2143, %v2174, %v2175
        %v2177 = vrot.slane %v1779, 4
        %v2178 = vor.u32 %v2177, %v2175
        %v2179 = vrot.slane %v2178, 4
        %v2180 = vrot.slane %v1787, 4
        %v2181 = vrot.slane %v1790, 5
        %v2182 = vor.u32 %v2180, %v2181
        %v2183 = vrot.slane %v2182, 4
        %v2184 = vrot.slane %v1798, 5
        %v2185 = vsel %vm2143, %v2183, %v2184
        %v2186 = vrot.slane %v1795, 4
        %v2187 = vor.u32 %v2186, %v2184
        %v2188 = vrot.slane %v2187, 4
        %v2189 = vrot.slane %v1803, 4
        %v2190 = vrot.slane %v1806, 5
        %v2191 = vor.u32 %v2189, %v2190
        %v2192 = vrot.slane %v2191, 4
        %v2193 = vrot.slane %v1814, 5
        %v2194 = vsel %vm2143, %v2192, %v2193
        %v2195 = vrot.slane %v1811, 4
        %v2196 = vor.u32 %v2195, %v2193
        %v2197 = vrot.slane %v2196, 4
        %v2198 = vrot.slane %v1819, 4
        %v2199 = vrot.slane %v1822, 5
        %v2200 = vor.u32 %v2198, %v2199
        %v2201 = vrot.slane %v2200, 4
        %v2202 = vrot.slane %v1830, 5
        %v2203 = vsel %vm2143, %v2201, %v2202
        %v2204 = vrot.slane %v1827, 4
        %v2205 = vor.u32 %v2204, %v2202
        %v2206 = vrot.slane %v2205, 4
        %v2207 = vrot.slane %v1835, 4
        %v2208 = vrot.slane %v1838, 5
        %v2209 = vor.u32 %v2207, %v2208
        %v2210 = vrot.slane %v2209, 4
        %v2211 = vrot.slane %v1846, 5
        %v2212 = vsel %vm2143, %v2210, %v2211
        %v2213 = vrot.slane %v1843, 4
        %v2214 = vor.u32 %v2213, %v2211
        %v2215 = vrot.slane %v2214, 4
        %v2216 = vrot.slane %v1851, 4
        %v2217 = vrot.slane %v1854, 5
        %v2218 = vor.u32 %v2216, %v2217
        %v2219 = vrot.slane %v2218, 4
        %v2220 = vrot.slane %v1862, 5
        %v2221 = vsel %vm2143, %v2219, %v2220
        %v2222 = vrot.slane %v1859, 4
        %v2223 = vor.u32 %v2222, %v2220
        %v2224 = vrot.slane %v2223, 4
        %v2225 = vrot.slane %v1867, 4
        %v2226 = vrot.slane %v1870, 5
        %v2227 = vor.u32 %v2225, %v2226
        %v2228 = vrot.slane %v2227, 4
        %v2229 = vrot.slane %v1878, 5
        %v2230 = vsel %vm2143, %v2228, %v2229
        %v2231 = vrot.slane %v1875, 4
        %v2232 = vor.u32 %v2231, %v2229
        %v2233 = vrot.slane %v2232, 4
        %v2234 = vrot.slane %v1883, 4
        %v2235 = vrot.slane %v1886, 5
        %v2236 = vor.u32 %v2234, %v2235
        %v2237 = vrot.slane %v2236, 4
        %v2238 = vrot.slane %v1894, 5
        %v2239 = vsel %vm2143, %v2237, %v2238
        %v2240 = vrot.slane %v1891, 4
        %v2241 = vor.u32 %v2240, %v2238
        %v2242 = vrot.slane %v2241, 4
        %v2243 = vrot.slane %v1899, 4
        %v2244 = vrot.slane %v1902, 5
        %v2245 = vor.u32 %v2243, %v2244
        %v2246 = vrot.slane %v2245, 4
        %v2247 = vrot.slane %v1910, 5
        %v2248 = vsel %vm2143, %v2246, %v2247
        %v2249 = vrot.slane %v1907, 4
        %v2250 = vor.u32 %v2249, %v2247
        %v2251 = vrot.slane %v2250, 4
        %v2252 = vrot.slane %v1915, 4
        %v2253 = vrot.slane %v1918, 5
        %v2254 = vor.u32 %v2252, %v2253
        %v2255 = vrot.slane %v2254, 4
        %v2256 = vrot.slane %v1926, 5
        %v2257 = vsel %vm2143, %v2255, %v2256
        %v2258 = vrot.slane %v1923, 4
        %v2259 = vor.u32 %v2258, %v2256
        %v2260 = vrot.slane %v2259, 4
        %v2261 = vrot.slane %v1931, 4
        %v2262 = vrot.slane %v1934, 5
        %v2263 = vor.u32 %v2261, %v2262
        %v2264 = vrot.slane %v2263, 4
        %v2265 = vrot.slane %v1942, 5
        %v2266 = vsel %vm2143, %v2264, %v2265
        %v2267 = vrot.slane %v1939, 4
        %v2268 = vor.u32 %v2267, %v2265
        %v2269 = vrot.slane %v2268, 4
        %v2270 = vrot.slane %v1947, 4
        %v2271 = vrot.slane %v1950, 5
        %v2272 = vor.u32 %v2270, %v2271
        %v2273 = vrot.slane %v2272, 4
        %v2274 = vrot.slane %v1958, 5
        %v2275 = vsel %vm2143, %v2273, %v2274
        %v2276 = vrot.slane %v1955, 4
        %v2277 = vor.u32 %v2276, %v2274
        %v2278 = vrot.slane %v2277, 4
        %v2279 = vrot.slane %v1963, 4
        %v2280 = vrot.slane %v1966, 5
        %v2281 = vor.u32 %v2279, %v2280
        %v2282 = vrot.slane %v2281, 4
        %v2283 = vrot.slane %v1974, 5
        %v2284 = vsel %vm2143, %v2282, %v2283
        %v2285 = vrot.slane %v1971, 4
        %v2286 = vor.u32 %v2285, %v2283
        %v2287 = vrot.slane %v2286, 4
        %2320 = vst [vmem:[#allocation2 + $0x8] sm:$0xf] %v2149
        %vm2321 = vmand %vm2010, %vm2141
        %v2322 = vld [vmem:[#allocation2 + $0x14] sm:$0xf]
        %v2323 = vsel %vm2321, %v2152, %v2322
        %2324 = vst [vmem:[#allocation2 + $0x14] sm:$0xf] %v2323
        %2325 = vst [vmem:[#allocation2 + $0x20] sm:$0xf] %v2158
        %v2326 = vld [vmem:[#allocation2 + $0x2c] sm:$0xf]
        %v2327 = vsel %vm2321, %v2161, %v2326
        %2328 = vst [vmem:[#allocation2 + $0x2c] sm:$0xf] %v2327
        %2329 = vst [vmem:[#allocation2 + $0x38] sm:$0xf] %v2167
        %v2330 = vld [vmem:[#allocation2 + $0x44] sm:$0xf]
        %v2331 = vsel %vm2321, %v2170, %v2330
        %2332 = vst [vmem:[#allocation2 + $0x44] sm:$0xf] %v2331
        %2333 = vst [vmem:[#allocation2 + $0x50] sm:$0xf] %v2176
        %v2334 = vld [vmem:[#allocation2 + $0x5c] sm:$0xf]
        %v2335 = vsel %vm2321, %v2179, %v2334
        %2336 = vst [vmem:[#allocation2 + $0x5c] sm:$0xf] %v2335
        %2337 = vst [vmem:[#allocation2 + $0x68] sm:$0xf] %v2185
        %v2338 = vld [vmem:[#allocation2 + $0x74] sm:$0xf]
        %v2339 = vsel %vm2321, %v2188, %v2338
        %2340 = vst [vmem:[#allocation2 + $0x74] sm:$0xf] %v2339
        %2341 = vst [vmem:[#allocation2 + $0x80] sm:$0xf] %v2194
        %v2342 = vld [vmem:[#allocation2 + $0x8c] sm:$0xf]
        %v2343 = vsel %vm2321, %v2197, %v2342
        %2344 = vst [vmem:[#allocation2 + $0x8c] sm:$0xf] %v2343
        %2345 = vst [vmem:[#allocation2 + $0x98] sm:$0xf] %v2203
        %v2346 = vld [vmem:[#allocation2 + $0xa4] sm:$0xf]
        %v2347 = vsel %vm2321, %v2206, %v2346
        %2348 = vst [vmem:[#allocation2 + $0xa4] sm:$0xf] %v2347
        %2349 = vst [vmem:[#allocation2 + $0xb0] sm:$0xf] %v2212
        %v2350 = vld [vmem:[#allocation2 + $0xbc] sm:$0xf]
        %v2351 = vsel %vm2321, %v2215, %v2350
        %2352 = vst [vmem:[#allocation2 + $0xbc] sm:$0xf] %v2351
        %2353 = vst [vmem:[#allocation2 + $0xc8] sm:$0xf] %v2221
        %v2354 = vld [vmem:[#allocation2 + $0xd4] sm:$0xf]
        %v2355 = vsel %vm2321, %v2224, %v2354
        %2356 = vst [vmem:[#allocation2 + $0xd4] sm:$0xf] %v2355
        %2357 = vst [vmem:[#allocation2 + $0xe0] sm:$0xf] %v2230
        %v2358 = vld [vmem:[#allocation2 + $0xec] sm:$0xf]
        %v2359 = vsel %vm2321, %v2233, %v2358
        %2360 = vst [vmem:[#allocation2 + $0xec] sm:$0xf] %v2359
        %2361 = vst [vmem:[#allocation2 + $0xf8] sm:$0xf] %v2239
        %v2362 = vld [vmem:[#allocation2 + $0x104] sm:$0xf]
        %v2363 = vsel %vm2321, %v2242, %v2362
        %2364 = vst [vmem:[#allocation2 + $0x104] sm:$0xf] %v2363
        %2365 = vst [vmem:[#allocation2 + $0x110] sm:$0xf] %v2248
        %v2366 = vld [vmem:[#allocation2 + $0x11c] sm:$0xf]
        %v2367 = vsel %vm2321, %v2251, %v2366
        %2368 = vst [vmem:[#allocation2 + $0x11c] sm:$0xf] %v2367
        %2369 = vst [vmem:[#allocation2 + $0x128] sm:$0xf] %v2257
        %v2370 = vld [vmem:[#allocation2 + $0x134] sm:$0xf]
        %v2371 = vsel %vm2321, %v2260, %v2370
        %2372 = vst [vmem:[#allocation2 + $0x134] sm:$0xf] %v2371
        %2373 = vst [vmem:[#allocation2 + $0x140] sm:$0xf] %v2266
        %v2374 = vld [vmem:[#allocation2 + $0x14c] sm:$0xf]
        %v2375 = vsel %vm2321, %v2269, %v2374
        %2376 = vst [vmem:[#allocation2 + $0x14c] sm:$0xf] %v2375
        %2377 = vst [vmem:[#allocation2 + $0x158] sm:$0xf] %v2275
        %v2378 = vld [vmem:[#allocation2 + $0x164] sm:$0xf]
        %v2379 = vsel %vm2321, %v2278, %v2378
        %2380 = vst [vmem:[#allocation2 + $0x164] sm:$0xf] %v2379
        %2381 = vst [vmem:[#allocation2 + $0x170] sm:$0xf] %v2284
        %v2382 = vld [vmem:[#allocation2 + $0x17c] sm:$0xf]
        %v2383 = vsel %vm2321, %v2287, %v2382
        %2384 = vst [vmem:[#allocation2 + $0x17c] sm:$0xf] %v2383
        %vm2385 = vcmask 1043459
        %vm2386 = vsmask.f32 7950
        %vm2387 = vmand %vm2385, %vm2386
        %v2388 = vld [vmem:[#allocation2 + $0x14] sm:$0x8]
        %v2389 = vsel %vm2387, 0, %v2388
        %2390 = vst [vmem:[#allocation2 + $0x14] sm:$0x8] %v2389
        %v2391 = vld [vmem:[#allocation2 + $0x2c] sm:$0x8]
        %v2392 = vsel %vm2387, 0, %v2391
        %2393 = vst [vmem:[#allocation2 + $0x2c] sm:$0x8] %v2392
        %v2394 = vld [vmem:[#allocation2 + $0x44] sm:$0x8]
        %v2395 = vsel %vm2387, 0, %v2394
        %2396 = vst [vmem:[#allocation2 + $0x44] sm:$0x8] %v2395
        %v2397 = vld [vmem:[#allocation2 + $0x5c] sm:$0x8]
        %v2398 = vsel %vm2387, 0, %v2397
        %2399 = vst [vmem:[#allocation2 + $0x5c] sm:$0x8] %v2398
        %v2400 = vld [vmem:[#allocation2 + $0x74] sm:$0x8]
        %v2401 = vsel %vm2387, 0, %v2400
        %2402 = vst [vmem:[#allocation2 + $0x74] sm:$0x8] %v2401
        %v2403 = vld [vmem:[#allocation2 + $0x8c] sm:$0x8]
        %v2404 = vsel %vm2387, 0, %v2403
        %2405 = vst [vmem:[#allocation2 + $0x8c] sm:$0x8] %v2404
        %v2406 = vld [vmem:[#allocation2 + $0xa4] sm:$0x8]
        %v2407 = vsel %vm2387, 0, %v2406
        %2408 = vst [vmem:[#allocation2 + $0xa4] sm:$0x8] %v2407
        %v2409 = vld [vmem:[#allocation2 + $0xbc] sm:$0x8]
        %v2410 = vsel %vm2387, 0, %v2409
        %2411 = vst [vmem:[#allocation2 + $0xbc] sm:$0x8] %v2410
        %v2412 = vld [vmem:[#allocation2 + $0xd4] sm:$0x8]
        %v2413 = vsel %vm2387, 0, %v2412
        %2414 = vst [vmem:[#allocation2 + $0xd4] sm:$0x8] %v2413
        %v2415 = vld [vmem:[#allocation2 + $0xec] sm:$0x8]
        %v2416 = vsel %vm2387, 0, %v2415
        %2417 = vst [vmem:[#allocation2 + $0xec] sm:$0x8] %v2416
        %v2418 = vld [vmem:[#allocation2 + $0x104] sm:$0x8]
        %v2419 = vsel %vm2387, 0, %v2418
        %2420 = vst [vmem:[#allocation2 + $0x104] sm:$0x8] %v2419
        %v2421 = vld [vmem:[#allocation2 + $0x11c] sm:$0x8]
        %v2422 = vsel %vm2387, 0, %v2421
        %2423 = vst [vmem:[#allocation2 + $0x11c] sm:$0x8] %v2422
        %v2424 = vld [vmem:[#allocation2 + $0x134] sm:$0x8]
        %v2425 = vsel %vm2387, 0, %v2424
        %2426 = vst [vmem:[#allocation2 + $0x134] sm:$0x8] %v2425
        %v2427 = vld [vmem:[#allocation2 + $0x14c] sm:$0x8]
        %v2428 = vsel %vm2387, 0, %v2427
        %2429 = vst [vmem:[#allocation2 + $0x14c] sm:$0x8] %v2428
        %v2430 = vld [vmem:[#allocation2 + $0x164] sm:$0x8]
        %v2431 = vsel %vm2387, 0, %v2430
        %2432 = vst [vmem:[#allocation2 + $0x164] sm:$0x8] %v2431
        %v2433 = vld [vmem:[#allocation2 + $0x17c] sm:$0x8]
        %v2434 = vsel %vm2387, 0, %v2433
        %2435 = vst [vmem:[#allocation2 + $0x17c] sm:$0x8] %v2434
        %v2436 = vld [vmem:[#allocation2] sm:$0xff]
        %v2437 = vld [vmem:[#allocation2 + $0x8] sm:$0xf]
        %v2438 = vld [vmem:[#allocation2 + $0xc] sm:$0xff]
        %v2439 = vld [vmem:[#allocation2 + $0x14] sm:$0xf]
        %v2440 = vld [vmem:[#allocation2 + $0x18] sm:$0xff]
        %v2441 = vld [vmem:[#allocation2 + $0x20] sm:$0xf]
        %v2442 = vld [vmem:[#allocation2 + $0x24] sm:$0xff]
        %v2443 = vld [vmem:[#allocation2 + $0x2c] sm:$0xf]
        %v2444 = vld [vmem:[#allocation2 + $0x30] sm:$0xff]
        %v2445 = vld [vmem:[#allocation2 + $0x38] sm:$0xf]
        %v2446 = vld [vmem:[#allocation2 + $0x3c] sm:$0xff]
        %v2447 = vld [vmem:[#allocation2 + $0x44] sm:$0xf]
        %v2448 = vld [vmem:[#allocation2 + $0x48] sm:$0xff]
        %v2449 = vld [vmem:[#allocation2 + $0x50] sm:$0xf]
        %v2450 = vld [vmem:[#allocation2 + $0x54] sm:$0xff]
        %v2451 = vld [vmem:[#allocation2 + $0x5c] sm:$0xf]
        %v2452 = vld [vmem:[#allocation2 + $0x60] sm:$0xff]
        %v2453 = vld [vmem:[#allocation2 + $0x68] sm:$0xf]
        %v2454 = vld [vmem:[#allocation2 + $0x6c] sm:$0xff]
        %v2455 = vld [vmem:[#allocation2 + $0x74] sm:$0xf]
        %v2456 = vld [vmem:[#allocation2 + $0x78] sm:$0xff]
        %v2457 = vld [vmem:[#allocation2 + $0x80] sm:$0xf]
        %v2458 = vld [vmem:[#allocation2 + $0x84] sm:$0xff]
        %v2459 = vld [vmem:[#allocation2 + $0x8c] sm:$0xf]
        %v2460 = vld [vmem:[#allocation2 + $0x90] sm:$0xff]
        %v2461 = vld [vmem:[#allocation2 + $0x98] sm:$0xf]
        %v2462 = vld [vmem:[#allocation2 + $0x9c] sm:$0xff]
        %v2463 = vld [vmem:[#allocation2 + $0xa4] sm:$0xf]
        %v2464 = vld [vmem:[#allocation2 + $0xa8] sm:$0xff]
        %v2465 = vld [vmem:[#allocation2 + $0xb0] sm:$0xf]
        %v2466 = vld [vmem:[#allocation2 + $0xb4] sm:$0xff]
        %v2467 = vld [vmem:[#allocation2 + $0xbc] sm:$0xf]
        %v2468 = vld [vmem:[#allocation2 + $0xc0] sm:$0xff]
        %v2469 = vld [vmem:[#allocation2 + $0xc8] sm:$0xf]
        %v2470 = vld [vmem:[#allocation2 + $0xcc] sm:$0xff]
        %v2471 = vld [vmem:[#allocation2 + $0xd4] sm:$0xf]
        %v2472 = vld [vmem:[#allocation2 + $0xd8] sm:$0xff]
        %v2473 = vld [vmem:[#allocation2 + $0xe0] sm:$0xf]
        %v2474 = vld [vmem:[#allocation2 + $0xe4] sm:$0xff]
        %v2475 = vld [vmem:[#allocation2 + $0xec] sm:$0xf]
        %v2476 = vld [vmem:[#allocation2 + $0xf0] sm:$0xff]
        %v2477 = vld [vmem:[#allocation2 + $0xf8] sm:$0xf]
        %v2478 = vld [vmem:[#allocation2 + $0xfc] sm:$0xff]
        %v2479 = vld [vmem:[#allocation2 + $0x104] sm:$0xf]
        %v2480 = vld [vmem:[#allocation2 + $0x108] sm:$0xff]
        %v2481 = vld [vmem:[#allocation2 + $0x110] sm:$0xf]
        %v2482 = vld [vmem:[#allocation2 + $0x114] sm:$0xff]
        %v2483 = vld [vmem:[#allocation2 + $0x11c] sm:$0xf]
        %v2484 = vld [vmem:[#allocation2 + $0x120] sm:$0xff]
        %v2485 = vld [vmem:[#allocation2 + $0x128] sm:$0xf]
        %v2486 = vld [vmem:[#allocation2 + $0x12c] sm:$0xff]
        %v2487 = vld [vmem:[#allocation2 + $0x134] sm:$0xf]
        %v2488 = vld [vmem:[#allocation2 + $0x138] sm:$0xff]
        %v2489 = vld [vmem:[#allocation2 + $0x140] sm:$0xf]
        %v2490 = vld [vmem:[#allocation2 + $0x144] sm:$0xff]
        %v2491 = vld [vmem:[#allocation2 + $0x14c] sm:$0xf]
        %v2492 = vld [vmem:[#allocation2 + $0x150] sm:$0xff]
        %v2493 = vld [vmem:[#allocation2 + $0x158] sm:$0xf]
        %v2494 = vld [vmem:[#allocation2 + $0x15c] sm:$0xff]
        %v2495 = vld [vmem:[#allocation2 + $0x164] sm:$0xf]
        %v2496 = vld [vmem:[#allocation2 + $0x168] sm:$0xff]
        %v2497 = vld [vmem:[#allocation2 + $0x170] sm:$0xf]
        %v2498 = vld [vmem:[#allocation2 + $0x174] sm:$0xff]
        %v2499 = vld [vmem:[#allocation2 + $0x17c] sm:$0xf]
        %v2500 = vld [vmem:[#allocation8] sm:$0xf]
        %v2501 = vld [vmem:[#allocation8 + $0x4] sm:$0xf]
        %v2502 = vld [vmem:[#allocation8 + $0x8] sm:$0xf]
        %v2503 = vld [vmem:[#allocation8 + $0xc] sm:$0xf]
        %v2504 = vld [vmem:[#allocation8 + $0x10] sm:$0xf]
        %v2505 = vld [vmem:[#allocation8 + $0x14] sm:$0xf]
        %v2506 = vld [vmem:[#allocation8 + $0x18] sm:$0xf]
        %v2507 = vld [vmem:[#allocation8 + $0x1c] sm:$0xf]
        %v2508 = vld [vmem:[#allocation8 + $0x20] sm:$0xf]
        %v2509 = vld [vmem:[#allocation8 + $0x24] sm:$0xf]
        %v2510 = vld [vmem:[#allocation8 + $0x28] sm:$0xf]
        %v2511 = vld [vmem:[#allocation8 + $0x2c] sm:$0xf]
        %v2512 = vld [vmem:[#allocation8 + $0x30] sm:$0xf]
        %v2513 = vld [vmem:[#allocation8 + $0x34] sm:$0xf]
        %v2514 = vld [vmem:[#allocation8 + $0x38] sm:$0xf]
        %v2515 = vld [vmem:[#allocation8 + $0x3c] sm:$0xf]
        %v2516 = vld [vmem:[#allocation8 + $0x40] sm:$0xf]
        %v2517 = vld [vmem:[#allocation8 + $0x44] sm:$0xf]
        %v2518 = vld [vmem:[#allocation8 + $0x48] sm:$0xf]
        %v2519 = vld [vmem:[#allocation8 + $0x4c] sm:$0xf]
        %v2520 = vld [vmem:[#allocation8 + $0x50] sm:$0xf]
        %v2521 = vld [vmem:[#allocation8 + $0x54] sm:$0xf]
        %v2522 = vld [vmem:[#allocation8 + $0x58] sm:$0xf]
        %v2523 = vld [vmem:[#allocation8 + $0x5c] sm:$0xf]
        %v2524 = vld [vmem:[#allocation8 + $0x60] sm:$0xf]
        %v2525 = vld [vmem:[#allocation8 + $0x64] sm:$0xf]
        %v2526 = vld [vmem:[#allocation8 + $0x68] sm:$0xf]
        %v2527 = vld [vmem:[#allocation8 + $0x6c] sm:$0xf]
        %v2528 = vld [vmem:[#allocation8 + $0x70] sm:$0xf]
        %v2529 = vld [vmem:[#allocation8 + $0x74] sm:$0xf]
        %v2530 = vld [vmem:[#allocation8 + $0x78] sm:$0xf]
        %v2531 = vld [vmem:[#allocation8 + $0x7c] sm:$0xf]
        %v2532 = vld [vmem:[#allocation8 + $0x80] sm:$0xf]
        %v2533 = vld [vmem:[#allocation8 + $0x84] sm:$0xf]
        %v2534 = vld [vmem:[#allocation8 + $0x88] sm:$0xf]
        %v2535 = vld [vmem:[#allocation8 + $0x8c] sm:$0xf]
        %v2536 = vld [vmem:[#allocation8 + $0x90] sm:$0xf]
        %v2537 = vld [vmem:[#allocation8 + $0x94] sm:$0xf]
        %v2538 = vld [vmem:[#allocation8 + $0x98] sm:$0xf]
        %v2539 = vld [vmem:[#allocation8 + $0x9c] sm:$0xf]
        %v2540 = vld [vmem:[#allocation8 + $0xa0] sm:$0xf]
        %v2541 = vld [vmem:[#allocation8 + $0xa4] sm:$0xf]
        %v2542 = vld [vmem:[#allocation8 + $0xa8] sm:$0xf]
        %v2543 = vld [vmem:[#allocation8 + $0xac] sm:$0xf]
        %v2544 = vld [vmem:[#allocation8 + $0xb0] sm:$0xf]
        %v2545 = vld [vmem:[#allocation8 + $0xb4] sm:$0xf]
        %v2546 = vld [vmem:[#allocation8 + $0xb8] sm:$0xf]
        %v2547 = vld [vmem:[#allocation8 + $0xbc] sm:$0xf]
        %v2612 = vunpack.c.l.b16 %v2436
        %v2613 = vunpack.c.h.b16 %v2436
        %v2614 = vunpack.c.l.b16 %v2437
        %v2615 = vunpack.c.l.b16 %v2438
        %v2616 = vunpack.c.h.b16 %v2438
        %v2617 = vunpack.c.l.b16 %v2439
        %v2618 = vunpack.c.l.b16 %v2440
        %v2619 = vunpack.c.h.b16 %v2440
        %v2620 = vunpack.c.l.b16 %v2441
        %v2621 = vunpack.c.l.b16 %v2442
        %v2622 = vunpack.c.h.b16 %v2442
        %v2623 = vunpack.c.l.b16 %v2443
        %v2624 = vunpack.c.l.b16 %v2444
        %v2625 = vunpack.c.h.b16 %v2444
        %v2626 = vunpack.c.l.b16 %v2445
        %v2627 = vunpack.c.l.b16 %v2446
        %v2628 = vunpack.c.h.b16 %v2446
        %v2629 = vunpack.c.l.b16 %v2447
        %v2630 = vunpack.c.l.b16 %v2448
        %v2631 = vunpack.c.h.b16 %v2448
        %v2632 = vunpack.c.l.b16 %v2449
        %v2633 = vunpack.c.l.b16 %v2450
        %v2634 = vunpack.c.h.b16 %v2450
        %v2635 = vunpack.c.l.b16 %v2451
        %v2636 = vunpack.c.l.b16 %v2452
        %v2637 = vunpack.c.h.b16 %v2452
        %v2638 = vunpack.c.l.b16 %v2453
        %v2639 = vunpack.c.l.b16 %v2454
        %v2640 = vunpack.c.h.b16 %v2454
        %v2641 = vunpack.c.l.b16 %v2455
        %v2642 = vunpack.c.l.b16 %v2456
        %v2643 = vunpack.c.h.b16 %v2456
        %v2644 = vunpack.c.l.b16 %v2457
        %v2645 = vunpack.c.l.b16 %v2458
        %v2646 = vunpack.c.h.b16 %v2458
        %v2647 = vunpack.c.l.b16 %v2459
        %v2648 = vunpack.c.l.b16 %v2460
        %v2649 = vunpack.c.h.b16 %v2460
        %v2650 = vunpack.c.l.b16 %v2461
        %v2651 = vunpack.c.l.b16 %v2462
        %v2652 = vunpack.c.h.b16 %v2462
        %v2653 = vunpack.c.l.b16 %v2463
        %v2654 = vunpack.c.l.b16 %v2464
        %v2655 = vunpack.c.h.b16 %v2464
        %v2656 = vunpack.c.l.b16 %v2465
        %v2657 = vunpack.c.l.b16 %v2466
        %v2658 = vunpack.c.h.b16 %v2466
        %v2659 = vunpack.c.l.b16 %v2467
        %v2660 = vunpack.c.l.b16 %v2468
        %v2661 = vunpack.c.h.b16 %v2468
        %v2662 = vunpack.c.l.b16 %v2469
        %v2663 = vunpack.c.l.b16 %v2470
        %v2664 = vunpack.c.h.b16 %v2470
        %v2665 = vunpack.c.l.b16 %v2471
        %v2666 = vunpack.c.l.b16 %v2472
        %v2667 = vunpack.c.h.b16 %v2472
        %v2668 = vunpack.c.l.b16 %v2473
        %v2669 = vunpack.c.l.b16 %v2474
        %v2670 = vunpack.c.h.b16 %v2474
        %v2671 = vunpack.c.l.b16 %v2475
        %v2672 = vunpack.c.l.b16 %v2476
        %v2673 = vunpack.c.h.b16 %v2476
        %v2674 = vunpack.c.l.b16 %v2477
        %v2675 = vunpack.c.l.b16 %v2478
        %v2676 = vunpack.c.h.b16 %v2478
        %v2677 = vunpack.c.l.b16 %v2479
        %v2678 = vunpack.c.l.b16 %v2480
        %v2679 = vunpack.c.h.b16 %v2480
        %v2680 = vunpack.c.l.b16 %v2481
        %v2681 = vunpack.c.l.b16 %v2482
        %v2682 = vunpack.c.h.b16 %v2482
        %v2683 = vunpack.c.l.b16 %v2483
        %v2684 = vunpack.c.l.b16 %v2484
        %v2685 = vunpack.c.h.b16 %v2484
        %v2686 = vunpack.c.l.b16 %v2485
        %v2687 = vunpack.c.l.b16 %v2486
        %v2688 = vunpack.c.h.b16 %v2486
        %v2689 = vunpack.c.l.b16 %v2487
        %v2690 = vunpack.c.l.b16 %v2488
        %v2691 = vunpack.c.h.b16 %v2488
        %v2692 = vunpack.c.l.b16 %v2489
        %v2693 = vunpack.c.l.b16 %v2490
        %v2694 = vunpack.c.h.b16 %v2490
        %v2695 = vunpack.c.l.b16 %v2491
        %v2696 = vunpack.c.l.b16 %v2492
        %v2697 = vunpack.c.h.b16 %v2492
        %v2698 = vunpack.c.l.b16 %v2493
        %v2699 = vunpack.c.l.b16 %v2494
        %v2700 = vunpack.c.h.b16 %v2494
        %v2701 = vunpack.c.l.b16 %v2495
        %v2702 = vunpack.c.l.b16 %v2496
        %v2703 = vunpack.c.h.b16 %v2496
        %v2704 = vunpack.c.l.b16 %v2497
        %v2705 = vunpack.c.l.b16 %v2498
        %v2706 = vunpack.c.h.b16 %v2498
        %v2707 = vunpack.c.l.b16 %v2499
        %v2708 = vpack.c.b16 %v2615, %v2612
        %v2709 = vpack.c.b16 %v2616, %v2613
        %v2710 = vpack.c.b16 %v2617, %v2614
        %v2711 = vpack.c.b16 %v2621, %v2618
        %v2712 = vpack.c.b16 %v2622, %v2619
        %v2713 = vpack.c.b16 %v2623, %v2620
        %v2714 = vpack.c.b16 %v2627, %v2624
        %v2715 = vpack.c.b16 %v2628, %v2625
        %v2716 = vpack.c.b16 %v2629, %v2626
        %v2717 = vpack.c.b16 %v2633, %v2630
        %v2718 = vpack.c.b16 %v2634, %v2631
        %v2719 = vpack.c.b16 %v2635, %v2632
        %v2720 = vpack.c.b16 %v2639, %v2636
        %v2721 = vpack.c.b16 %v2640, %v2637
        %v2722 = vpack.c.b16 %v2641, %v2638
        %v2723 = vpack.c.b16 %v2645, %v2642
        %v2724 = vpack.c.b16 %v2646, %v2643
        %v2725 = vpack.c.b16 %v2647, %v2644
        %v2726 = vpack.c.b16 %v2651, %v2648
        %v2727 = vpack.c.b16 %v2652, %v2649
        %v2728 = vpack.c.b16 %v2653, %v2650
        %v2729 = vpack.c.b16 %v2657, %v2654
        %v2730 = vpack.c.b16 %v2658, %v2655
        %v2731 = vpack.c.b16 %v2659, %v2656
        %v2732 = vpack.c.b16 %v2663, %v2660
        %v2733 = vpack.c.b16 %v2664, %v2661
        %v2734 = vpack.c.b16 %v2665, %v2662
        %v2735 = vpack.c.b16 %v2669, %v2666
        %v2736 = vpack.c.b16 %v2670, %v2667
        %v2737 = vpack.c.b16 %v2671, %v2668
        %v2738 = vpack.c.b16 %v2675, %v2672
        %v2739 = vpack.c.b16 %v2676, %v2673
        %v2740 = vpack.c.b16 %v2677, %v2674
        %v2741 = vpack.c.b16 %v2681, %v2678
        %v2742 = vpack.c.b16 %v2682, %v2679
        %v2743 = vpack.c.b16 %v2683, %v2680
        %v2744 = vpack.c.b16 %v2687, %v2684
        %v2745 = vpack.c.b16 %v2688, %v2685
        %v2746 = vpack.c.b16 %v2689, %v2686
        %v2747 = vpack.c.b16 %v2693, %v2690
        %v2748 = vpack.c.b16 %v2694, %v2691
        %v2749 = vpack.c.b16 %v2695, %v2692
        %v2750 = vpack.c.b16 %v2699, %v2696
        %v2751 = vpack.c.b16 %v2700, %v2697
        %v2752 = vpack.c.b16 %v2701, %v2698
        %v2753 = vpack.c.b16 %v2705, %v2702
        %v2754 = vpack.c.b16 %v2706, %v2703
        %v2755 = vpack.c.b16 %v2707, %v2704
        %v2852 = vunpack.c.l.b16 %v2500
        %v2853 = vunpack.c.l.b16 %v2501
        %v2854 = vunpack.c.l.b16 %v2502
        %v2855 = vunpack.c.l.b16 %v2503
        %v2856 = vunpack.c.l.b16 %v2504
        %v2857 = vunpack.c.l.b16 %v2505
        %v2858 = vunpack.c.l.b16 %v2506
        %v2859 = vunpack.c.l.b16 %v2507
        %v2860 = vunpack.c.l.b16 %v2508
        %v2861 = vunpack.c.l.b16 %v2509
        %v2862 = vunpack.c.l.b16 %v2510
        %v2863 = vunpack.c.l.b16 %v2511
        %v2864 = vunpack.c.l.b16 %v2512
        %v2865 = vunpack.c.l.b16 %v2513
        %v2866 = vunpack.c.l.b16 %v2514
        %v2867 = vunpack.c.l.b16 %v2515
        %v2868 = vunpack.c.l.b16 %v2516
        %v2869 = vunpack.c.l.b16 %v2517
        %v2870 = vunpack.c.l.b16 %v2518
        %v2871 = vunpack.c.l.b16 %v2519
        %v2872 = vunpack.c.l.b16 %v2520
        %v2873 = vunpack.c.l.b16 %v2521
        %v2874 = vunpack.c.l.b16 %v2522
        %v2875 = vunpack.c.l.b16 %v2523
        %v2876 = vunpack.c.l.b16 %v2524
        %v2877 = vunpack.c.l.b16 %v2525
        %v2878 = vunpack.c.l.b16 %v2526
        %v2879 = vunpack.c.l.b16 %v2527
        %v2880 = vunpack.c.l.b16 %v2528
        %v2881 = vunpack.c.l.b16 %v2529
        %v2882 = vunpack.c.l.b16 %v2530
        %v2883 = vunpack.c.l.b16 %v2531
        %v2884 = vunpack.c.l.b16 %v2532
        %v2885 = vunpack.c.l.b16 %v2533
        %v2886 = vunpack.c.l.b16 %v2534
        %v2887 = vunpack.c.l.b16 %v2535
        %v2888 = vunpack.c.l.b16 %v2536
        %v2889 = vunpack.c.l.b16 %v2537
        %v2890 = vunpack.c.l.b16 %v2538
        %v2891 = vunpack.c.l.b16 %v2539
        %v2892 = vunpack.c.l.b16 %v2540
        %v2893 = vunpack.c.l.b16 %v2541
        %v2894 = vunpack.c.l.b16 %v2542
        %v2895 = vunpack.c.l.b16 %v2543
        %v2896 = vunpack.c.l.b16 %v2544
        %v2897 = vunpack.c.l.b16 %v2545
        %v2898 = vunpack.c.l.b16 %v2546
        %v2899 = vunpack.c.l.b16 %v2547
        %v2900 = vpack.c.b16 %v2853, %v2852
        %v2901 = vpack.c.b16 %v2855, %v2854
        %v2902 = vpack.c.b16 %v2857, %v2856
        %v2903 = vpack.c.b16 %v2859, %v2858
        %v2904 = vpack.c.b16 %v2861, %v2860
        %v2905 = vpack.c.b16 %v2863, %v2862
        %v2906 = vpack.c.b16 %v2865, %v2864
        %v2907 = vpack.c.b16 %v2867, %v2866
        %v2908 = vpack.c.b16 %v2869, %v2868
        %v2909 = vpack.c.b16 %v2871, %v2870
        %v2910 = vpack.c.b16 %v2873, %v2872
        %v2911 = vpack.c.b16 %v2875, %v2874
        %v2912 = vpack.c.b16 %v2877, %v2876
        %v2913 = vpack.c.b16 %v2879, %v2878
        %v2914 = vpack.c.b16 %v2881, %v2880
        %v2915 = vpack.c.b16 %v2883, %v2882
        %v2916 = vpack.c.b16 %v2885, %v2884
        %v2917 = vpack.c.b16 %v2887, %v2886
        %v2918 = vpack.c.b16 %v2889, %v2888
        %v2919 = vpack.c.b16 %v2891, %v2890
        %v2920 = vpack.c.b16 %v2893, %v2892
        %v2921 = vpack.c.b16 %v2895, %v2894
        %v2922 = vpack.c.b16 %v2897, %v2896
        %v2923 = vpack.c.b16 %v2899, %v2898
        %2948 = vmatprep.subr.bf16.mxu0 0
        %2949 = vmatpush1.bf16.msra.mxu0 %v2907
        %2950 = vmatprep.subr.bf16.mxu0 0
        %2951 = vmatpush1.bf16.msra.mxu0 %v2906
        %2952 = vmatprep.subr.bf16.mxu0 0
        %2953 = vmatpush1.bf16.msra.mxu0 %v2905
        %2954 = vmatprep.subr.bf16.mxu0 0
        %2955 = vmatpush1.bf16.msra.mxu0 %v2904
        %2956 = vmatprep.subr.bf16.mxu0 0
        %2957 = vmatpush1.bf16.msra.mxu0 %v2903
        %2958 = vmatprep.subr.bf16.mxu0 0
        %2959 = vmatpush1.bf16.msra.mxu0 %v2902
        %2960 = vmatprep.subr.bf16.mxu0 0
        %2961 = vmatpush1.bf16.msra.mxu0 %v2901
        %2962 = vmatprep.subr.bf16.mxu0 0
        %2963 = vmatpush1.bf16.msra.mxu0 %v2900
        %2964 = vmatprep.subr.bf16.mxu0 0
        %2965 = vmatpush2.bf16.msra.mxu0 %v2915
        %2966 = vmatprep.subr.bf16.mxu0 0
        %2967 = vmatpush2.bf16.msra.mxu0 %v2914
        %2968 = vmatprep.subr.bf16.mxu0 0
        %2969 = vmatpush2.bf16.msra.mxu0 %v2913
        %2970 = vmatprep.subr.bf16.mxu0 0
        %2971 = vmatpush2.bf16.msra.mxu0 %v2912
        %2972 = vmatprep.subr.bf16.mxu0 0
        %2973 = vmatpush2.bf16.msra.mxu0 %v2911
        %2974 = vmatprep.subr.bf16.mxu0 0
        %2975 = vmatpush2.bf16.msra.mxu0 %v2910
        %2976 = vmatprep.subr.bf16.mxu0 0
        %2977 = vmatpush2.bf16.msra.mxu0 %v2909
        %2978 = vmatprep.subr.bf16.mxu0 0
        %2979 = vmatpush2.bf16.msra.mxu0 %v2908
        %2980 = vmatprep.mubr.bf16.mxu0 %v2709
        %2981 = vmatmul.mubr.bf16.gmra.mxu0 %v2708
        %v2982 = vpop.f32.mrf.mxu0
        %v2983 = vadd.f32 0.0, %v2982
        %v2984 = vpop.f32.mrf.mxu0
        %v2985 = vpop.f32.mrf.mxu0
        %v2986 = vadd.f32 0.0, %v2985
        %v2987 = vpop.f32.mrf.mxu0
        %2988 = vmatprep.mubr.bf16.mxu0 %v2712
        %2989 = vmatmul.mubr.bf16.gmra.mxu0 %v2711
        %v2990 = vpop.f32.mrf.mxu0
        %v2991 = vadd.f32 0.0, %v2990
        %v2992 = vpop.f32.mrf.mxu0
        %v2993 = vpop.f32.mrf.mxu0
        %v2994 = vadd.f32 0.0, %v2993
        %v2995 = vpop.f32.mrf.mxu0
        %2996 = vmatprep.mubr.bf16.mxu0 %v2715
        %2997 = vmatmul.mubr.bf16.gmra.mxu0 %v2714
        %v2998 = vpop.f32.mrf.mxu0
        %v2999 = vadd.f32 0.0, %v2998
        %v3000 = vpop.f32.mrf.mxu0
        %v3001 = vpop.f32.mrf.mxu0
        %v3002 = vadd.f32 0.0, %v3001
        %v3003 = vpop.f32.mrf.mxu0
        %3004 = vmatprep.mubr.bf16.mxu0 %v2718
        %3005 = vmatmul.mubr.bf16.gmra.mxu0 %v2717
        %v3006 = vpop.f32.mrf.mxu0
        %v3007 = vadd.f32 0.0, %v3006
        %v3008 = vpop.f32.mrf.mxu0
        %v3009 = vpop.f32.mrf.mxu0
        %v3010 = vadd.f32 0.0, %v3009
        %v3011 = vpop.f32.mrf.mxu0
        %3012 = vmatprep.mubr.bf16.mxu0 %v2721
        %3013 = vmatmul.mubr.bf16.gmra.mxu0 %v2720
        %v3014 = vpop.f32.mrf.mxu0
        %v3015 = vadd.f32 0.0, %v3014
        %v3016 = vpop.f32.mrf.mxu0
        %v3017 = vpop.f32.mrf.mxu0
        %v3018 = vadd.f32 0.0, %v3017
        %v3019 = vpop.f32.mrf.mxu0
        %3020 = vmatprep.mubr.bf16.mxu0 %v2724
        %3021 = vmatmul.mubr.bf16.gmra.mxu0 %v2723
        %v3022 = vpop.f32.mrf.mxu0
        %v3023 = vadd.f32 0.0, %v3022
        %v3024 = vpop.f32.mrf.mxu0
        %v3025 = vpop.f32.mrf.mxu0
        %v3026 = vadd.f32 0.0, %v3025
        %v3027 = vpop.f32.mrf.mxu0
        %3028 = vmatprep.mubr.bf16.mxu0 %v2727
        %3029 = vmatmul.mubr.bf16.gmra.mxu0 %v2726
        %v3030 = vpop.f32.mrf.mxu0
        %v3031 = vadd.f32 0.0, %v3030
        %v3032 = vpop.f32.mrf.mxu0
        %v3033 = vpop.f32.mrf.mxu0
        %v3034 = vadd.f32 0.0, %v3033
        %v3035 = vpop.f32.mrf.mxu0
        %3036 = vmatprep.mubr.bf16.mxu0 %v2730
        %3037 = vmatmul.mubr.bf16.gmra.mxu0 %v2729
        %v3038 = vpop.f32.mrf.mxu0
        %v3039 = vadd.f32 0.0, %v3038
        %v3040 = vpop.f32.mrf.mxu0
        %v3041 = vpop.f32.mrf.mxu0
        %v3042 = vadd.f32 0.0, %v3041
        %v3043 = vpop.f32.mrf.mxu0
        %3044 = vmatprep.mubr.bf16.mxu0 %v2733
        %3045 = vmatmul.mubr.bf16.gmra.mxu0 %v2732
        %v3046 = vpop.f32.mrf.mxu0
        %v3047 = vadd.f32 0.0, %v3046
        %v3048 = vpop.f32.mrf.mxu0
        %v3049 = vpop.f32.mrf.mxu0
        %v3050 = vadd.f32 0.0, %v3049
        %v3051 = vpop.f32.mrf.mxu0
        %3052 = vmatprep.mubr.bf16.mxu0 %v2736
        %3053 = vmatmul.mubr.bf16.gmra.mxu0 %v2735
        %v3054 = vpop.f32.mrf.mxu0
        %v3055 = vadd.f32 0.0, %v3054
        %v3056 = vpop.f32.mrf.mxu0
        %v3057 = vpop.f32.mrf.mxu0
        %v3058 = vadd.f32 0.0, %v3057
        %v3059 = vpop.f32.mrf.mxu0
        %3060 = vmatprep.mubr.bf16.mxu0 %v2739
        %3061 = vmatmul.mubr.bf16.gmra.mxu0 %v2738
        %v3062 = vpop.f32.mrf.mxu0
        %v3063 = vadd.f32 0.0, %v3062
        %v3064 = vpop.f32.mrf.mxu0
        %v3065 = vpop.f32.mrf.mxu0
        %v3066 = vadd.f32 0.0, %v3065
        %v3067 = vpop.f32.mrf.mxu0
        %3068 = vmatprep.mubr.bf16.mxu0 %v2742
        %3069 = vmatmul.mubr.bf16.gmra.mxu0 %v2741
        %v3070 = vpop.f32.mrf.mxu0
        %v3071 = vadd.f32 0.0, %v3070
        %v3072 = vpop.f32.mrf.mxu0
        %v3073 = vpop.f32.mrf.mxu0
        %v3074 = vadd.f32 0.0, %v3073
        %v3075 = vpop.f32.mrf.mxu0
        %3076 = vmatprep.mubr.bf16.mxu0 %v2745
        %3077 = vmatmul.mubr.bf16.gmra.mxu0 %v2744
        %v3078 = vpop.f32.mrf.mxu0
        %v3079 = vadd.f32 0.0, %v3078
        %v3080 = vpop.f32.mrf.mxu0
        %v3081 = vpop.f32.mrf.mxu0
        %v3082 = vadd.f32 0.0, %v3081
        %v3083 = vpop.f32.mrf.mxu0
        %3084 = vmatprep.mubr.bf16.mxu0 %v2748
        %3085 = vmatmul.mubr.bf16.gmra.mxu0 %v2747
        %v3086 = vpop.f32.mrf.mxu0
        %v3087 = vadd.f32 0.0, %v3086
        %v3088 = vpop.f32.mrf.mxu0
        %v3089 = vpop.f32.mrf.mxu0
        %v3090 = vadd.f32 0.0, %v3089
        %v3091 = vpop.f32.mrf.mxu0
        %3092 = vmatprep.mubr.bf16.mxu0 %v2751
        %3093 = vmatmul.mubr.bf16.gmra.mxu0 %v2750
        %v3094 = vpop.f32.mrf.mxu0
        %v3095 = vadd.f32 0.0, %v3094
        %v3096 = vpop.f32.mrf.mxu0
        %v3097 = vpop.f32.mrf.mxu0
        %v3098 = vadd.f32 0.0, %v3097
        %v3099 = vpop.f32.mrf.mxu0
        %3100 = vmatprep.mubr.bf16.mxu0 %v2754
        %3101 = vmatmul.mubr.bf16.gmra.mxu0 %v2753
        %v3102 = vpop.f32.mrf.mxu0
        %v3103 = vadd.f32 0.0, %v3102
        %v3104 = vpop.f32.mrf.mxu0
        %v3105 = vpop.f32.mrf.mxu0
        %v3106 = vadd.f32 0.0, %v3105
        %v3107 = vpop.f32.mrf.mxu0
        %3108 = vdwg.mxu0
        %3109 = vmatprep.subr.bf16.mxu0 0
        %3110 = vmatpush1.bf16.msra.mxu0 %v2923
        %3111 = vmatprep.subr.bf16.mxu0 0
        %3112 = vmatpush1.bf16.msra.mxu0 %v2922
        %3113 = vmatprep.subr.bf16.mxu0 0
        %3114 = vmatpush1.bf16.msra.mxu0 %v2921
        %3115 = vmatprep.subr.bf16.mxu0 0
        %3116 = vmatpush1.bf16.msra.mxu0 %v2920
        %3117 = vmatprep.subr.bf16.mxu0 0
        %3118 = vmatpush1.bf16.msra.mxu0 %v2919
        %3119 = vmatprep.subr.bf16.mxu0 0
        %3120 = vmatpush1.bf16.msra.mxu0 %v2918
        %3121 = vmatprep.subr.bf16.mxu0 0
        %3122 = vmatpush1.bf16.msra.mxu0 %v2917
        %3123 = vmatprep.subr.bf16.mxu0 0
        %3124 = vmatpush1.bf16.msra.mxu0 %v2916
        %3125 = vmatprep.subr.bf16.mxu0 0
        %3126 = vmatpush2.bf16.msra.mxu0 0
        %3127 = vmatprep.subr.bf16.mxu0 0
        %3128 = vmatpush2.bf16.msra.mxu0 0
        %3129 = vmatprep.subr.bf16.mxu0 0
        %3130 = vmatpush2.bf16.msra.mxu0 0
        %3131 = vmatprep.subr.bf16.mxu0 0
        %3132 = vmatpush2.bf16.msra.mxu0 0
        %3133 = vmatprep.subr.bf16.mxu0 0
        %3134 = vmatpush2.bf16.msra.mxu0 0
        %3135 = vmatprep.subr.bf16.mxu0 0
        %3136 = vmatpush2.bf16.msra.mxu0 0
        %3137 = vmatprep.subr.bf16.mxu0 0
        %3138 = vmatpush2.bf16.msra.mxu0 0
        %3139 = vmatprep.subr.bf16.mxu0 0
        %3140 = vmatpush2.bf16.msra.mxu0 0
        %3141 = vmatprep.mubr.bf16.mxu0 0
        %3142 = vmatmul.mubr.bf16.gmra.mxu0 %v2710
        %v3143 = vpop.f32.mrf.mxu0
        %v3144 = vadd.f32 %v2983, %v3143
        %v3145 = vpop.f32.mrf.mxu0
        %v3146 = vpop.f32.mrf.mxu0
        %v3147 = vadd.f32 %v2986, %v3146
        %v3148 = vpop.f32.mrf.mxu0
        %3149 = vmatprep.mubr.bf16.mxu0 0
        %3150 = vmatmul.mubr.bf16.gmra.mxu0 %v2713
        %v3151 = vpop.f32.mrf.mxu0
        %v3152 = vadd.f32 %v2991, %v3151
        %v3153 = vpop.f32.mrf.mxu0
        %v3154 = vpop.f32.mrf.mxu0
        %v3155 = vadd.f32 %v2994, %v3154
        %v3156 = vpop.f32.mrf.mxu0
        %3157 = vmatprep.mubr.bf16.mxu0 0
        %3158 = vmatmul.mubr.bf16.gmra.mxu0 %v2716
        %v3159 = vpop.f32.mrf.mxu0
        %v3160 = vadd.f32 %v2999, %v3159
        %v3161 = vpop.f32.mrf.mxu0
        %v3162 = vpop.f32.mrf.mxu0
        %v3163 = vadd.f32 %v3002, %v3162
        %v3164 = vpop.f32.mrf.mxu0
        %3165 = vmatprep.mubr.bf16.mxu0 0
        %3166 = vmatmul.mubr.bf16.gmra.mxu0 %v2719
        %v3167 = vpop.f32.mrf.mxu0
        %v3168 = vadd.f32 %v3007, %v3167
        %v3169 = vpop.f32.mrf.mxu0
        %v3170 = vpop.f32.mrf.mxu0
        %v3171 = vadd.f32 %v3010, %v3170
        %v3172 = vpop.f32.mrf.mxu0
        %3173 = vmatprep.mubr.bf16.mxu0 0
        %3174 = vmatmul.mubr.bf16.gmra.mxu0 %v2722
        %v3175 = vpop.f32.mrf.mxu0
        %v3176 = vadd.f32 %v3015, %v3175
        %v3177 = vpop.f32.mrf.mxu0
        %v3178 = vpop.f32.mrf.mxu0
        %v3179 = vadd.f32 %v3018, %v3178
        %v3180 = vpop.f32.mrf.mxu0
        %3181 = vmatprep.mubr.bf16.mxu0 0
        %3182 = vmatmul.mubr.bf16.gmra.mxu0 %v2725
        %v3183 = vpop.f32.mrf.mxu0
        %v3184 = vadd.f32 %v3023, %v3183
        %v3185 = vpop.f32.mrf.mxu0
        %v3186 = vpop.f32.mrf.mxu0
        %v3187 = vadd.f32 %v3026, %v3186
        %v3188 = vpop.f32.mrf.mxu0
        %3189 = vmatprep.mubr.bf16.mxu0 0
        %3190 = vmatmul.mubr.bf16.gmra.mxu0 %v2728
        %v3191 = vpop.f32.mrf.mxu0
        %v3192 = vadd.f32 %v3031, %v3191
        %v3193 = vpop.f32.mrf.mxu0
        %v3194 = vpop.f32.mrf.mxu0
        %v3195 = vadd.f32 %v3034, %v3194
        %v3196 = vpop.f32.mrf.mxu0
        %3197 = vmatprep.mubr.bf16.mxu0 0
        %3198 = vmatmul.mubr.bf16.gmra.mxu0 %v2731
        %v3199 = vpop.f32.mrf.mxu0
        %v3200 = vadd.f32 %v3039, %v3199
        %v3201 = vpop.f32.mrf.mxu0
        %v3202 = vpop.f32.mrf.mxu0
        %v3203 = vadd.f32 %v3042, %v3202
        %v3204 = vpop.f32.mrf.mxu0
        %3205 = vmatprep.mubr.bf16.mxu0 0
        %3206 = vmatmul.mubr.bf16.gmra.mxu0 %v2734
        %v3207 = vpop.f32.mrf.mxu0
        %v3208 = vadd.f32 %v3047, %v3207
        %v3209 = vpop.f32.mrf.mxu0
        %v3210 = vpop.f32.mrf.mxu0
        %v3211 = vadd.f32 %v3050, %v3210
        %v3212 = vpop.f32.mrf.mxu0
        %3213 = vmatprep.mubr.bf16.mxu0 0
        %3214 = vmatmul.mubr.bf16.gmra.mxu0 %v2737
        %v3215 = vpop.f32.mrf.mxu0
        %v3216 = vadd.f32 %v3055, %v3215
        %v3217 = vpop.f32.mrf.mxu0
        %v3218 = vpop.f32.mrf.mxu0
        %v3219 = vadd.f32 %v3058, %v3218
        %v3220 = vpop.f32.mrf.mxu0
        %3221 = vmatprep.mubr.bf16.mxu0 0
        %3222 = vmatmul.mubr.bf16.gmra.mxu0 %v2740
        %v3223 = vpop.f32.mrf.mxu0
        %v3224 = vadd.f32 %v3063, %v3223
        %v3225 = vpop.f32.mrf.mxu0
        %v3226 = vpop.f32.mrf.mxu0
        %v3227 = vadd.f32 %v3066, %v3226
        %v3228 = vpop.f32.mrf.mxu0
        %3229 = vmatprep.mubr.bf16.mxu0 0
        %3230 = vmatmul.mubr.bf16.gmra.mxu0 %v2743
        %v3231 = vpop.f32.mrf.mxu0
        %v3232 = vadd.f32 %v3071, %v3231
        %v3233 = vpop.f32.mrf.mxu0
        %v3234 = vpop.f32.mrf.mxu0
        %v3235 = vadd.f32 %v3074, %v3234
        %v3236 = vpop.f32.mrf.mxu0
        %3237 = vmatprep.mubr.bf16.mxu0 0
        %3238 = vmatmul.mubr.bf16.gmra.mxu0 %v2746
        %v3239 = vpop.f32.mrf.mxu0
        %v3240 = vadd.f32 %v3079, %v3239
        %v3241 = vpop.f32.mrf.mxu0
        %v3242 = vpop.f32.mrf.mxu0
        %v3243 = vadd.f32 %v3082, %v3242
        %v3244 = vpop.f32.mrf.mxu0
        %3245 = vmatprep.mubr.bf16.mxu0 0
        %3246 = vmatmul.mubr.bf16.gmra.mxu0 %v2749
        %v3247 = vpop.f32.mrf.mxu0
        %v3248 = vadd.f32 %v3087, %v3247
        %v3249 = vpop.f32.mrf.mxu0
        %v3250 = vpop.f32.mrf.mxu0
        %v3251 = vadd.f32 %v3090, %v3250
        %v3252 = vpop.f32.mrf.mxu0
        %3253 = vmatprep.mubr.bf16.mxu0 0
        %3254 = vmatmul.mubr.bf16.gmra.mxu0 %v2752
        %v3255 = vpop.f32.mrf.mxu0
        %v3256 = vadd.f32 %v3095, %v3255
        %v3257 = vpop.f32.mrf.mxu0
        %v3258 = vpop.f32.mrf.mxu0
        %v3259 = vadd.f32 %v3098, %v3258
        %v3260 = vpop.f32.mrf.mxu0
        %3261 = vmatprep.mubr.bf16.mxu0 0
        %3262 = vmatmul.mubr.bf16.gmra.mxu0 %v2755
        %v3263 = vpop.f32.mrf.mxu0
        %v3264 = vadd.f32 %v3103, %v3263
        %v3265 = vpop.f32.mrf.mxu0
        %v3266 = vpop.f32.mrf.mxu0
        %v3267 = vadd.f32 %v3106, %v3266
        %v3268 = vpop.f32.mrf.mxu0
        %3269 = vdwg.mxu0
        %v3270 = vld [vmem:[%s4] sm:$0x1]
        %v3272 = vlaneseq
        %v3273 = vshrl.u32 %v3272, 7
        %v3274 = vsub.s32 0, %v3273
        %v3275 = vrot.slane %v3270, %v3274
        %v3277 = vadd.f32 %v3144, %v3275
        %v3278 = vadd.f32 %v3147, %v3275
        %v3279 = vadd.f32 %v3152, %v3275
        %v3280 = vadd.f32 %v3155, %v3275
        %v3281 = vadd.f32 %v3160, %v3275
        %v3282 = vadd.f32 %v3163, %v3275
        %v3283 = vadd.f32 %v3168, %v3275
        %v3284 = vadd.f32 %v3171, %v3275
        %v3285 = vadd.f32 %v3176, %v3275
        %v3286 = vadd.f32 %v3179, %v3275
        %v3287 = vadd.f32 %v3184, %v3275
        %v3288 = vadd.f32 %v3187, %v3275
        %v3289 = vadd.f32 %v3192, %v3275
        %v3290 = vadd.f32 %v3195, %v3275
        %v3291 = vadd.f32 %v3200, %v3275
        %v3292 = vadd.f32 %v3203, %v3275
        %v3293 = vadd.f32 %v3208, %v3275
        %v3294 = vadd.f32 %v3211, %v3275
        %v3295 = vadd.f32 %v3216, %v3275
        %v3296 = vadd.f32 %v3219, %v3275
        %v3297 = vadd.f32 %v3224, %v3275
        %v3298 = vadd.f32 %v3227, %v3275
        %v3299 = vadd.f32 %v3232, %v3275
        %v3300 = vadd.f32 %v3235, %v3275
        %v3301 = vadd.f32 %v3240, %v3275
        %v3302 = vadd.f32 %v3243, %v3275
        %v3303 = vadd.f32 %v3248, %v3275
        %v3304 = vadd.f32 %v3251, %v3275
        %v3305 = vadd.f32 %v3256, %v3275
        %v3306 = vadd.f32 %v3259, %v3275
        %v3307 = vadd.f32 %v3264, %v3275
        %v3308 = vadd.f32 %v3267, %v3275
        %v3309 = vmax.f32 %v3277, 0.0
        %v3310 = vmax.f32 %v3278, 0.0
        %v3311 = vmax.f32 %v3279, 0.0
        %v3312 = vmax.f32 %v3280, 0.0
        %v3313 = vmax.f32 %v3281, 0.0
        %v3314 = vmax.f32 %v3282, 0.0
        %v3315 = vmax.f32 %v3283, 0.0
        %v3316 = vmax.f32 %v3284, 0.0
        %v3317 = vmax.f32 %v3285, 0.0
        %v3318 = vmax.f32 %v3286, 0.0
        %v3319 = vmax.f32 %v3287, 0.0
        %v3320 = vmax.f32 %v3288, 0.0
        %v3321 = vmax.f32 %v3289, 0.0
        %v3322 = vmax.f32 %v3290, 0.0
        %v3323 = vmax.f32 %v3291, 0.0
        %v3324 = vmax.f32 %v3292, 0.0
        %v3325 = vmax.f32 %v3293, 0.0
        %v3326 = vmax.f32 %v3294, 0.0
        %v3327 = vmax.f32 %v3295, 0.0
        %v3328 = vmax.f32 %v3296, 0.0
        %v3329 = vmax.f32 %v3297, 0.0
        %v3330 = vmax.f32 %v3298, 0.0
        %v3331 = vmax.f32 %v3299, 0.0
        %v3332 = vmax.f32 %v3300, 0.0
        %v3333 = vmax.f32 %v3301, 0.0
        %v3334 = vmax.f32 %v3302, 0.0
        %v3335 = vmax.f32 %v3303, 0.0
        %v3336 = vmax.f32 %v3304, 0.0
        %v3337 = vmax.f32 %v3305, 0.0
        %v3338 = vmax.f32 %v3306, 0.0
        %v3339 = vmax.f32 %v3307, 0.0
        %v3340 = vmax.f32 %v3308, 0.0
        %v3341 = vpack.c.bf16 %v3310, %v3309
        %v3342 = vpack.c.bf16 %v3312, %v3311
        %v3343 = vpack.c.bf16 %v3314, %v3313
        %v3344 = vpack.c.bf16 %v3316, %v3315
        %v3345 = vpack.c.bf16 %v3318, %v3317
        %v3346 = vpack.c.bf16 %v3320, %v3319
        %v3347 = vpack.c.bf16 %v3322, %v3321
        %v3348 = vpack.c.bf16 %v3324, %v3323
        %v3349 = vpack.c.bf16 %v3326, %v3325
        %v3350 = vpack.c.bf16 %v3328, %v3327
        %v3351 = vpack.c.bf16 %v3330, %v3329
        %v3352 = vpack.c.bf16 %v3332, %v3331
        %v3353 = vpack.c.bf16 %v3334, %v3333
        %v3354 = vpack.c.bf16 %v3336, %v3335
        %v3355 = vpack.c.bf16 %v3338, %v3337
        %v3356 = vpack.c.bf16 %v3340, %v3339
        %3357 = vst [vmem:[#allocation2] sm:$0xf] 0
        %3358 = vst [vmem:[#allocation2 + $0xc] sm:$0xf] 0
        %3359 = vst [vmem:[#allocation2 + $0x18] sm:$0xf] 0
        %3360 = vst [vmem:[#allocation2 + $0x24] sm:$0xf] 0
        %v3375 = vunpack.c.l.b16 %v3341
        %v3376 = vunpack.c.h.b16 %v3341
        %v3377 = vunpack.c.l.b16 %v3342
        %v3378 = vunpack.c.h.b16 %v3342
        %v3379 = vunpack.c.l.b16 %v3343
        %v3380 = vunpack.c.h.b16 %v3343
        %v3381 = vunpack.c.l.b16 %v3344
        %v3382 = vunpack.c.h.b16 %v3344
        %v3383 = vunpack.c.l.b16 %v3345
        %v3384 = vunpack.c.h.b16 %v3345
        %v3385 = vunpack.c.l.b16 %v3346
        %v3386 = vunpack.c.h.b16 %v3346
        %v3387 = vunpack.c.l.b16 %v3347
        %v3388 = vunpack.c.h.b16 %v3347
        %v3389 = vunpack.c.l.b16 %v3348
        %v3390 = vunpack.c.h.b16 %v3348
        %v3391 = vunpack.c.l.b16 %v3349
        %v3392 = vunpack.c.h.b16 %v3349
        %v3393 = vunpack.c.l.b16 %v3350
        %v3394 = vunpack.c.h.b16 %v3350
        %v3395 = vunpack.c.l.b16 %v3351
        %v3396 = vunpack.c.h.b16 %v3351
        %v3397 = vunpack.c.l.b16 %v3352
        %v3398 = vunpack.c.h.b16 %v3352
        %v3399 = vunpack.c.l.b16 %v3353
        %v3400 = vunpack.c.h.b16 %v3353
        %v3401 = vunpack.c.l.b16 %v3354
        %v3402 = vunpack.c.h.b16 %v3354
        %v3403 = vpack.c.b16 %v3375, %v3375
        %v3404 = vpack.c.b16 %v3376, %v3376
        %v3405 = vpack.c.b16 %v3377, %v3377
        %v3406 = vpack.c.b16 %v3378, %v3378
        %v3407 = vpack.c.b16 %v3379, %v3379
        %v3408 = vpack.c.b16 %v3380, %v3380
        %v3409 = vpack.c.b16 %v3381, %v3381
        %v3410 = vpack.c.b16 %v3382, %v3382
        %v3411 = vpack.c.b16 %v3383, %v3383
        %v3412 = vpack.c.b16 %v3384, %v3384
        %v3413 = vpack.c.b16 %v3385, %v3385
        %v3414 = vpack.c.b16 %v3386, %v3386
        %v3415 = vpack.c.b16 %v3387, %v3387
        %v3416 = vpack.c.b16 %v3388, %v3388
        %v3417 = vpack.c.b16 %v3389, %v3389
        %v3418 = vpack.c.b16 %v3390, %v3390
        %v3419 = vpack.c.b16 %v3391, %v3391
        %v3420 = vpack.c.b16 %v3392, %v3392
        %v3421 = vpack.c.b16 %v3393, %v3393
        %v3422 = vpack.c.b16 %v3394, %v3394
        %v3423 = vpack.c.b16 %v3395, %v3395
        %v3424 = vpack.c.b16 %v3396, %v3396
        %v3425 = vpack.c.b16 %v3397, %v3397
        %v3426 = vpack.c.b16 %v3398, %v3398
        %v3427 = vpack.c.b16 %v3399, %v3399
        %v3428 = vpack.c.b16 %v3400, %v3400
        %v3429 = vpack.c.b16 %v3401, %v3401
        %v3430 = vpack.c.b16 %v3402, %v3402
        %s3459 = scalar_lea.vmem [#allocation2], 48
        %3460 = vst [vmem:[%s3459] sm:$0xf] %v3403
        %3461 = vst [vmem:[%s3459 + $0xc] sm:$0xf] %v3404
        %3462 = vst [vmem:[%s3459 + $0x18] sm:$0xf] %v3405
        %3463 = vst [vmem:[%s3459 + $0x24] sm:$0xf] %v3406
        %3464 = vst [vmem:[%s3459 + $0x30] sm:$0xf] %v3407
        %3465 = vst [vmem:[%s3459 + $0x3c] sm:$0xf] %v3408
        %3466 = vst [vmem:[%s3459 + $0x48] sm:$0xf] %v3409
        %3467 = vst [vmem:[%s3459 + $0x54] sm:$0xf] %v3410
        %3468 = vst [vmem:[%s3459 + $0x60] sm:$0xf] %v3411
        %3469 = vst [vmem:[%s3459 + $0x6c] sm:$0xf] %v3412
        %3470 = vst [vmem:[%s3459 + $0x78] sm:$0xf] %v3413
        %3471 = vst [vmem:[%s3459 + $0x84] sm:$0xf] %v3414
        %3472 = vst [vmem:[%s3459 + $0x90] sm:$0xf] %v3415
        %3473 = vst [vmem:[%s3459 + $0x9c] sm:$0xf] %v3416
        %3474 = vst [vmem:[%s3459 + $0xa8] sm:$0xf] %v3417
        %3475 = vst [vmem:[%s3459 + $0xb4] sm:$0xf] %v3418
        %3476 = vst [vmem:[%s3459 + $0xc0] sm:$0xf] %v3419
        %3477 = vst [vmem:[%s3459 + $0xcc] sm:$0xf] %v3420
        %3478 = vst [vmem:[%s3459 + $0xd8] sm:$0xf] %v3421
        %3479 = vst [vmem:[%s3459 + $0xe4] sm:$0xf] %v3422
        %3480 = vst [vmem:[%s3459 + $0xf0] sm:$0xf] %v3423
        %3481 = vst [vmem:[%s3459 + $0xfc] sm:$0xf] %v3424
        %3482 = vst [vmem:[%s3459 + $0x108] sm:$0xf] %v3425
        %3483 = vst [vmem:[%s3459 + $0x114] sm:$0xf] %v3426
        %3484 = vst [vmem:[%s3459 + $0x120] sm:$0xf] %v3427
        %3485 = vst [vmem:[%s3459 + $0x12c] sm:$0xf] %v3428
        %3486 = vst [vmem:[%s3459 + $0x138] sm:$0xf] %v3429
        %3487 = vst [vmem:[%s3459 + $0x144] sm:$0xf] %v3430
        %v3490 = vunpack.c.l.b16 %v3355
        %v3491 = vunpack.c.h.b16 %v3355
        %v3492 = vunpack.c.l.b16 %v3356
        %v3493 = vunpack.c.h.b16 %v3356
        %v3494 = vpack.c.b16 %v3490, %v3490
        %v3495 = vpack.c.b16 %v3491, %v3491
        %v3496 = vpack.c.b16 %v3492, %v3492
        %v3497 = vpack.c.b16 %v3493, %v3493
        %3502 = vst [vmem:[#allocation2 + $0x4] sm:$0xf] %v3403
        %3503 = vst [vmem:[#allocation2 + $0x10] sm:$0xf] %v3404
        %3504 = vst [vmem:[#allocation2 + $0x1c] sm:$0xf] %v3405
        %3505 = vst [vmem:[#allocation2 + $0x28] sm:$0xf] %v3406
        %3506 = vst [vmem:[#allocation2 + $0x34] sm:$0xf] %v3407
        %3507 = vst [vmem:[#allocation2 + $0x40] sm:$0xf] %v3408
        %3508 = vst [vmem:[#allocation2 + $0x4c] sm:$0xf] %v3409
        %3509 = vst [vmem:[#allocation2 + $0x58] sm:$0xf] %v3410
        %3510 = vst [vmem:[#allocation2 + $0x64] sm:$0xf] %v3411
        %3511 = vst [vmem:[#allocation2 + $0x70] sm:$0xf] %v3412
        %3512 = vst [vmem:[#allocation2 + $0x7c] sm:$0xf] %v3413
        %3513 = vst [vmem:[#allocation2 + $0x88] sm:$0xf] %v3414
        %3514 = vst [vmem:[#allocation2 + $0x94] sm:$0xf] %v3415
        %3515 = vst [vmem:[#allocation2 + $0xa0] sm:$0xf] %v3416
        %3516 = vst [vmem:[#allocation2 + $0xac] sm:$0xf] %v3417
        %3517 = vst [vmem:[#allocation2 + $0xb8] sm:$0xf] %v3418
        %3518 = vst [vmem:[#allocation2 + $0xc4] sm:$0xf] %v3419
        %3519 = vst [vmem:[#allocation2 + $0xd0] sm:$0xf] %v3420
        %3520 = vst [vmem:[#allocation2 + $0xdc] sm:$0xf] %v3421
        %3521 = vst [vmem:[#allocation2 + $0xe8] sm:$0xf] %v3422
        %3522 = vst [vmem:[#allocation2 + $0xf4] sm:$0xf] %v3423
        %3523 = vst [vmem:[#allocation2 + $0x100] sm:$0xf] %v3424
        %3524 = vst [vmem:[#allocation2 + $0x10c] sm:$0xf] %v3425
        %3525 = vst [vmem:[#allocation2 + $0x118] sm:$0xf] %v3426
        %3526 = vst [vmem:[#allocation2 + $0x124] sm:$0xf] %v3427
        %3527 = vst [vmem:[#allocation2 + $0x130] sm:$0xf] %v3428
        %3528 = vst [vmem:[#allocation2 + $0x13c] sm:$0xf] %v3429
        %3529 = vst [vmem:[#allocation2 + $0x148] sm:$0xf] %v3430
        %3530 = vst [vmem:[#allocation2 + $0x154] sm:$0xf] %v3494
        %3531 = vst [vmem:[#allocation2 + $0x160] sm:$0xf] %v3495
        %3532 = vst [vmem:[#allocation2 + $0x16c] sm:$0xf] %v3496
        %3533 = vst [vmem:[#allocation2 + $0x178] sm:$0xf] %v3497
        %3534 = vst [vmem:[#allocation2 + $0x8] sm:$0xf] %v3407
        %3535 = vst [vmem:[#allocation2 + $0x14] sm:$0xf] %v3408
        %3536 = vst [vmem:[#allocation2 + $0x20] sm:$0xf] %v3409
        %3537 = vst [vmem:[#allocation2 + $0x2c] sm:$0xf] %v3410
        %3538 = vst [vmem:[#allocation2 + $0x38] sm:$0xf] %v3411
        %3539 = vst [vmem:[#allocation2 + $0x44] sm:$0xf] %v3412
        %3540 = vst [vmem:[#allocation2 + $0x50] sm:$0xf] %v3413
        %3541 = vst [vmem:[#allocation2 + $0x5c] sm:$0xf] %v3414
        %3542 = vst [vmem:[#allocation2 + $0x68] sm:$0xf] %v3415
        %3543 = vst [vmem:[#allocation2 + $0x74] sm:$0xf] %v3416
        %3544 = vst [vmem:[#allocation2 + $0x80] sm:$0xf] %v3417
        %3545 = vst [vmem:[#allocation2 + $0x8c] sm:$0xf] %v3418
        %3546 = vst [vmem:[#allocation2 + $0x98] sm:$0xf] %v3419
        %3547 = vst [vmem:[#allocation2 + $0xa4] sm:$0xf] %v3420
        %3548 = vst [vmem:[#allocation2 + $0xb0] sm:$0xf] %v3421
        %3549 = vst [vmem:[#allocation2 + $0xbc] sm:$0xf] %v3422
        %3550 = vst [vmem:[#allocation2 + $0xc8] sm:$0xf] %v3423
        %3551 = vst [vmem:[#allocation2 + $0xd4] sm:$0xf] %v3424
        %3552 = vst [vmem:[#allocation2 + $0xe0] sm:$0xf] %v3425
        %3553 = vst [vmem:[#allocation2 + $0xec] sm:$0xf] %v3426
        %3554 = vst [vmem:[#allocation2 + $0xf8] sm:$0xf] %v3427
        %3555 = vst [vmem:[#allocation2 + $0x104] sm:$0xf] %v3428
        %3556 = vst [vmem:[#allocation2 + $0x110] sm:$0xf] %v3429
        %3557 = vst [vmem:[#allocation2 + $0x11c] sm:$0xf] %v3430
        %3558 = vst [vmem:[#allocation2 + $0x128] sm:$0xf] %v3494
        %3559 = vst [vmem:[#allocation2 + $0x134] sm:$0xf] %v3495
        %3560 = vst [vmem:[#allocation2 + $0x140] sm:$0xf] %v3496
        %3561 = vst [vmem:[#allocation2 + $0x14c] sm:$0xf] %v3497
        %s3562 = scalar_lea.vmem [#allocation2], 336
        %3563 = vst [vmem:[%s3562 + $0x8] sm:$0xf] 0
        %3564 = vst [vmem:[%s3562 + $0x14] sm:$0xf] 0
        %3565 = vst [vmem:[%s3562 + $0x20] sm:$0xf] 0
        %3566 = vst [vmem:[%s3562 + $0x2c] sm:$0xf] 0
        %v3567 = vld [vmem:[#allocation2] sm:$0xff]
        %v3568 = vld [vmem:[#allocation2 + $0x8] sm:$0xf]
        %v3569 = vld [vmem:[#allocation2 + $0xc] sm:$0xff]
        %v3570 = vld [vmem:[#allocation2 + $0x14] sm:$0xf]
        %v3571 = vld [vmem:[#allocation2 + $0x18] sm:$0xff]
        %v3572 = vld [vmem:[#allocation2 + $0x20] sm:$0xf]
        %v3573 = vld [vmem:[#allocation2 + $0x24] sm:$0xff]
        %v3574 = vld [vmem:[#allocation2 + $0x2c] sm:$0xf]
        %v3575 = vld [vmem:[#allocation2 + $0x30] sm:$0xff]
        %v3576 = vld [vmem:[#allocation2 + $0x38] sm:$0xf]
        %v3577 = vld [vmem:[#allocation2 + $0x3c] sm:$0xff]
        %v3578 = vld [vmem:[#allocation2 + $0x44] sm:$0xf]
        %v3579 = vld [vmem:[#allocation2 + $0x48] sm:$0xff]
        %v3580 = vld [vmem:[#allocation2 + $0x50] sm:$0xf]
        %v3581 = vld [vmem:[#allocation2 + $0x54] sm:$0xff]
        %v3582 = vld [vmem:[#allocation2 + $0x5c] sm:$0xf]
        %v3583 = vld [vmem:[#allocation2 + $0x60] sm:$0xff]
        %v3584 = vld [vmem:[#allocation2 + $0x68] sm:$0xf]
        %v3585 = vld [vmem:[#allocation2 + $0x6c] sm:$0xff]
        %v3586 = vld [vmem:[#allocation2 + $0x74] sm:$0xf]
        %v3587 = vld [vmem:[#allocation2 + $0x78] sm:$0xff]
        %v3588 = vld [vmem:[#allocation2 + $0x80] sm:$0xf]
        %v3589 = vld [vmem:[#allocation2 + $0x84] sm:$0xff]
        %v3590 = vld [vmem:[#allocation2 + $0x8c] sm:$0xf]
        %v3591 = vld [vmem:[#allocation2 + $0x90] sm:$0xff]
        %v3592 = vld [vmem:[#allocation2 + $0x98] sm:$0xf]
        %v3593 = vld [vmem:[#allocation2 + $0x9c] sm:$0xff]
        %v3594 = vld [vmem:[#allocation2 + $0xa4] sm:$0xf]
        %v3595 = vld [vmem:[#allocation2 + $0xa8] sm:$0xff]
        %v3596 = vld [vmem:[#allocation2 + $0xb0] sm:$0xf]
        %v3597 = vld [vmem:[#allocation2 + $0xb4] sm:$0xff]
        %v3598 = vld [vmem:[#allocation2 + $0xbc] sm:$0xf]
        %v3599 = vld [vmem:[#allocation2 + $0xc0] sm:$0xff]
        %v3600 = vld [vmem:[#allocation2 + $0xc8] sm:$0xf]
        %v3601 = vld [vmem:[#allocation2 + $0xcc] sm:$0xff]
        %v3602 = vld [vmem:[#allocation2 + $0xd4] sm:$0xf]
        %v3603 = vld [vmem:[#allocation2 + $0xd8] sm:$0xff]
        %v3604 = vld [vmem:[#allocation2 + $0xe0] sm:$0xf]
        %v3605 = vld [vmem:[#allocation2 + $0xe4] sm:$0xff]
        %v3606 = vld [vmem:[#allocation2 + $0xec] sm:$0xf]
        %v3607 = vld [vmem:[#allocation2 + $0xf0] sm:$0xff]
        %v3608 = vld [vmem:[#allocation2 + $0xf8] sm:$0xf]
        %v3609 = vld [vmem:[#allocation2 + $0xfc] sm:$0xff]
        %v3610 = vld [vmem:[#allocation2 + $0x104] sm:$0xf]
        %v3611 = vld [vmem:[#allocation2 + $0x108] sm:$0xff]
        %v3612 = vld [vmem:[#allocation2 + $0x110] sm:$0xf]
        %v3613 = vld [vmem:[#allocation2 + $0x114] sm:$0xff]
        %v3614 = vld [vmem:[#allocation2 + $0x11c] sm:$0xf]
        %v3615 = vld [vmem:[#allocation2 + $0x120] sm:$0xff]
        %v3616 = vld [vmem:[#allocation2 + $0x128] sm:$0xf]
        %v3617 = vld [vmem:[#allocation2 + $0x12c] sm:$0xff]
        %v3618 = vld [vmem:[#allocation2 + $0x134] sm:$0xf]
        %v3619 = vld [vmem:[#allocation2 + $0x138] sm:$0xff]
        %v3620 = vld [vmem:[#allocation2 + $0x140] sm:$0xf]
        %v3621 = vld [vmem:[#allocation2 + $0x144] sm:$0xff]
        %v3622 = vld [vmem:[#allocation2 + $0x14c] sm:$0xf]
        %v3623 = vld [vmem:[#allocation2 + $0x150] sm:$0xff]
        %v3624 = vld [vmem:[#allocation2 + $0x158] sm:$0xf]
        %v3625 = vld [vmem:[#allocation2 + $0x15c] sm:$0xff]
        %v3626 = vld [vmem:[#allocation2 + $0x164] sm:$0xf]
        %v3627 = vld [vmem:[#allocation2 + $0x168] sm:$0xff]
        %v3628 = vld [vmem:[#allocation2 + $0x170] sm:$0xf]
        %v3629 = vld [vmem:[#allocation2 + $0x174] sm:$0xff]
        %v3630 = vld [vmem:[#allocation2 + $0x17c] sm:$0xf]
        %v3631 = vld [vmem:[#allocation9] sm:$0xf]
        %v3632 = vld [vmem:[#allocation9 + $0x4] sm:$0xf]
        %v3633 = vld [vmem:[#allocation9 + $0x8] sm:$0xf]
        %v3634 = vld [vmem:[#allocation9 + $0xc] sm:$0xf]
        %v3635 = vld [vmem:[#allocation9 + $0x10] sm:$0xf]
        %v3636 = vld [vmem:[#allocation9 + $0x14] sm:$0xf]
        %v3637 = vld [vmem:[#allocation9 + $0x18] sm:$0xf]
        %v3638 = vld [vmem:[#allocation9 + $0x1c] sm:$0xf]
        %v3639 = vld [vmem:[#allocation9 + $0x20] sm:$0xf]
        %v3640 = vld [vmem:[#allocation9 + $0x24] sm:$0xf]
        %v3641 = vld [vmem:[#allocation9 + $0x28] sm:$0xf]
        %v3642 = vld [vmem:[#allocation9 + $0x2c] sm:$0xf]
        %v3643 = vld [vmem:[#allocation9 + $0x30] sm:$0xf]
        %v3644 = vld [vmem:[#allocation9 + $0x34] sm:$0xf]
        %v3645 = vld [vmem:[#allocation9 + $0x38] sm:$0xf]
        %v3646 = vld [vmem:[#allocation9 + $0x3c] sm:$0xf]
        %v3647 = vld [vmem:[#allocation9 + $0x40] sm:$0xf]
        %v3648 = vld [vmem:[#allocation9 + $0x44] sm:$0xf]
        %v3649 = vld [vmem:[#allocation9 + $0x48] sm:$0xf]
        %v3650 = vld [vmem:[#allocation9 + $0x4c] sm:$0xf]
        %v3651 = vld [vmem:[#allocation9 + $0x50] sm:$0xf]
        %v3652 = vld [vmem:[#allocation9 + $0x54] sm:$0xf]
        %v3653 = vld [vmem:[#allocation9 + $0x58] sm:$0xf]
        %v3654 = vld [vmem:[#allocation9 + $0x5c] sm:$0xf]
        %v3655 = vld [vmem:[#allocation9 + $0x60] sm:$0xf]
        %v3656 = vld [vmem:[#allocation9 + $0x64] sm:$0xf]
        %v3657 = vld [vmem:[#allocation9 + $0x68] sm:$0xf]
        %v3658 = vld [vmem:[#allocation9 + $0x6c] sm:$0xf]
        %v3659 = vld [vmem:[#allocation9 + $0x70] sm:$0xf]
        %v3660 = vld [vmem:[#allocation9 + $0x74] sm:$0xf]
        %v3661 = vld [vmem:[#allocation9 + $0x78] sm:$0xf]
        %v3662 = vld [vmem:[#allocation9 + $0x7c] sm:$0xf]
        %v3663 = vld [vmem:[#allocation9 + $0x80] sm:$0xf]
        %v3664 = vld [vmem:[#allocation9 + $0x84] sm:$0xf]
        %v3665 = vld [vmem:[#allocation9 + $0x88] sm:$0xf]
        %v3666 = vld [vmem:[#allocation9 + $0x8c] sm:$0xf]
        %v3667 = vld [vmem:[#allocation9 + $0x90] sm:$0xf]
        %v3668 = vld [vmem:[#allocation9 + $0x94] sm:$0xf]
        %v3669 = vld [vmem:[#allocation9 + $0x98] sm:$0xf]
        %v3670 = vld [vmem:[#allocation9 + $0x9c] sm:$0xf]
        %v3671 = vld [vmem:[#allocation9 + $0xa0] sm:$0xf]
        %v3672 = vld [vmem:[#allocation9 + $0xa4] sm:$0xf]
        %v3673 = vld [vmem:[#allocation9 + $0xa8] sm:$0xf]
        %v3674 = vld [vmem:[#allocation9 + $0xac] sm:$0xf]
        %v3675 = vld [vmem:[#allocation9 + $0xb0] sm:$0xf]
        %v3676 = vld [vmem:[#allocation9 + $0xb4] sm:$0xf]
        %v3677 = vld [vmem:[#allocation9 + $0xb8] sm:$0xf]
        %v3678 = vld [vmem:[#allocation9 + $0xbc] sm:$0xf]
        %v3743 = vunpack.c.l.b16 %v3567
        %v3744 = vunpack.c.h.b16 %v3567
        %v3745 = vunpack.c.l.b16 %v3568
        %v3746 = vunpack.c.l.b16 %v3569
        %v3747 = vunpack.c.h.b16 %v3569
        %v3748 = vunpack.c.l.b16 %v3570
        %v3749 = vunpack.c.l.b16 %v3571
        %v3750 = vunpack.c.h.b16 %v3571
        %v3751 = vunpack.c.l.b16 %v3572
        %v3752 = vunpack.c.l.b16 %v3573
        %v3753 = vunpack.c.h.b16 %v3573
        %v3754 = vunpack.c.l.b16 %v3574
        %v3755 = vunpack.c.l.b16 %v3575
        %v3756 = vunpack.c.h.b16 %v3575
        %v3757 = vunpack.c.l.b16 %v3576
        %v3758 = vunpack.c.l.b16 %v3577
        %v3759 = vunpack.c.h.b16 %v3577
        %v3760 = vunpack.c.l.b16 %v3578
        %v3761 = vunpack.c.l.b16 %v3579
        %v3762 = vunpack.c.h.b16 %v3579
        %v3763 = vunpack.c.l.b16 %v3580
        %v3764 = vunpack.c.l.b16 %v3581
        %v3765 = vunpack.c.h.b16 %v3581
        %v3766 = vunpack.c.l.b16 %v3582
        %v3767 = vunpack.c.l.b16 %v3583
        %v3768 = vunpack.c.h.b16 %v3583
        %v3769 = vunpack.c.l.b16 %v3584
        %v3770 = vunpack.c.l.b16 %v3585
        %v3771 = vunpack.c.h.b16 %v3585
        %v3772 = vunpack.c.l.b16 %v3586
        %v3773 = vunpack.c.l.b16 %v3587
        %v3774 = vunpack.c.h.b16 %v3587
        %v3775 = vunpack.c.l.b16 %v3588
        %v3776 = vunpack.c.l.b16 %v3589
        %v3777 = vunpack.c.h.b16 %v3589
        %v3778 = vunpack.c.l.b16 %v3590
        %v3779 = vunpack.c.l.b16 %v3591
        %v3780 = vunpack.c.h.b16 %v3591
        %v3781 = vunpack.c.l.b16 %v3592
        %v3782 = vunpack.c.l.b16 %v3593
        %v3783 = vunpack.c.h.b16 %v3593
        %v3784 = vunpack.c.l.b16 %v3594
        %v3785 = vunpack.c.l.b16 %v3595
        %v3786 = vunpack.c.h.b16 %v3595
        %v3787 = vunpack.c.l.b16 %v3596
        %v3788 = vunpack.c.l.b16 %v3597
        %v3789 = vunpack.c.h.b16 %v3597
        %v3790 = vunpack.c.l.b16 %v3598
        %v3791 = vunpack.c.l.b16 %v3599
        %v3792 = vunpack.c.h.b16 %v3599
        %v3793 = vunpack.c.l.b16 %v3600
        %v3794 = vunpack.c.l.b16 %v3601
        %v3795 = vunpack.c.h.b16 %v3601
        %v3796 = vunpack.c.l.b16 %v3602
        %v3797 = vunpack.c.l.b16 %v3603
        %v3798 = vunpack.c.h.b16 %v3603
        %v3799 = vunpack.c.l.b16 %v3604
        %v3800 = vunpack.c.l.b16 %v3605
        %v3801 = vunpack.c.h.b16 %v3605
        %v3802 = vunpack.c.l.b16 %v3606
        %v3803 = vunpack.c.l.b16 %v3607
        %v3804 = vunpack.c.h.b16 %v3607
        %v3805 = vunpack.c.l.b16 %v3608
        %v3806 = vunpack.c.l.b16 %v3609
        %v3807 = vunpack.c.h.b16 %v3609
        %v3808 = vunpack.c.l.b16 %v3610
        %v3809 = vunpack.c.l.b16 %v3611
        %v3810 = vunpack.c.h.b16 %v3611
        %v3811 = vunpack.c.l.b16 %v3612
        %v3812 = vunpack.c.l.b16 %v3613
        %v3813 = vunpack.c.h.b16 %v3613
        %v3814 = vunpack.c.l.b16 %v3614
        %v3815 = vunpack.c.l.b16 %v3615
        %v3816 = vunpack.c.h.b16 %v3615
        %v3817 = vunpack.c.l.b16 %v3616
        %v3818 = vunpack.c.l.b16 %v3617
        %v3819 = vunpack.c.h.b16 %v3617
        %v3820 = vunpack.c.l.b16 %v3618
        %v3821 = vunpack.c.l.b16 %v3619
        %v3822 = vunpack.c.h.b16 %v3619
        %v3823 = vunpack.c.l.b16 %v3620
        %v3824 = vunpack.c.l.b16 %v3621
        %v3825 = vunpack.c.h.b16 %v3621
        %v3826 = vunpack.c.l.b16 %v3622
        %v3827 = vunpack.c.l.b16 %v3623
        %v3828 = vunpack.c.h.b16 %v3623
        %v3829 = vunpack.c.l.b16 %v3624
        %v3830 = vunpack.c.l.b16 %v3625
        %v3831 = vunpack.c.h.b16 %v3625
        %v3832 = vunpack.c.l.b16 %v3626
        %v3833 = vunpack.c.l.b16 %v3627
        %v3834 = vunpack.c.h.b16 %v3627
        %v3835 = vunpack.c.l.b16 %v3628
        %v3836 = vunpack.c.l.b16 %v3629
        %v3837 = vunpack.c.h.b16 %v3629
        %v3838 = vunpack.c.l.b16 %v3630
        %v3839 = vpack.c.b16 %v3746, %v3743
        %v3840 = vpack.c.b16 %v3747, %v3744
        %v3841 = vpack.c.b16 %v3748, %v3745
        %v3842 = vpack.c.b16 %v3752, %v3749
        %v3843 = vpack.c.b16 %v3753, %v3750
        %v3844 = vpack.c.b16 %v3754, %v3751
        %v3845 = vpack.c.b16 %v3758, %v3755
        %v3846 = vpack.c.b16 %v3759, %v3756
        %v3847 = vpack.c.b16 %v3760, %v3757
        %v3848 = vpack.c.b16 %v3764, %v3761
        %v3849 = vpack.c.b16 %v3765, %v3762
        %v3850 = vpack.c.b16 %v3766, %v3763
        %v3851 = vpack.c.b16 %v3770, %v3767
        %v3852 = vpack.c.b16 %v3771, %v3768
        %v3853 = vpack.c.b16 %v3772, %v3769
        %v3854 = vpack.c.b16 %v3776, %v3773
        %v3855 = vpack.c.b16 %v3777, %v3774
        %v3856 = vpack.c.b16 %v3778, %v3775
        %v3857 = vpack.c.b16 %v3782, %v3779
        %v3858 = vpack.c.b16 %v3783, %v3780
        %v3859 = vpack.c.b16 %v3784, %v3781
        %v3860 = vpack.c.b16 %v3788, %v3785
        %v3861 = vpack.c.b16 %v3789, %v3786
        %v3862 = vpack.c.b16 %v3790, %v3787
        %v3863 = vpack.c.b16 %v3794, %v3791
        %v3864 = vpack.c.b16 %v3795, %v3792
        %v3865 = vpack.c.b16 %v3796, %v3793
        %v3866 = vpack.c.b16 %v3800, %v3797
        %v3867 = vpack.c.b16 %v3801, %v3798
        %v3868 = vpack.c.b16 %v3802, %v3799
        %v3869 = vpack.c.b16 %v3806, %v3803
        %v3870 = vpack.c.b16 %v3807, %v3804
        %v3871 = vpack.c.b16 %v3808, %v3805
        %v3872 = vpack.c.b16 %v3812, %v3809
        %v3873 = vpack.c.b16 %v3813, %v3810
        %v3874 = vpack.c.b16 %v3814, %v3811
        %v3875 = vpack.c.b16 %v3818, %v3815
        %v3876 = vpack.c.b16 %v3819, %v3816
        %v3877 = vpack.c.b16 %v3820, %v3817
        %v3878 = vpack.c.b16 %v3824, %v3821
        %v3879 = vpack.c.b16 %v3825, %v3822
        %v3880 = vpack.c.b16 %v3826, %v3823
        %v3881 = vpack.c.b16 %v3830, %v3827
        %v3882 = vpack.c.b16 %v3831, %v3828
        %v3883 = vpack.c.b16 %v3832, %v3829
        %v3884 = vpack.c.b16 %v3836, %v3833
        %v3885 = vpack.c.b16 %v3837, %v3834
        %v3886 = vpack.c.b16 %v3838, %v3835
        %v3983 = vunpack.c.l.b16 %v3631
        %v3984 = vunpack.c.l.b16 %v3632
        %v3985 = vunpack.c.l.b16 %v3633
        %v3986 = vunpack.c.l.b16 %v3634
        %v3987 = vunpack.c.l.b16 %v3635
        %v3988 = vunpack.c.l.b16 %v3636
        %v3989 = vunpack.c.l.b16 %v3637
        %v3990 = vunpack.c.l.b16 %v3638
        %v3991 = vunpack.c.l.b16 %v3639
        %v3992 = vunpack.c.l.b16 %v3640
        %v3993 = vunpack.c.l.b16 %v3641
        %v3994 = vunpack.c.l.b16 %v3642
        %v3995 = vunpack.c.l.b16 %v3643
        %v3996 = vunpack.c.l.b16 %v3644
        %v3997 = vunpack.c.l.b16 %v3645
        %v3998 = vunpack.c.l.b16 %v3646
        %v3999 = vunpack.c.l.b16 %v3647
        %v4000 = vunpack.c.l.b16 %v3648
        %v4001 = vunpack.c.l.b16 %v3649
        %v4002 = vunpack.c.l.b16 %v3650
        %v4003 = vunpack.c.l.b16 %v3651
        %v4004 = vunpack.c.l.b16 %v3652
        %v4005 = vunpack.c.l.b16 %v3653
        %v4006 = vunpack.c.l.b16 %v3654
        %v4007 = vunpack.c.l.b16 %v3655
        %v4008 = vunpack.c.l.b16 %v3656
        %v4009 = vunpack.c.l.b16 %v3657
        %v4010 = vunpack.c.l.b16 %v3658
        %v4011 = vunpack.c.l.b16 %v3659
        %v4012 = vunpack.c.l.b16 %v3660
        %v4013 = vunpack.c.l.b16 %v3661
        %v4014 = vunpack.c.l.b16 %v3662
        %v4015 = vunpack.c.l.b16 %v3663
        %v4016 = vunpack.c.l.b16 %v3664
        %v4017 = vunpack.c.l.b16 %v3665
        %v4018 = vunpack.c.l.b16 %v3666
        %v4019 = vunpack.c.l.b16 %v3667
        %v4020 = vunpack.c.l.b16 %v3668
        %v4021 = vunpack.c.l.b16 %v3669
        %v4022 = vunpack.c.l.b16 %v3670
        %v4023 = vunpack.c.l.b16 %v3671
        %v4024 = vunpack.c.l.b16 %v3672
        %v4025 = vunpack.c.l.b16 %v3673
        %v4026 = vunpack.c.l.b16 %v3674
        %v4027 = vunpack.c.l.b16 %v3675
        %v4028 = vunpack.c.l.b16 %v3676
        %v4029 = vunpack.c.l.b16 %v3677
        %v4030 = vunpack.c.l.b16 %v3678
        %v4031 = vpack.c.b16 %v3984, %v3983
        %v4032 = vpack.c.b16 %v3986, %v3985
        %v4033 = vpack.c.b16 %v3988, %v3987
        %v4034 = vpack.c.b16 %v3990, %v3989
        %v4035 = vpack.c.b16 %v3992, %v3991
        %v4036 = vpack.c.b16 %v3994, %v3993
        %v4037 = vpack.c.b16 %v3996, %v3995
        %v4038 = vpack.c.b16 %v3998, %v3997
        %v4039 = vpack.c.b16 %v4000, %v3999
        %v4040 = vpack.c.b16 %v4002, %v4001
        %v4041 = vpack.c.b16 %v4004, %v4003
        %v4042 = vpack.c.b16 %v4006, %v4005
        %v4043 = vpack.c.b16 %v4008, %v4007
        %v4044 = vpack.c.b16 %v4010, %v4009
        %v4045 = vpack.c.b16 %v4012, %v4011
        %v4046 = vpack.c.b16 %v4014, %v4013
        %v4047 = vpack.c.b16 %v4016, %v4015
        %v4048 = vpack.c.b16 %v4018, %v4017
        %v4049 = vpack.c.b16 %v4020, %v4019
        %v4050 = vpack.c.b16 %v4022, %v4021
        %v4051 = vpack.c.b16 %v4024, %v4023
        %v4052 = vpack.c.b16 %v4026, %v4025
        %v4053 = vpack.c.b16 %v4028, %v4027
        %v4054 = vpack.c.b16 %v4030, %v4029
        %4079 = vmatprep.subr.bf16.mxu0 0
        %4080 = vmatpush1.bf16.msra.mxu0 %v4038
        %4081 = vmatprep.subr.bf16.mxu0 0
        %4082 = vmatpush1.bf16.msra.mxu0 %v4037
        %4083 = vmatprep.subr.bf16.mxu0 0
        %4084 = vmatpush1.bf16.msra.mxu0 %v4036
        %4085 = vmatprep.subr.bf16.mxu0 0
        %4086 = vmatpush1.bf16.msra.mxu0 %v4035
        %4087 = vmatprep.subr.bf16.mxu0 0
        %4088 = vmatpush1.bf16.msra.mxu0 %v4034
        %4089 = vmatprep.subr.bf16.mxu0 0
        %4090 = vmatpush1.bf16.msra.mxu0 %v4033
        %4091 = vmatprep.subr.bf16.mxu0 0
        %4092 = vmatpush1.bf16.msra.mxu0 %v4032
        %4093 = vmatprep.subr.bf16.mxu0 0
        %4094 = vmatpush1.bf16.msra.mxu0 %v4031
        %4095 = vmatprep.subr.bf16.mxu0 0
        %4096 = vmatpush2.bf16.msra.mxu0 %v4046
        %4097 = vmatprep.subr.bf16.mxu0 0
        %4098 = vmatpush2.bf16.msra.mxu0 %v4045
        %4099 = vmatprep.subr.bf16.mxu0 0
        %4100 = vmatpush2.bf16.msra.mxu0 %v4044
        %4101 = vmatprep.subr.bf16.mxu0 0
        %4102 = vmatpush2.bf16.msra.mxu0 %v4043
        %4103 = vmatprep.subr.bf16.mxu0 0
        %4104 = vmatpush2.bf16.msra.mxu0 %v4042
        %4105 = vmatprep.subr.bf16.mxu0 0
        %4106 = vmatpush2.bf16.msra.mxu0 %v4041
        %4107 = vmatprep.subr.bf16.mxu0 0
        %4108 = vmatpush2.bf16.msra.mxu0 %v4040
        %4109 = vmatprep.subr.bf16.mxu0 0
        %4110 = vmatpush2.bf16.msra.mxu0 %v4039
        %4111 = vmatprep.mubr.bf16.mxu0 %v3840
        %4112 = vmatmul.mubr.bf16.gmra.mxu0 %v3839
        %v4113 = vpop.f32.mrf.mxu0
        %v4114 = vadd.f32 0.0, %v4113
        %v4115 = vpop.f32.mrf.mxu0
        %v4116 = vpop.f32.mrf.mxu0
        %v4117 = vadd.f32 0.0, %v4116
        %v4118 = vpop.f32.mrf.mxu0
        %4119 = vmatprep.mubr.bf16.mxu0 %v3843
        %4120 = vmatmul.mubr.bf16.gmra.mxu0 %v3842
        %v4121 = vpop.f32.mrf.mxu0
        %v4122 = vadd.f32 0.0, %v4121
        %v4123 = vpop.f32.mrf.mxu0
        %v4124 = vpop.f32.mrf.mxu0
        %v4125 = vadd.f32 0.0, %v4124
        %v4126 = vpop.f32.mrf.mxu0
        %4127 = vmatprep.mubr.bf16.mxu0 %v3846
        %4128 = vmatmul.mubr.bf16.gmra.mxu0 %v3845
        %v4129 = vpop.f32.mrf.mxu0
        %v4130 = vadd.f32 0.0, %v4129
        %v4131 = vpop.f32.mrf.mxu0
        %v4132 = vpop.f32.mrf.mxu0
        %v4133 = vadd.f32 0.0, %v4132
        %v4134 = vpop.f32.mrf.mxu0
        %4135 = vmatprep.mubr.bf16.mxu0 %v3849
        %4136 = vmatmul.mubr.bf16.gmra.mxu0 %v3848
        %v4137 = vpop.f32.mrf.mxu0
        %v4138 = vadd.f32 0.0, %v4137
        %v4139 = vpop.f32.mrf.mxu0
        %v4140 = vpop.f32.mrf.mxu0
        %v4141 = vadd.f32 0.0, %v4140
        %v4142 = vpop.f32.mrf.mxu0
        %4143 = vmatprep.mubr.bf16.mxu0 %v3852
        %4144 = vmatmul.mubr.bf16.gmra.mxu0 %v3851
        %v4145 = vpop.f32.mrf.mxu0
        %v4146 = vadd.f32 0.0, %v4145
        %v4147 = vpop.f32.mrf.mxu0
        %v4148 = vpop.f32.mrf.mxu0
        %v4149 = vadd.f32 0.0, %v4148
        %v4150 = vpop.f32.mrf.mxu0
        %4151 = vmatprep.mubr.bf16.mxu0 %v3855
        %4152 = vmatmul.mubr.bf16.gmra.mxu0 %v3854
        %v4153 = vpop.f32.mrf.mxu0
        %v4154 = vadd.f32 0.0, %v4153
        %v4155 = vpop.f32.mrf.mxu0
        %v4156 = vpop.f32.mrf.mxu0
        %v4157 = vadd.f32 0.0, %v4156
        %v4158 = vpop.f32.mrf.mxu0
        %4159 = vmatprep.mubr.bf16.mxu0 %v3858
        %4160 = vmatmul.mubr.bf16.gmra.mxu0 %v3857
        %v4161 = vpop.f32.mrf.mxu0
        %v4162 = vadd.f32 0.0, %v4161
        %v4163 = vpop.f32.mrf.mxu0
        %v4164 = vpop.f32.mrf.mxu0
        %v4165 = vadd.f32 0.0, %v4164
        %v4166 = vpop.f32.mrf.mxu0
        %4167 = vmatprep.mubr.bf16.mxu0 %v3861
        %4168 = vmatmul.mubr.bf16.gmra.mxu0 %v3860
        %v4169 = vpop.f32.mrf.mxu0
        %v4170 = vadd.f32 0.0, %v4169
        %v4171 = vpop.f32.mrf.mxu0
        %v4172 = vpop.f32.mrf.mxu0
        %v4173 = vadd.f32 0.0, %v4172
        %v4174 = vpop.f32.mrf.mxu0
        %4175 = vmatprep.mubr.bf16.mxu0 %v3864
        %4176 = vmatmul.mubr.bf16.gmra.mxu0 %v3863
        %v4177 = vpop.f32.mrf.mxu0
        %v4178 = vadd.f32 0.0, %v4177
        %v4179 = vpop.f32.mrf.mxu0
        %v4180 = vpop.f32.mrf.mxu0
        %v4181 = vadd.f32 0.0, %v4180
        %v4182 = vpop.f32.mrf.mxu0
        %4183 = vmatprep.mubr.bf16.mxu0 %v3867
        %4184 = vmatmul.mubr.bf16.gmra.mxu0 %v3866
        %v4185 = vpop.f32.mrf.mxu0
        %v4186 = vadd.f32 0.0, %v4185
        %v4187 = vpop.f32.mrf.mxu0
        %v4188 = vpop.f32.mrf.mxu0
        %v4189 = vadd.f32 0.0, %v4188
        %v4190 = vpop.f32.mrf.mxu0
        %4191 = vmatprep.mubr.bf16.mxu0 %v3870
        %4192 = vmatmul.mubr.bf16.gmra.mxu0 %v3869
        %v4193 = vpop.f32.mrf.mxu0
        %v4194 = vadd.f32 0.0, %v4193
        %v4195 = vpop.f32.mrf.mxu0
        %v4196 = vpop.f32.mrf.mxu0
        %v4197 = vadd.f32 0.0, %v4196
        %v4198 = vpop.f32.mrf.mxu0
        %4199 = vmatprep.mubr.bf16.mxu0 %v3873
        %4200 = vmatmul.mubr.bf16.gmra.mxu0 %v3872
        %v4201 = vpop.f32.mrf.mxu0
        %v4202 = vadd.f32 0.0, %v4201
        %v4203 = vpop.f32.mrf.mxu0
        %v4204 = vpop.f32.mrf.mxu0
        %v4205 = vadd.f32 0.0, %v4204
        %v4206 = vpop.f32.mrf.mxu0
        %4207 = vmatprep.mubr.bf16.mxu0 %v3876
        %4208 = vmatmul.mubr.bf16.gmra.mxu0 %v3875
        %v4209 = vpop.f32.mrf.mxu0
        %v4210 = vadd.f32 0.0, %v4209
        %v4211 = vpop.f32.mrf.mxu0
        %v4212 = vpop.f32.mrf.mxu0
        %v4213 = vadd.f32 0.0, %v4212
        %v4214 = vpop.f32.mrf.mxu0
        %4215 = vmatprep.mubr.bf16.mxu0 %v3879
        %4216 = vmatmul.mubr.bf16.gmra.mxu0 %v3878
        %v4217 = vpop.f32.mrf.mxu0
        %v4218 = vadd.f32 0.0, %v4217
        %v4219 = vpop.f32.mrf.mxu0
        %v4220 = vpop.f32.mrf.mxu0
        %v4221 = vadd.f32 0.0, %v4220
        %v4222 = vpop.f32.mrf.mxu0
        %4223 = vmatprep.mubr.bf16.mxu0 %v3882
        %4224 = vmatmul.mubr.bf16.gmra.mxu0 %v3881
        %v4225 = vpop.f32.mrf.mxu0
        %v4226 = vadd.f32 0.0, %v4225
        %v4227 = vpop.f32.mrf.mxu0
        %v4228 = vpop.f32.mrf.mxu0
        %v4229 = vadd.f32 0.0, %v4228
        %v4230 = vpop.f32.mrf.mxu0
        %4231 = vmatprep.mubr.bf16.mxu0 %v3885
        %4232 = vmatmul.mubr.bf16.gmra.mxu0 %v3884
        %v4233 = vpop.f32.mrf.mxu0
        %v4234 = vadd.f32 0.0, %v4233
        %v4235 = vpop.f32.mrf.mxu0
        %v4236 = vpop.f32.mrf.mxu0
        %v4237 = vadd.f32 0.0, %v4236
        %v4238 = vpop.f32.mrf.mxu0
        %4239 = vdwg.mxu0
        %4240 = vmatprep.subr.bf16.mxu0 0
        %4241 = vmatpush1.bf16.msra.mxu0 %v4054
        %4242 = vmatprep.subr.bf16.mxu0 0
        %4243 = vmatpush1.bf16.msra.mxu0 %v4053
        %4244 = vmatprep.subr.bf16.mxu0 0
        %4245 = vmatpush1.bf16.msra.mxu0 %v4052
        %4246 = vmatprep.subr.bf16.mxu0 0
        %4247 = vmatpush1.bf16.msra.mxu0 %v4051
        %4248 = vmatprep.subr.bf16.mxu0 0
        %4249 = vmatpush1.bf16.msra.mxu0 %v4050
        %4250 = vmatprep.subr.bf16.mxu0 0
        %4251 = vmatpush1.bf16.msra.mxu0 %v4049
        %4252 = vmatprep.subr.bf16.mxu0 0
        %4253 = vmatpush1.bf16.msra.mxu0 %v4048
        %4254 = vmatprep.subr.bf16.mxu0 0
        %4255 = vmatpush1.bf16.msra.mxu0 %v4047
        %4256 = vmatprep.subr.bf16.mxu0 0
        %4257 = vmatpush2.bf16.msra.mxu0 0
        %4258 = vmatprep.subr.bf16.mxu0 0
        %4259 = vmatpush2.bf16.msra.mxu0 0
        %4260 = vmatprep.subr.bf16.mxu0 0
        %4261 = vmatpush2.bf16.msra.mxu0 0
        %4262 = vmatprep.subr.bf16.mxu0 0
        %4263 = vmatpush2.bf16.msra.mxu0 0
        %4264 = vmatprep.subr.bf16.mxu0 0
        %4265 = vmatpush2.bf16.msra.mxu0 0
        %4266 = vmatprep.subr.bf16.mxu0 0
        %4267 = vmatpush2.bf16.msra.mxu0 0
        %4268 = vmatprep.subr.bf16.mxu0 0
        %4269 = vmatpush2.bf16.msra.mxu0 0
        %4270 = vmatprep.subr.bf16.mxu0 0
        %4271 = vmatpush2.bf16.msra.mxu0 0
        %4272 = vmatprep.mubr.bf16.mxu0 0
        %4273 = vmatmul.mubr.bf16.gmra.mxu0 %v3841
        %v4274 = vpop.f32.mrf.mxu0
        %v4275 = vadd.f32 %v4114, %v4274
        %v4276 = vpop.f32.mrf.mxu0
        %v4277 = vpop.f32.mrf.mxu0
        %v4278 = vadd.f32 %v4117, %v4277
        %v4279 = vpop.f32.mrf.mxu0
        %4280 = vmatprep.mubr.bf16.mxu0 0
        %4281 = vmatmul.mubr.bf16.gmra.mxu0 %v3844
        %v4282 = vpop.f32.mrf.mxu0
        %v4283 = vadd.f32 %v4122, %v4282
        %v4284 = vpop.f32.mrf.mxu0
        %v4285 = vpop.f32.mrf.mxu0
        %v4286 = vadd.f32 %v4125, %v4285
        %v4287 = vpop.f32.mrf.mxu0
        %4288 = vmatprep.mubr.bf16.mxu0 0
        %4289 = vmatmul.mubr.bf16.gmra.mxu0 %v3847
        %v4290 = vpop.f32.mrf.mxu0
        %v4291 = vadd.f32 %v4130, %v4290
        %v4292 = vpop.f32.mrf.mxu0
        %v4293 = vpop.f32.mrf.mxu0
        %v4294 = vadd.f32 %v4133, %v4293
        %v4295 = vpop.f32.mrf.mxu0
        %4296 = vmatprep.mubr.bf16.mxu0 0
        %4297 = vmatmul.mubr.bf16.gmra.mxu0 %v3850
        %v4298 = vpop.f32.mrf.mxu0
        %v4299 = vadd.f32 %v4138, %v4298
        %v4300 = vpop.f32.mrf.mxu0
        %v4301 = vpop.f32.mrf.mxu0
        %v4302 = vadd.f32 %v4141, %v4301
        %v4303 = vpop.f32.mrf.mxu0
        %4304 = vmatprep.mubr.bf16.mxu0 0
        %4305 = vmatmul.mubr.bf16.gmra.mxu0 %v3853
        %v4306 = vpop.f32.mrf.mxu0
        %v4307 = vadd.f32 %v4146, %v4306
        %v4308 = vpop.f32.mrf.mxu0
        %v4309 = vpop.f32.mrf.mxu0
        %v4310 = vadd.f32 %v4149, %v4309
        %v4311 = vpop.f32.mrf.mxu0
        %4312 = vmatprep.mubr.bf16.mxu0 0
        %4313 = vmatmul.mubr.bf16.gmra.mxu0 %v3856
        %v4314 = vpop.f32.mrf.mxu0
        %v4315 = vadd.f32 %v4154, %v4314
        %v4316 = vpop.f32.mrf.mxu0
        %v4317 = vpop.f32.mrf.mxu0
        %v4318 = vadd.f32 %v4157, %v4317
        %v4319 = vpop.f32.mrf.mxu0
        %4320 = vmatprep.mubr.bf16.mxu0 0
        %4321 = vmatmul.mubr.bf16.gmra.mxu0 %v3859
        %v4322 = vpop.f32.mrf.mxu0
        %v4323 = vadd.f32 %v4162, %v4322
        %v4324 = vpop.f32.mrf.mxu0
        %v4325 = vpop.f32.mrf.mxu0
        %v4326 = vadd.f32 %v4165, %v4325
        %v4327 = vpop.f32.mrf.mxu0
        %4328 = vmatprep.mubr.bf16.mxu0 0
        %4329 = vmatmul.mubr.bf16.gmra.mxu0 %v3862
        %v4330 = vpop.f32.mrf.mxu0
        %v4331 = vadd.f32 %v4170, %v4330
        %v4332 = vpop.f32.mrf.mxu0
        %v4333 = vpop.f32.mrf.mxu0
        %v4334 = vadd.f32 %v4173, %v4333
        %v4335 = vpop.f32.mrf.mxu0
        %4336 = vmatprep.mubr.bf16.mxu0 0
        %4337 = vmatmul.mubr.bf16.gmra.mxu0 %v3865
        %v4338 = vpop.f32.mrf.mxu0
        %v4339 = vadd.f32 %v4178, %v4338
        %v4340 = vpop.f32.mrf.mxu0
        %v4341 = vpop.f32.mrf.mxu0
        %v4342 = vadd.f32 %v4181, %v4341
        %v4343 = vpop.f32.mrf.mxu0
        %4344 = vmatprep.mubr.bf16.mxu0 0
        %4345 = vmatmul.mubr.bf16.gmra.mxu0 %v3868
        %v4346 = vpop.f32.mrf.mxu0
        %v4347 = vadd.f32 %v4186, %v4346
        %v4348 = vpop.f32.mrf.mxu0
        %v4349 = vpop.f32.mrf.mxu0
        %v4350 = vadd.f32 %v4189, %v4349
        %v4351 = vpop.f32.mrf.mxu0
        %4352 = vmatprep.mubr.bf16.mxu0 0
        %4353 = vmatmul.mubr.bf16.gmra.mxu0 %v3871
        %v4354 = vpop.f32.mrf.mxu0
        %v4355 = vadd.f32 %v4194, %v4354
        %v4356 = vpop.f32.mrf.mxu0
        %v4357 = vpop.f32.mrf.mxu0
        %v4358 = vadd.f32 %v4197, %v4357
        %v4359 = vpop.f32.mrf.mxu0
        %4360 = vmatprep.mubr.bf16.mxu0 0
        %4361 = vmatmul.mubr.bf16.gmra.mxu0 %v3874
        %v4362 = vpop.f32.mrf.mxu0
        %v4363 = vadd.f32 %v4202, %v4362
        %v4364 = vpop.f32.mrf.mxu0
        %v4365 = vpop.f32.mrf.mxu0
        %v4366 = vadd.f32 %v4205, %v4365
        %v4367 = vpop.f32.mrf.mxu0
        %4368 = vmatprep.mubr.bf16.mxu0 0
        %4369 = vmatmul.mubr.bf16.gmra.mxu0 %v3877
        %v4370 = vpop.f32.mrf.mxu0
        %v4371 = vadd.f32 %v4210, %v4370
        %v4372 = vpop.f32.mrf.mxu0
        %v4373 = vpop.f32.mrf.mxu0
        %v4374 = vadd.f32 %v4213, %v4373
        %v4375 = vpop.f32.mrf.mxu0
        %4376 = vmatprep.mubr.bf16.mxu0 0
        %4377 = vmatmul.mubr.bf16.gmra.mxu0 %v3880
        %v4378 = vpop.f32.mrf.mxu0
        %v4379 = vadd.f32 %v4218, %v4378
        %v4380 = vpop.f32.mrf.mxu0
        %v4381 = vpop.f32.mrf.mxu0
        %v4382 = vadd.f32 %v4221, %v4381
        %v4383 = vpop.f32.mrf.mxu0
        %4384 = vmatprep.mubr.bf16.mxu0 0
        %4385 = vmatmul.mubr.bf16.gmra.mxu0 %v3883
        %v4386 = vpop.f32.mrf.mxu0
        %v4387 = vadd.f32 %v4226, %v4386
        %v4388 = vpop.f32.mrf.mxu0
        %v4389 = vpop.f32.mrf.mxu0
        %v4390 = vadd.f32 %v4229, %v4389
        %v4391 = vpop.f32.mrf.mxu0
        %4392 = vmatprep.mubr.bf16.mxu0 0
        %4393 = vmatmul.mubr.bf16.gmra.mxu0 %v3886
        %v4394 = vpop.f32.mrf.mxu0
        %v4395 = vadd.f32 %v4234, %v4394
        %v4396 = vpop.f32.mrf.mxu0
        %v4397 = vpop.f32.mrf.mxu0
        %v4398 = vadd.f32 %v4237, %v4397
        %v4399 = vpop.f32.mrf.mxu0
        %4400 = vdwg.mxu0
        %v4401 = vld [vmem:[%s6] sm:$0x1]
        %v4403 = vlaneseq
        %v4404 = vshrl.u32 %v4403, 7
        %v4405 = vsub.s32 0, %v4404
        %v4406 = vrot.slane %v4401, %v4405
        %v4408 = vadd.f32 %v4275, %v4406
        %v4409 = vadd.f32 %v4278, %v4406
        %v4410 = vadd.f32 %v4283, %v4406
        %v4411 = vadd.f32 %v4286, %v4406
        %v4412 = vadd.f32 %v4291, %v4406
        %v4413 = vadd.f32 %v4294, %v4406
        %v4414 = vadd.f32 %v4299, %v4406
        %v4415 = vadd.f32 %v4302, %v4406
        %v4416 = vadd.f32 %v4307, %v4406
        %v4417 = vadd.f32 %v4310, %v4406
        %v4418 = vadd.f32 %v4315, %v4406
        %v4419 = vadd.f32 %v4318, %v4406
        %v4420 = vadd.f32 %v4323, %v4406
        %v4421 = vadd.f32 %v4326, %v4406
        %v4422 = vadd.f32 %v4331, %v4406
        %v4423 = vadd.f32 %v4334, %v4406
        %v4424 = vadd.f32 %v4339, %v4406
        %v4425 = vadd.f32 %v4342, %v4406
        %v4426 = vadd.f32 %v4347, %v4406
        %v4427 = vadd.f32 %v4350, %v4406
        %v4428 = vadd.f32 %v4355, %v4406
        %v4429 = vadd.f32 %v4358, %v4406
        %v4430 = vadd.f32 %v4363, %v4406
        %v4431 = vadd.f32 %v4366, %v4406
        %v4432 = vadd.f32 %v4371, %v4406
        %v4433 = vadd.f32 %v4374, %v4406
        %v4434 = vadd.f32 %v4379, %v4406
        %v4435 = vadd.f32 %v4382, %v4406
        %v4436 = vadd.f32 %v4387, %v4406
        %v4437 = vadd.f32 %v4390, %v4406
        %v4438 = vadd.f32 %v4395, %v4406
        %v4439 = vadd.f32 %v4398, %v4406
        %v4440 = vmax.f32 %v4408, 0.0
        %v4441 = vmax.f32 %v4409, 0.0
        %v4442 = vmax.f32 %v4410, 0.0
        %v4443 = vmax.f32 %v4411, 0.0
        %v4444 = vmax.f32 %v4412, 0.0
        %v4445 = vmax.f32 %v4413, 0.0
        %v4446 = vmax.f32 %v4414, 0.0
        %v4447 = vmax.f32 %v4415, 0.0
        %v4448 = vmax.f32 %v4416, 0.0
        %v4449 = vmax.f32 %v4417, 0.0
        %v4450 = vmax.f32 %v4418, 0.0
        %v4451 = vmax.f32 %v4419, 0.0
        %v4452 = vmax.f32 %v4420, 0.0
        %v4453 = vmax.f32 %v4421, 0.0
        %v4454 = vmax.f32 %v4422, 0.0
        %v4455 = vmax.f32 %v4423, 0.0
        %v4456 = vmax.f32 %v4424, 0.0
        %v4457 = vmax.f32 %v4425, 0.0
        %v4458 = vmax.f32 %v4426, 0.0
        %v4459 = vmax.f32 %v4427, 0.0
        %v4460 = vmax.f32 %v4428, 0.0
        %v4461 = vmax.f32 %v4429, 0.0
        %v4462 = vmax.f32 %v4430, 0.0
        %v4463 = vmax.f32 %v4431, 0.0
        %v4464 = vmax.f32 %v4432, 0.0
        %v4465 = vmax.f32 %v4433, 0.0
        %v4466 = vmax.f32 %v4434, 0.0
        %v4467 = vmax.f32 %v4435, 0.0
        %v4468 = vmax.f32 %v4436, 0.0
        %v4469 = vmax.f32 %v4437, 0.0
        %v4470 = vmax.f32 %v4438, 0.0
        %v4471 = vmax.f32 %v4439, 0.0
        %v4472 = vpack.c.bf16 %v4441, %v4440
        %v4473 = vpack.c.bf16 %v4443, %v4442
        %v4474 = vpack.c.bf16 %v4445, %v4444
        %v4475 = vpack.c.bf16 %v4447, %v4446
        %v4476 = vpack.c.bf16 %v4449, %v4448
        %v4477 = vpack.c.bf16 %v4451, %v4450
        %v4478 = vpack.c.bf16 %v4453, %v4452
        %v4479 = vpack.c.bf16 %v4455, %v4454
        %v4480 = vpack.c.bf16 %v4457, %v4456
        %v4481 = vpack.c.bf16 %v4459, %v4458
        %v4482 = vpack.c.bf16 %v4461, %v4460
        %v4483 = vpack.c.bf16 %v4463, %v4462
        %v4484 = vpack.c.bf16 %v4465, %v4464
        %v4485 = vpack.c.bf16 %v4467, %v4466
        %v4486 = vpack.c.bf16 %v4469, %v4468
        %v4487 = vpack.c.bf16 %v4471, %v4470
        %4488 = vst [vmem:[#allocation2] sm:$0x1] 0
        %4489 = vst [vmem:[#allocation2 + $0x18] sm:$0x1] 0
        %4490 = vst [vmem:[#allocation2 + $0x30] sm:$0x1] 0
        %4491 = vst [vmem:[#allocation2 + $0x48] sm:$0x1] 0
        %4492 = vst [vmem:[#allocation2 + $0x60] sm:$0x1] 0
        %4493 = vst [vmem:[#allocation2 + $0x78] sm:$0x1] 0
        %4494 = vst [vmem:[#allocation2 + $0x90] sm:$0x1] 0
        %4495 = vst [vmem:[#allocation2 + $0xa8] sm:$0x1] 0
        %4496 = vst [vmem:[#allocation2 + $0xc0] sm:$0x1] 0
        %4497 = vst [vmem:[#allocation2 + $0xd8] sm:$0x1] 0
        %4498 = vst [vmem:[#allocation2 + $0xf0] sm:$0x1] 0
        %4499 = vst [vmem:[#allocation2 + $0x108] sm:$0x1] 0
        %4500 = vst [vmem:[#allocation2 + $0x120] sm:$0x1] 0
        %4501 = vst [vmem:[#allocation2 + $0x138] sm:$0x1] 0
        %4502 = vst [vmem:[#allocation2 + $0x150] sm:$0x1] 0
        %4503 = vst [vmem:[#allocation2 + $0x168] sm:$0x1] 0
        %v4520 = vunpack.c.l.b16 %v4472
        %v4521 = vunpack.c.h.b16 %v4472
        %v4522 = vunpack.c.l.b16 %v4473
        %v4523 = vunpack.c.h.b16 %v4473
        %v4524 = vunpack.c.l.b16 %v4474
        %v4525 = vunpack.c.h.b16 %v4474
        %v4526 = vunpack.c.l.b16 %v4475
        %v4527 = vunpack.c.h.b16 %v4475
        %v4528 = vunpack.c.l.b16 %v4476
        %v4529 = vunpack.c.h.b16 %v4476
        %v4530 = vunpack.c.l.b16 %v4477
        %v4531 = vunpack.c.h.b16 %v4477
        %v4532 = vunpack.c.l.b16 %v4478
        %v4533 = vunpack.c.h.b16 %v4478
        %v4534 = vunpack.c.l.b16 %v4479
        %v4535 = vunpack.c.h.b16 %v4479
        %v4536 = vunpack.c.l.b16 %v4480
        %v4537 = vunpack.c.h.b16 %v4480
        %v4538 = vunpack.c.l.b16 %v4481
        %v4539 = vunpack.c.h.b16 %v4481
        %v4540 = vunpack.c.l.b16 %v4482
        %v4541 = vunpack.c.h.b16 %v4482
        %v4542 = vunpack.c.l.b16 %v4483
        %v4543 = vunpack.c.h.b16 %v4483
        %v4544 = vunpack.c.l.b16 %v4484
        %v4545 = vunpack.c.h.b16 %v4484
        %v4546 = vunpack.c.l.b16 %v4485
        %v4547 = vunpack.c.h.b16 %v4485
        %v4548 = vunpack.c.l.b16 %v4486
        %v4549 = vunpack.c.h.b16 %v4486
        %v4550 = vunpack.c.l.b16 %v4487
        %v4551 = vunpack.c.h.b16 %v4487
        %v4552 = vpack.c.b16 %v4520, %v4520
        %v4553 = vpack.c.b16 %v4521, %v4521
        %v4554 = vpack.c.b16 %v4522, %v4522
        %v4555 = vpack.c.b16 %v4523, %v4523
        %v4556 = vpack.c.b16 %v4524, %v4524
        %v4557 = vpack.c.b16 %v4525, %v4525
        %v4558 = vpack.c.b16 %v4526, %v4526
        %v4559 = vpack.c.b16 %v4527, %v4527
        %v4560 = vpack.c.b16 %v4528, %v4528
        %v4561 = vpack.c.b16 %v4529, %v4529
        %v4562 = vpack.c.b16 %v4530, %v4530
        %v4563 = vpack.c.b16 %v4531, %v4531
        %v4564 = vpack.c.b16 %v4532, %v4532
        %v4565 = vpack.c.b16 %v4533, %v4533
        %v4566 = vpack.c.b16 %v4534, %v4534
        %v4567 = vpack.c.b16 %v4535, %v4535
        %v4568 = vpack.c.b16 %v4536, %v4536
        %v4569 = vpack.c.b16 %v4537, %v4537
        %v4570 = vpack.c.b16 %v4538, %v4538
        %v4571 = vpack.c.b16 %v4539, %v4539
        %v4572 = vpack.c.b16 %v4540, %v4540
        %v4573 = vpack.c.b16 %v4541, %v4541
        %v4574 = vpack.c.b16 %v4542, %v4542
        %v4575 = vpack.c.b16 %v4543, %v4543
        %v4576 = vpack.c.b16 %v4544, %v4544
        %v4577 = vpack.c.b16 %v4545, %v4545
        %v4578 = vpack.c.b16 %v4546, %v4546
        %v4579 = vpack.c.b16 %v4547, %v4547
        %v4580 = vpack.c.b16 %v4548, %v4548
        %v4581 = vpack.c.b16 %v4549, %v4549
        %v4582 = vpack.c.b16 %v4550, %v4550
        %v4583 = vpack.c.b16 %v4551, %v4551
        %vm4584 = vcmask 1044484
        %vm4585 = vmor %vm1589, %vm4584
        %v4586 = vrot.slane %v4552, 7
        %v4587 = vrot.slane %v4586, 4
        %v4588 = vrot.slane %v4553, 7
        %v4589 = vsel %vm4585, %v4587, %v4588
        %v4590 = vrot.slane %v4554, 7
        %v4591 = vrot.slane %v4590, 4
        %v4592 = vrot.slane %v4555, 7
        %v4593 = vsel %vm4585, %v4591, %v4592
        %v4594 = vrot.slane %v4556, 7
        %v4595 = vrot.slane %v4594, 4
        %v4596 = vrot.slane %v4557, 7
        %v4597 = vsel %vm4585, %v4595, %v4596
        %v4598 = vrot.slane %v4558, 7
        %v4599 = vrot.slane %v4598, 4
        %v4600 = vrot.slane %v4559, 7
        %v4601 = vsel %vm4585, %v4599, %v4600
        %v4602 = vrot.slane %v4560, 7
        %v4603 = vrot.slane %v4602, 4
        %v4604 = vrot.slane %v4561, 7
        %v4605 = vsel %vm4585, %v4603, %v4604
        %v4606 = vrot.slane %v4562, 7
        %v4607 = vrot.slane %v4606, 4
        %v4608 = vrot.slane %v4563, 7
        %v4609 = vsel %vm4585, %v4607, %v4608
        %v4610 = vrot.slane %v4564, 7
        %v4611 = vrot.slane %v4610, 4
        %v4612 = vrot.slane %v4565, 7
        %v4613 = vsel %vm4585, %v4611, %v4612
        %v4614 = vrot.slane %v4566, 7
        %v4615 = vrot.slane %v4614, 4
        %v4616 = vrot.slane %v4567, 7
        %v4617 = vsel %vm4585, %v4615, %v4616
        %v4618 = vrot.slane %v4568, 7
        %v4619 = vrot.slane %v4618, 4
        %v4620 = vrot.slane %v4569, 7
        %v4621 = vsel %vm4585, %v4619, %v4620
        %v4622 = vrot.slane %v4570, 7
        %v4623 = vrot.slane %v4622, 4
        %v4624 = vrot.slane %v4571, 7
        %v4625 = vsel %vm4585, %v4623, %v4624
        %v4626 = vrot.slane %v4572, 7
        %v4627 = vrot.slane %v4626, 4
        %v4628 = vrot.slane %v4573, 7
        %v4629 = vsel %vm4585, %v4627, %v4628
        %v4630 = vrot.slane %v4574, 7
        %v4631 = vrot.slane %v4630, 4
        %v4632 = vrot.slane %v4575, 7
        %v4633 = vsel %vm4585, %v4631, %v4632
        %v4634 = vrot.slane %v4576, 7
        %v4635 = vrot.slane %v4634, 4
        %v4636 = vrot.slane %v4577, 7
        %v4637 = vsel %vm4585, %v4635, %v4636
        %v4638 = vrot.slane %v4578, 7
        %v4639 = vrot.slane %v4638, 4
        %v4640 = vrot.slane %v4579, 7
        %v4641 = vsel %vm4585, %v4639, %v4640
        %v4642 = vrot.slane %v4580, 7
        %v4643 = vrot.slane %v4642, 4
        %v4644 = vrot.slane %v4581, 7
        %v4645 = vsel %vm4585, %v4643, %v4644
        %v4646 = vrot.slane %v4582, 7
        %v4647 = vrot.slane %v4646, 4
        %v4648 = vrot.slane %v4583, 7
        %v4649 = vsel %vm4585, %v4647, %v4648
        %4682 = vst [vmem:[#allocation2] sm:$0xe] %v4586
        %4683 = vst [vmem:[#allocation2 + $0xc] sm:$0xf] %v4589
        %4684 = vst [vmem:[#allocation2 + $0x18] sm:$0xe] %v4590
        %4685 = vst [vmem:[#allocation2 + $0x24] sm:$0xf] %v4593
        %4686 = vst [vmem:[#allocation2 + $0x30] sm:$0xe] %v4594
        %4687 = vst [vmem:[#allocation2 + $0x3c] sm:$0xf] %v4597
        %4688 = vst [vmem:[#allocation2 + $0x48] sm:$0xe] %v4598
        %4689 = vst [vmem:[#allocation2 + $0x54] sm:$0xf] %v4601
        %4690 = vst [vmem:[#allocation2 + $0x60] sm:$0xe] %v4602
        %4691 = vst [vmem:[#allocation2 + $0x6c] sm:$0xf] %v4605
        %4692 = vst [vmem:[#allocation2 + $0x78] sm:$0xe] %v4606
        %4693 = vst [vmem:[#allocation2 + $0x84] sm:$0xf] %v4609
        %4694 = vst [vmem:[#allocation2 + $0x90] sm:$0xe] %v4610
        %4695 = vst [vmem:[#allocation2 + $0x9c] sm:$0xf] %v4613
        %4696 = vst [vmem:[#allocation2 + $0xa8] sm:$0xe] %v4614
        %4697 = vst [vmem:[#allocation2 + $0xb4] sm:$0xf] %v4617
        %4698 = vst [vmem:[#allocation2 + $0xc0] sm:$0xe] %v4618
        %4699 = vst [vmem:[#allocation2 + $0xcc] sm:$0xf] %v4621
        %4700 = vst [vmem:[#allocation2 + $0xd8] sm:$0xe] %v4622
        %4701 = vst [vmem:[#allocation2 + $0xe4] sm:$0xf] %v4625
        %4702 = vst [vmem:[#allocation2 + $0xf0] sm:$0xe] %v4626
        %4703 = vst [vmem:[#allocation2 + $0xfc] sm:$0xf] %v4629
        %4704 = vst [vmem:[#allocation2 + $0x108] sm:$0xe] %v4630
        %4705 = vst [vmem:[#allocation2 + $0x114] sm:$0xf] %v4633
        %4706 = vst [vmem:[#allocation2 + $0x120] sm:$0xe] %v4634
        %4707 = vst [vmem:[#allocation2 + $0x12c] sm:$0xf] %v4637
        %4708 = vst [vmem:[#allocation2 + $0x138] sm:$0xe] %v4638
        %4709 = vst [vmem:[#allocation2 + $0x144] sm:$0xf] %v4641
        %4710 = vst [vmem:[#allocation2 + $0x150] sm:$0xe] %v4642
        %4711 = vst [vmem:[#allocation2 + $0x15c] sm:$0xf] %v4645
        %4712 = vst [vmem:[#allocation2 + $0x168] sm:$0xe] %v4646
        %4713 = vst [vmem:[#allocation2 + $0x174] sm:$0xf] %v4649
        %4746 = vst [vmem:[#allocation2 + $0x4] sm:$0xf] %v4552
        %4747 = vst [vmem:[#allocation2 + $0x10] sm:$0xf] %v4553
        %4748 = vst [vmem:[#allocation2 + $0x1c] sm:$0xf] %v4554
        %4749 = vst [vmem:[#allocation2 + $0x28] sm:$0xf] %v4555
        %4750 = vst [vmem:[#allocation2 + $0x34] sm:$0xf] %v4556
        %4751 = vst [vmem:[#allocation2 + $0x40] sm:$0xf] %v4557
        %4752 = vst [vmem:[#allocation2 + $0x4c] sm:$0xf] %v4558
        %4753 = vst [vmem:[#allocation2 + $0x58] sm:$0xf] %v4559
        %4754 = vst [vmem:[#allocation2 + $0x64] sm:$0xf] %v4560
        %4755 = vst [vmem:[#allocation2 + $0x70] sm:$0xf] %v4561
        %4756 = vst [vmem:[#allocation2 + $0x7c] sm:$0xf] %v4562
        %4757 = vst [vmem:[#allocation2 + $0x88] sm:$0xf] %v4563
        %4758 = vst [vmem:[#allocation2 + $0x94] sm:$0xf] %v4564
        %4759 = vst [vmem:[#allocation2 + $0xa0] sm:$0xf] %v4565
        %4760 = vst [vmem:[#allocation2 + $0xac] sm:$0xf] %v4566
        %4761 = vst [vmem:[#allocation2 + $0xb8] sm:$0xf] %v4567
        %4762 = vst [vmem:[#allocation2 + $0xc4] sm:$0xf] %v4568
        %4763 = vst [vmem:[#allocation2 + $0xd0] sm:$0xf] %v4569
        %4764 = vst [vmem:[#allocation2 + $0xdc] sm:$0xf] %v4570
        %4765 = vst [vmem:[#allocation2 + $0xe8] sm:$0xf] %v4571
        %4766 = vst [vmem:[#allocation2 + $0xf4] sm:$0xf] %v4572
        %4767 = vst [vmem:[#allocation2 + $0x100] sm:$0xf] %v4573
        %4768 = vst [vmem:[#allocation2 + $0x10c] sm:$0xf] %v4574
        %4769 = vst [vmem:[#allocation2 + $0x118] sm:$0xf] %v4575
        %4770 = vst [vmem:[#allocation2 + $0x124] sm:$0xf] %v4576
        %4771 = vst [vmem:[#allocation2 + $0x130] sm:$0xf] %v4577
        %4772 = vst [vmem:[#allocation2 + $0x13c] sm:$0xf] %v4578
        %4773 = vst [vmem:[#allocation2 + $0x148] sm:$0xf] %v4579
        %4774 = vst [vmem:[#allocation2 + $0x154] sm:$0xf] %v4580
        %4775 = vst [vmem:[#allocation2 + $0x160] sm:$0xf] %v4581
        %4776 = vst [vmem:[#allocation2 + $0x16c] sm:$0xf] %v4582
        %4777 = vst [vmem:[#allocation2 + $0x178] sm:$0xf] %v4583
        %vm4778 = vcmask 1042432
        %vm4779 = vcmask 1046532
        %vm4780 = vmor %vm4778, %vm4779
        %v4781 = vrot.slane %v4552, 5
        %v4782 = vrot.slane %v4781, 4
        %v4783 = vrot.slane %v4553, 5
        %v4784 = vsel %vm4780, %v4782, %v4783
        %v4785 = vrot.slane %v4783, 4
        %v4786 = vrot.slane %v4554, 5
        %v4787 = vrot.slane %v4786, 4
        %v4788 = vrot.slane %v4555, 5
        %v4789 = vsel %vm4780, %v4787, %v4788
        %v4790 = vrot.slane %v4788, 4
        %v4791 = vrot.slane %v4556, 5
        %v4792 = vrot.slane %v4791, 4
        %v4793 = vrot.slane %v4557, 5
        %v4794 = vsel %vm4780, %v4792, %v4793
        %v4795 = vrot.slane %v4793, 4
        %v4796 = vrot.slane %v4558, 5
        %v4797 = vrot.slane %v4796, 4
        %v4798 = vrot.slane %v4559, 5
        %v4799 = vsel %vm4780, %v4797, %v4798
        %v4800 = vrot.slane %v4798, 4
        %v4801 = vrot.slane %v4560, 5
        %v4802 = vrot.slane %v4801, 4
        %v4803 = vrot.slane %v4561, 5
        %v4804 = vsel %vm4780, %v4802, %v4803
        %v4805 = vrot.slane %v4803, 4
        %v4806 = vrot.slane %v4562, 5
        %v4807 = vrot.slane %v4806, 4
        %v4808 = vrot.slane %v4563, 5
        %v4809 = vsel %vm4780, %v4807, %v4808
        %v4810 = vrot.slane %v4808, 4
        %v4811 = vrot.slane %v4564, 5
        %v4812 = vrot.slane %v4811, 4
        %v4813 = vrot.slane %v4565, 5
        %v4814 = vsel %vm4780, %v4812, %v4813
        %v4815 = vrot.slane %v4813, 4
        %v4816 = vrot.slane %v4566, 5
        %v4817 = vrot.slane %v4816, 4
        %v4818 = vrot.slane %v4567, 5
        %v4819 = vsel %vm4780, %v4817, %v4818
        %v4820 = vrot.slane %v4818, 4
        %v4821 = vrot.slane %v4568, 5
        %v4822 = vrot.slane %v4821, 4
        %v4823 = vrot.slane %v4569, 5
        %v4824 = vsel %vm4780, %v4822, %v4823
        %v4825 = vrot.slane %v4823, 4
        %v4826 = vrot.slane %v4570, 5
        %v4827 = vrot.slane %v4826, 4
        %v4828 = vrot.slane %v4571, 5
        %v4829 = vsel %vm4780, %v4827, %v4828
        %v4830 = vrot.slane %v4828, 4
        %v4831 = vrot.slane %v4572, 5
        %v4832 = vrot.slane %v4831, 4
        %v4833 = vrot.slane %v4573, 5
        %v4834 = vsel %vm4780, %v4832, %v4833
        %v4835 = vrot.slane %v4833, 4
        %v4836 = vrot.slane %v4574, 5
        %v4837 = vrot.slane %v4836, 4
        %v4838 = vrot.slane %v4575, 5
        %v4839 = vsel %vm4780, %v4837, %v4838
        %v4840 = vrot.slane %v4838, 4
        %v4841 = vrot.slane %v4576, 5
        %v4842 = vrot.slane %v4841, 4
        %v4843 = vrot.slane %v4577, 5
        %v4844 = vsel %vm4780, %v4842, %v4843
        %v4845 = vrot.slane %v4843, 4
        %v4846 = vrot.slane %v4578, 5
        %v4847 = vrot.slane %v4846, 4
        %v4848 = vrot.slane %v4579, 5
        %v4849 = vsel %vm4780, %v4847, %v4848
        %v4850 = vrot.slane %v4848, 4
        %v4851 = vrot.slane %v4580, 5
        %v4852 = vrot.slane %v4851, 4
        %v4853 = vrot.slane %v4581, 5
        %v4854 = vsel %vm4780, %v4852, %v4853
        %v4855 = vrot.slane %v4853, 4
        %v4856 = vrot.slane %v4582, 5
        %v4857 = vrot.slane %v4856, 4
        %v4858 = vrot.slane %v4583, 5
        %v4859 = vsel %vm4780, %v4857, %v4858
        %v4860 = vrot.slane %v4858, 4
        %4893 = vst [vmem:[#allocation2 + $0x8] sm:$0xf] %v4784
        %4894 = vst [vmem:[#allocation2 + $0x14] sm:$0x7] %v4785
        %4895 = vst [vmem:[#allocation2 + $0x20] sm:$0xf] %v4789
        %4896 = vst [vmem:[#allocation2 + $0x2c] sm:$0x7] %v4790
        %4897 = vst [vmem:[#allocation2 + $0x38] sm:$0xf] %v4794
        %4898 = vst [vmem:[#allocation2 + $0x44] sm:$0x7] %v4795
        %4899 = vst [vmem:[#allocation2 + $0x50] sm:$0xf] %v4799
        %4900 = vst [vmem:[#allocation2 + $0x5c] sm:$0x7] %v4800
        %4901 = vst [vmem:[#allocation2 + $0x68] sm:$0xf] %v4804
        %4902 = vst [vmem:[#allocation2 + $0x74] sm:$0x7] %v4805
        %4903 = vst [vmem:[#allocation2 + $0x80] sm:$0xf] %v4809
        %4904 = vst [vmem:[#allocation2 + $0x8c] sm:$0x7] %v4810
        %4905 = vst [vmem:[#allocation2 + $0x98] sm:$0xf] %v4814
        %4906 = vst [vmem:[#allocation2 + $0xa4] sm:$0x7] %v4815
        %4907 = vst [vmem:[#allocation2 + $0xb0] sm:$0xf] %v4819
        %4908 = vst [vmem:[#allocation2 + $0xbc] sm:$0x7] %v4820
        %4909 = vst [vmem:[#allocation2 + $0xc8] sm:$0xf] %v4824
        %4910 = vst [vmem:[#allocation2 + $0xd4] sm:$0x7] %v4825
        %4911 = vst [vmem:[#allocation2 + $0xe0] sm:$0xf] %v4829
        %4912 = vst [vmem:[#allocation2 + $0xec] sm:$0x7] %v4830
        %4913 = vst [vmem:[#allocation2 + $0xf8] sm:$0xf] %v4834
        %4914 = vst [vmem:[#allocation2 + $0x104] sm:$0x7] %v4835
        %4915 = vst [vmem:[#allocation2 + $0x110] sm:$0xf] %v4839
        %4916 = vst [vmem:[#allocation2 + $0x11c] sm:$0x7] %v4840
        %4917 = vst [vmem:[#allocation2 + $0x128] sm:$0xf] %v4844
        %4918 = vst [vmem:[#allocation2 + $0x134] sm:$0x7] %v4845
        %4919 = vst [vmem:[#allocation2 + $0x140] sm:$0xf] %v4849
        %4920 = vst [vmem:[#allocation2 + $0x14c] sm:$0x7] %v4850
        %4921 = vst [vmem:[#allocation2 + $0x158] sm:$0xf] %v4854
        %4922 = vst [vmem:[#allocation2 + $0x164] sm:$0x7] %v4855
        %4923 = vst [vmem:[#allocation2 + $0x170] sm:$0xf] %v4859
        %4924 = vst [vmem:[#allocation2 + $0x17c] sm:$0x7] %v4860
        %4925 = vst [vmem:[#allocation2 + $0x14] sm:$0x8] 0
        %4926 = vst [vmem:[#allocation2 + $0x2c] sm:$0x8] 0
        %4927 = vst [vmem:[#allocation2 + $0x44] sm:$0x8] 0
        %4928 = vst [vmem:[#allocation2 + $0x5c] sm:$0x8] 0
        %4929 = vst [vmem:[#allocation2 + $0x74] sm:$0x8] 0
        %4930 = vst [vmem:[#allocation2 + $0x8c] sm:$0x8] 0
        %4931 = vst [vmem:[#allocation2 + $0xa4] sm:$0x8] 0
        %4932 = vst [vmem:[#allocation2 + $0xbc] sm:$0x8] 0
        %4933 = vst [vmem:[#allocation2 + $0xd4] sm:$0x8] 0
        %4934 = vst [vmem:[#allocation2 + $0xec] sm:$0x8] 0
        %4935 = vst [vmem:[#allocation2 + $0x104] sm:$0x8] 0
        %4936 = vst [vmem:[#allocation2 + $0x11c] sm:$0x8] 0
        %4937 = vst [vmem:[#allocation2 + $0x134] sm:$0x8] 0
        %4938 = vst [vmem:[#allocation2 + $0x14c] sm:$0x8] 0
        %4939 = vst [vmem:[#allocation2 + $0x164] sm:$0x8] 0
        %4940 = vst [vmem:[#allocation2 + $0x17c] sm:$0x8] 0
        %v4941 = vld [vmem:[#allocation2] sm:$0xff]
        %v4942 = vld [vmem:[#allocation2 + $0x8] sm:$0xf]
        %v4943 = vld [vmem:[#allocation2 + $0xc] sm:$0xff]
        %v4944 = vld [vmem:[#allocation2 + $0x14] sm:$0xf]
        %v4945 = vld [vmem:[#allocation2 + $0x18] sm:$0xff]
        %v4946 = vld [vmem:[#allocation2 + $0x20] sm:$0xf]
        %v4947 = vld [vmem:[#allocation2 + $0x24] sm:$0xff]
        %v4948 = vld [vmem:[#allocation2 + $0x2c] sm:$0xf]
        %v4949 = vld [vmem:[#allocation2 + $0x30] sm:$0xff]
        %v4950 = vld [vmem:[#allocation2 + $0x38] sm:$0xf]
        %v4951 = vld [vmem:[#allocation2 + $0x3c] sm:$0xff]
        %v4952 = vld [vmem:[#allocation2 + $0x44] sm:$0xf]
        %v4953 = vld [vmem:[#allocation2 + $0x48] sm:$0xff]
        %v4954 = vld [vmem:[#allocation2 + $0x50] sm:$0xf]
        %v4955 = vld [vmem:[#allocation2 + $0x54] sm:$0xff]
        %v4956 = vld [vmem:[#allocation2 + $0x5c] sm:$0xf]
        %v4957 = vld [vmem:[#allocation2 + $0x60] sm:$0xff]
        %v4958 = vld [vmem:[#allocation2 + $0x68] sm:$0xf]
        %v4959 = vld [vmem:[#allocation2 + $0x6c] sm:$0xff]
        %v4960 = vld [vmem:[#allocation2 + $0x74] sm:$0xf]
        %v4961 = vld [vmem:[#allocation2 + $0x78] sm:$0xff]
        %v4962 = vld [vmem:[#allocation2 + $0x80] sm:$0xf]
        %v4963 = vld [vmem:[#allocation2 + $0x84] sm:$0xff]
        %v4964 = vld [vmem:[#allocation2 + $0x8c] sm:$0xf]
        %v4965 = vld [vmem:[#allocation2 + $0x90] sm:$0xff]
        %v4966 = vld [vmem:[#allocation2 + $0x98] sm:$0xf]
        %v4967 = vld [vmem:[#allocation2 + $0x9c] sm:$0xff]
        %v4968 = vld [vmem:[#allocation2 + $0xa4] sm:$0xf]
        %v4969 = vld [vmem:[#allocation2 + $0xa8] sm:$0xff]
        %v4970 = vld [vmem:[#allocation2 + $0xb0] sm:$0xf]
        %v4971 = vld [vmem:[#allocation2 + $0xb4] sm:$0xff]
        %v4972 = vld [vmem:[#allocation2 + $0xbc] sm:$0xf]
        %v4973 = vld [vmem:[#allocation2 + $0xc0] sm:$0xff]
        %v4974 = vld [vmem:[#allocation2 + $0xc8] sm:$0xf]
        %v4975 = vld [vmem:[#allocation2 + $0xcc] sm:$0xff]
        %v4976 = vld [vmem:[#allocation2 + $0xd4] sm:$0xf]
        %v4977 = vld [vmem:[#allocation2 + $0xd8] sm:$0xff]
        %v4978 = vld [vmem:[#allocation2 + $0xe0] sm:$0xf]
        %v4979 = vld [vmem:[#allocation2 + $0xe4] sm:$0xff]
        %v4980 = vld [vmem:[#allocation2 + $0xec] sm:$0xf]
        %v4981 = vld [vmem:[#allocation2 + $0xf0] sm:$0xff]
        %v4982 = vld [vmem:[#allocation2 + $0xf8] sm:$0xf]
        %v4983 = vld [vmem:[#allocation2 + $0xfc] sm:$0xff]
        %v4984 = vld [vmem:[#allocation2 + $0x104] sm:$0xf]
        %v4985 = vld [vmem:[#allocation2 + $0x108] sm:$0xff]
        %v4986 = vld [vmem:[#allocation2 + $0x110] sm:$0xf]
        %v4987 = vld [vmem:[#allocation2 + $0x114] sm:$0xff]
        %v4988 = vld [vmem:[#allocation2 + $0x11c] sm:$0xf]
        %v4989 = vld [vmem:[#allocation2 + $0x120] sm:$0xff]
        %v4990 = vld [vmem:[#allocation2 + $0x128] sm:$0xf]
        %v4991 = vld [vmem:[#allocation2 + $0x12c] sm:$0xff]
        %v4992 = vld [vmem:[#allocation2 + $0x134] sm:$0xf]
        %v4993 = vld [vmem:[#allocation2 + $0x138] sm:$0xff]
        %v4994 = vld [vmem:[#allocation2 + $0x140] sm:$0xf]
        %v4995 = vld [vmem:[#allocation2 + $0x144] sm:$0xff]
        %v4996 = vld [vmem:[#allocation2 + $0x14c] sm:$0xf]
        %v4997 = vld [vmem:[#allocation2 + $0x150] sm:$0xff]
        %v4998 = vld [vmem:[#allocation2 + $0x158] sm:$0xf]
        %v4999 = vld [vmem:[#allocation2 + $0x15c] sm:$0xff]
        %v5000 = vld [vmem:[#allocation2 + $0x164] sm:$0xf]
        %v5001 = vld [vmem:[#allocation2 + $0x168] sm:$0xff]
        %v5002 = vld [vmem:[#allocation2 + $0x170] sm:$0xf]
        %v5003 = vld [vmem:[#allocation2 + $0x174] sm:$0xff]
        %v5004 = vld [vmem:[#allocation2 + $0x17c] sm:$0xf]
        %v5005 = vld [vmem:[#allocation11] sm:$0xf]
        %v5006 = vld [vmem:[#allocation11 + $0x4] sm:$0xf]
        %v5007 = vld [vmem:[#allocation11 + $0x8] sm:$0xf]
        %v5008 = vld [vmem:[#allocation11 + $0xc] sm:$0xf]
        %v5009 = vld [vmem:[#allocation11 + $0x10] sm:$0xf]
        %v5010 = vld [vmem:[#allocation11 + $0x14] sm:$0xf]
        %v5011 = vld [vmem:[#allocation11 + $0x18] sm:$0xf]
        %v5012 = vld [vmem:[#allocation11 + $0x1c] sm:$0xf]
        %v5013 = vld [vmem:[#allocation11 + $0x20] sm:$0xf]
        %v5014 = vld [vmem:[#allocation11 + $0x24] sm:$0xf]
        %v5015 = vld [vmem:[#allocation11 + $0x28] sm:$0xf]
        %v5016 = vld [vmem:[#allocation11 + $0x2c] sm:$0xf]
        %v5017 = vld [vmem:[#allocation11 + $0x30] sm:$0xf]
        %v5018 = vld [vmem:[#allocation11 + $0x34] sm:$0xf]
        %v5019 = vld [vmem:[#allocation11 + $0x38] sm:$0xf]
        %v5020 = vld [vmem:[#allocation11 + $0x3c] sm:$0xf]
        %v5021 = vld [vmem:[#allocation11 + $0x40] sm:$0xf]
        %v5022 = vld [vmem:[#allocation11 + $0x44] sm:$0xf]
        %v5023 = vld [vmem:[#allocation11 + $0x48] sm:$0xf]
        %v5024 = vld [vmem:[#allocation11 + $0x4c] sm:$0xf]
        %v5025 = vld [vmem:[#allocation11 + $0x50] sm:$0xf]
        %v5026 = vld [vmem:[#allocation11 + $0x54] sm:$0xf]
        %v5027 = vld [vmem:[#allocation11 + $0x58] sm:$0xf]
        %v5028 = vld [vmem:[#allocation11 + $0x5c] sm:$0xf]
        %v5029 = vld [vmem:[#allocation11 + $0x60] sm:$0xf]
        %v5030 = vld [vmem:[#allocation11 + $0x64] sm:$0xf]
        %v5031 = vld [vmem:[#allocation11 + $0x68] sm:$0xf]
        %v5032 = vld [vmem:[#allocation11 + $0x6c] sm:$0xf]
        %v5033 = vld [vmem:[#allocation11 + $0x70] sm:$0xf]
        %v5034 = vld [vmem:[#allocation11 + $0x74] sm:$0xf]
        %v5035 = vld [vmem:[#allocation11 + $0x78] sm:$0xf]
        %v5036 = vld [vmem:[#allocation11 + $0x7c] sm:$0xf]
        %v5037 = vld [vmem:[#allocation11 + $0x80] sm:$0xf]
        %v5038 = vld [vmem:[#allocation11 + $0x84] sm:$0xf]
        %v5039 = vld [vmem:[#allocation11 + $0x88] sm:$0xf]
        %v5040 = vld [vmem:[#allocation11 + $0x8c] sm:$0xf]
        %v5041 = vld [vmem:[#allocation11 + $0x90] sm:$0xf]
        %v5042 = vld [vmem:[#allocation11 + $0x94] sm:$0xf]
        %v5043 = vld [vmem:[#allocation11 + $0x98] sm:$0xf]
        %v5044 = vld [vmem:[#allocation11 + $0x9c] sm:$0xf]
        %v5045 = vld [vmem:[#allocation11 + $0xa0] sm:$0xf]
        %v5046 = vld [vmem:[#allocation11 + $0xa4] sm:$0xf]
        %v5047 = vld [vmem:[#allocation11 + $0xa8] sm:$0xf]
        %v5048 = vld [vmem:[#allocation11 + $0xac] sm:$0xf]
        %v5049 = vld [vmem:[#allocation11 + $0xb0] sm:$0xf]
        %v5050 = vld [vmem:[#allocation11 + $0xb4] sm:$0xf]
        %v5051 = vld [vmem:[#allocation11 + $0xb8] sm:$0xf]
        %v5052 = vld [vmem:[#allocation11 + $0xbc] sm:$0xf]
        %v5117 = vunpack.c.l.b16 %v4941
        %v5118 = vunpack.c.h.b16 %v4941
        %v5119 = vunpack.c.l.b16 %v4942
        %v5120 = vunpack.c.l.b16 %v4943
        %v5121 = vunpack.c.h.b16 %v4943
        %v5122 = vunpack.c.l.b16 %v4944
        %v5123 = vunpack.c.l.b16 %v4945
        %v5124 = vunpack.c.h.b16 %v4945
        %v5125 = vunpack.c.l.b16 %v4946
        %v5126 = vunpack.c.l.b16 %v4947
        %v5127 = vunpack.c.h.b16 %v4947
        %v5128 = vunpack.c.l.b16 %v4948
        %v5129 = vunpack.c.l.b16 %v4949
        %v5130 = vunpack.c.h.b16 %v4949
        %v5131 = vunpack.c.l.b16 %v4950
        %v5132 = vunpack.c.l.b16 %v4951
        %v5133 = vunpack.c.h.b16 %v4951
        %v5134 = vunpack.c.l.b16 %v4952
        %v5135 = vunpack.c.l.b16 %v4953
        %v5136 = vunpack.c.h.b16 %v4953
        %v5137 = vunpack.c.l.b16 %v4954
        %v5138 = vunpack.c.l.b16 %v4955
        %v5139 = vunpack.c.h.b16 %v4955
        %v5140 = vunpack.c.l.b16 %v4956
        %v5141 = vunpack.c.l.b16 %v4957
        %v5142 = vunpack.c.h.b16 %v4957
        %v5143 = vunpack.c.l.b16 %v4958
        %v5144 = vunpack.c.l.b16 %v4959
        %v5145 = vunpack.c.h.b16 %v4959
        %v5146 = vunpack.c.l.b16 %v4960
        %v5147 = vunpack.c.l.b16 %v4961
        %v5148 = vunpack.c.h.b16 %v4961
        %v5149 = vunpack.c.l.b16 %v4962
        %v5150 = vunpack.c.l.b16 %v4963
        %v5151 = vunpack.c.h.b16 %v4963
        %v5152 = vunpack.c.l.b16 %v4964
        %v5153 = vunpack.c.l.b16 %v4965
        %v5154 = vunpack.c.h.b16 %v4965
        %v5155 = vunpack.c.l.b16 %v4966
        %v5156 = vunpack.c.l.b16 %v4967
        %v5157 = vunpack.c.h.b16 %v4967
        %v5158 = vunpack.c.l.b16 %v4968
        %v5159 = vunpack.c.l.b16 %v4969
        %v5160 = vunpack.c.h.b16 %v4969
        %v5161 = vunpack.c.l.b16 %v4970
        %v5162 = vunpack.c.l.b16 %v4971
        %v5163 = vunpack.c.h.b16 %v4971
        %v5164 = vunpack.c.l.b16 %v4972
        %v5165 = vunpack.c.l.b16 %v4973
        %v5166 = vunpack.c.h.b16 %v4973
        %v5167 = vunpack.c.l.b16 %v4974
        %v5168 = vunpack.c.l.b16 %v4975
        %v5169 = vunpack.c.h.b16 %v4975
        %v5170 = vunpack.c.l.b16 %v4976
        %v5171 = vunpack.c.l.b16 %v4977
        %v5172 = vunpack.c.h.b16 %v4977
        %v5173 = vunpack.c.l.b16 %v4978
        %v5174 = vunpack.c.l.b16 %v4979
        %v5175 = vunpack.c.h.b16 %v4979
        %v5176 = vunpack.c.l.b16 %v4980
        %v5177 = vunpack.c.l.b16 %v4981
        %v5178 = vunpack.c.h.b16 %v4981
        %v5179 = vunpack.c.l.b16 %v4982
        %v5180 = vunpack.c.l.b16 %v4983
        %v5181 = vunpack.c.h.b16 %v4983
        %v5182 = vunpack.c.l.b16 %v4984
        %v5183 = vunpack.c.l.b16 %v4985
        %v5184 = vunpack.c.h.b16 %v4985
        %v5185 = vunpack.c.l.b16 %v4986
        %v5186 = vunpack.c.l.b16 %v4987
        %v5187 = vunpack.c.h.b16 %v4987
        %v5188 = vunpack.c.l.b16 %v4988
        %v5189 = vunpack.c.l.b16 %v4989
        %v5190 = vunpack.c.h.b16 %v4989
        %v5191 = vunpack.c.l.b16 %v4990
        %v5192 = vunpack.c.l.b16 %v4991
        %v5193 = vunpack.c.h.b16 %v4991
        %v5194 = vunpack.c.l.b16 %v4992
        %v5195 = vunpack.c.l.b16 %v4993
        %v5196 = vunpack.c.h.b16 %v4993
        %v5197 = vunpack.c.l.b16 %v4994
        %v5198 = vunpack.c.l.b16 %v4995
        %v5199 = vunpack.c.h.b16 %v4995
        %v5200 = vunpack.c.l.b16 %v4996
        %v5201 = vunpack.c.l.b16 %v4997
        %v5202 = vunpack.c.h.b16 %v4997
        %v5203 = vunpack.c.l.b16 %v4998
        %v5204 = vunpack.c.l.b16 %v4999
        %v5205 = vunpack.c.h.b16 %v4999
        %v5206 = vunpack.c.l.b16 %v5000
        %v5207 = vunpack.c.l.b16 %v5001
        %v5208 = vunpack.c.h.b16 %v5001
        %v5209 = vunpack.c.l.b16 %v5002
        %v5210 = vunpack.c.l.b16 %v5003
        %v5211 = vunpack.c.h.b16 %v5003
        %v5212 = vunpack.c.l.b16 %v5004
        %v5213 = vpack.c.b16 %v5120, %v5117
        %v5214 = vpack.c.b16 %v5121, %v5118
        %v5215 = vpack.c.b16 %v5122, %v5119
        %v5216 = vpack.c.b16 %v5126, %v5123
        %v5217 = vpack.c.b16 %v5127, %v5124
        %v5218 = vpack.c.b16 %v5128, %v5125
        %v5219 = vpack.c.b16 %v5132, %v5129
        %v5220 = vpack.c.b16 %v5133, %v5130
        %v5221 = vpack.c.b16 %v5134, %v5131
        %v5222 = vpack.c.b16 %v5138, %v5135
        %v5223 = vpack.c.b16 %v5139, %v5136
        %v5224 = vpack.c.b16 %v5140, %v5137
        %v5225 = vpack.c.b16 %v5144, %v5141
        %v5226 = vpack.c.b16 %v5145, %v5142
        %v5227 = vpack.c.b16 %v5146, %v5143
        %v5228 = vpack.c.b16 %v5150, %v5147
        %v5229 = vpack.c.b16 %v5151, %v5148
        %v5230 = vpack.c.b16 %v5152, %v5149
        %v5231 = vpack.c.b16 %v5156, %v5153
        %v5232 = vpack.c.b16 %v5157, %v5154
        %v5233 = vpack.c.b16 %v5158, %v5155
        %v5234 = vpack.c.b16 %v5162, %v5159
        %v5235 = vpack.c.b16 %v5163, %v5160
        %v5236 = vpack.c.b16 %v5164, %v5161
        %v5237 = vpack.c.b16 %v5168, %v5165
        %v5238 = vpack.c.b16 %v5169, %v5166
        %v5239 = vpack.c.b16 %v5170, %v5167
        %v5240 = vpack.c.b16 %v5174, %v5171
        %v5241 = vpack.c.b16 %v5175, %v5172
        %v5242 = vpack.c.b16 %v5176, %v5173
        %v5243 = vpack.c.b16 %v5180, %v5177
        %v5244 = vpack.c.b16 %v5181, %v5178
        %v5245 = vpack.c.b16 %v5182, %v5179
        %v5246 = vpack.c.b16 %v5186, %v5183
        %v5247 = vpack.c.b16 %v5187, %v5184
        %v5248 = vpack.c.b16 %v5188, %v5185
        %v5249 = vpack.c.b16 %v5192, %v5189
        %v5250 = vpack.c.b16 %v5193, %v5190
        %v5251 = vpack.c.b16 %v5194, %v5191
        %v5252 = vpack.c.b16 %v5198, %v5195
        %v5253 = vpack.c.b16 %v5199, %v5196
        %v5254 = vpack.c.b16 %v5200, %v5197
        %v5255 = vpack.c.b16 %v5204, %v5201
        %v5256 = vpack.c.b16 %v5205, %v5202
        %v5257 = vpack.c.b16 %v5206, %v5203
        %v5258 = vpack.c.b16 %v5210, %v5207
        %v5259 = vpack.c.b16 %v5211, %v5208
        %v5260 = vpack.c.b16 %v5212, %v5209
        %v5357 = vunpack.c.l.b16 %v5005
        %v5358 = vunpack.c.l.b16 %v5006
        %v5359 = vunpack.c.l.b16 %v5007
        %v5360 = vunpack.c.l.b16 %v5008
        %v5361 = vunpack.c.l.b16 %v5009
        %v5362 = vunpack.c.l.b16 %v5010
        %v5363 = vunpack.c.l.b16 %v5011
        %v5364 = vunpack.c.l.b16 %v5012
        %v5365 = vunpack.c.l.b16 %v5013
        %v5366 = vunpack.c.l.b16 %v5014
        %v5367 = vunpack.c.l.b16 %v5015
        %v5368 = vunpack.c.l.b16 %v5016
        %v5369 = vunpack.c.l.b16 %v5017
        %v5370 = vunpack.c.l.b16 %v5018
        %v5371 = vunpack.c.l.b16 %v5019
        %v5372 = vunpack.c.l.b16 %v5020
        %v5373 = vunpack.c.l.b16 %v5021
        %v5374 = vunpack.c.l.b16 %v5022
        %v5375 = vunpack.c.l.b16 %v5023
        %v5376 = vunpack.c.l.b16 %v5024
        %v5377 = vunpack.c.l.b16 %v5025
        %v5378 = vunpack.c.l.b16 %v5026
        %v5379 = vunpack.c.l.b16 %v5027
        %v5380 = vunpack.c.l.b16 %v5028
        %v5381 = vunpack.c.l.b16 %v5029
        %v5382 = vunpack.c.l.b16 %v5030
        %v5383 = vunpack.c.l.b16 %v5031
        %v5384 = vunpack.c.l.b16 %v5032
        %v5385 = vunpack.c.l.b16 %v5033
        %v5386 = vunpack.c.l.b16 %v5034
        %v5387 = vunpack.c.l.b16 %v5035
        %v5388 = vunpack.c.l.b16 %v5036
        %v5389 = vunpack.c.l.b16 %v5037
        %v5390 = vunpack.c.l.b16 %v5038
        %v5391 = vunpack.c.l.b16 %v5039
        %v5392 = vunpack.c.l.b16 %v5040
        %v5393 = vunpack.c.l.b16 %v5041
        %v5394 = vunpack.c.l.b16 %v5042
        %v5395 = vunpack.c.l.b16 %v5043
        %v5396 = vunpack.c.l.b16 %v5044
        %v5397 = vunpack.c.l.b16 %v5045
        %v5398 = vunpack.c.l.b16 %v5046
        %v5399 = vunpack.c.l.b16 %v5047
        %v5400 = vunpack.c.l.b16 %v5048
        %v5401 = vunpack.c.l.b16 %v5049
        %v5402 = vunpack.c.l.b16 %v5050
        %v5403 = vunpack.c.l.b16 %v5051
        %v5404 = vunpack.c.l.b16 %v5052
        %v5405 = vpack.c.b16 %v5358, %v5357
        %v5406 = vpack.c.b16 %v5360, %v5359
        %v5407 = vpack.c.b16 %v5362, %v5361
        %v5408 = vpack.c.b16 %v5364, %v5363
        %v5409 = vpack.c.b16 %v5366, %v5365
        %v5410 = vpack.c.b16 %v5368, %v5367
        %v5411 = vpack.c.b16 %v5370, %v5369
        %v5412 = vpack.c.b16 %v5372, %v5371
        %v5413 = vpack.c.b16 %v5374, %v5373
        %v5414 = vpack.c.b16 %v5376, %v5375
        %v5415 = vpack.c.b16 %v5378, %v5377
        %v5416 = vpack.c.b16 %v5380, %v5379
        %v5417 = vpack.c.b16 %v5382, %v5381
        %v5418 = vpack.c.b16 %v5384, %v5383
        %v5419 = vpack.c.b16 %v5386, %v5385
        %v5420 = vpack.c.b16 %v5388, %v5387
        %v5421 = vpack.c.b16 %v5390, %v5389
        %v5422 = vpack.c.b16 %v5392, %v5391
        %v5423 = vpack.c.b16 %v5394, %v5393
        %v5424 = vpack.c.b16 %v5396, %v5395
        %v5425 = vpack.c.b16 %v5398, %v5397
        %v5426 = vpack.c.b16 %v5400, %v5399
        %v5427 = vpack.c.b16 %v5402, %v5401
        %v5428 = vpack.c.b16 %v5404, %v5403
        %5453 = vmatprep.subr.bf16.mxu0 0
        %5454 = vmatpush1.bf16.msra.mxu0 %v5412
        %5455 = vmatprep.subr.bf16.mxu0 0
        %5456 = vmatpush1.bf16.msra.mxu0 %v5411
        %5457 = vmatprep.subr.bf16.mxu0 0
        %5458 = vmatpush1.bf16.msra.mxu0 %v5410
        %5459 = vmatprep.subr.bf16.mxu0 0
        %5460 = vmatpush1.bf16.msra.mxu0 %v5409
        %5461 = vmatprep.subr.bf16.mxu0 0
        %5462 = vmatpush1.bf16.msra.mxu0 %v5408
        %5463 = vmatprep.subr.bf16.mxu0 0
        %5464 = vmatpush1.bf16.msra.mxu0 %v5407
        %5465 = vmatprep.subr.bf16.mxu0 0
        %5466 = vmatpush1.bf16.msra.mxu0 %v5406
        %5467 = vmatprep.subr.bf16.mxu0 0
        %5468 = vmatpush1.bf16.msra.mxu0 %v5405
        %5469 = vmatprep.subr.bf16.mxu0 0
        %5470 = vmatpush2.bf16.msra.mxu0 %v5420
        %5471 = vmatprep.subr.bf16.mxu0 0
        %5472 = vmatpush2.bf16.msra.mxu0 %v5419
        %5473 = vmatprep.subr.bf16.mxu0 0
        %5474 = vmatpush2.bf16.msra.mxu0 %v5418
        %5475 = vmatprep.subr.bf16.mxu0 0
        %5476 = vmatpush2.bf16.msra.mxu0 %v5417
        %5477 = vmatprep.subr.bf16.mxu0 0
        %5478 = vmatpush2.bf16.msra.mxu0 %v5416
        %5479 = vmatprep.subr.bf16.mxu0 0
        %5480 = vmatpush2.bf16.msra.mxu0 %v5415
        %5481 = vmatprep.subr.bf16.mxu0 0
        %5482 = vmatpush2.bf16.msra.mxu0 %v5414
        %5483 = vmatprep.subr.bf16.mxu0 0
        %5484 = vmatpush2.bf16.msra.mxu0 %v5413
        %5485 = vmatprep.mubr.bf16.mxu0 %v5214
        %5486 = vmatmul.mubr.bf16.gmra.mxu0 %v5213
        %v5487 = vpop.f32.mrf.mxu0
        %v5488 = vadd.f32 0.0, %v5487
        %v5489 = vpop.f32.mrf.mxu0
        %v5490 = vpop.f32.mrf.mxu0
        %v5491 = vadd.f32 0.0, %v5490
        %v5492 = vpop.f32.mrf.mxu0
        %5493 = vmatprep.mubr.bf16.mxu0 %v5217
        %5494 = vmatmul.mubr.bf16.gmra.mxu0 %v5216
        %v5495 = vpop.f32.mrf.mxu0
        %v5496 = vadd.f32 0.0, %v5495
        %v5497 = vpop.f32.mrf.mxu0
        %v5498 = vpop.f32.mrf.mxu0
        %v5499 = vadd.f32 0.0, %v5498
        %v5500 = vpop.f32.mrf.mxu0
        %5501 = vmatprep.mubr.bf16.mxu0 %v5220
        %5502 = vmatmul.mubr.bf16.gmra.mxu0 %v5219
        %v5503 = vpop.f32.mrf.mxu0
        %v5504 = vadd.f32 0.0, %v5503
        %v5505 = vpop.f32.mrf.mxu0
        %v5506 = vpop.f32.mrf.mxu0
        %v5507 = vadd.f32 0.0, %v5506
        %v5508 = vpop.f32.mrf.mxu0
        %5509 = vmatprep.mubr.bf16.mxu0 %v5223
        %5510 = vmatmul.mubr.bf16.gmra.mxu0 %v5222
        %v5511 = vpop.f32.mrf.mxu0
        %v5512 = vadd.f32 0.0, %v5511
        %v5513 = vpop.f32.mrf.mxu0
        %v5514 = vpop.f32.mrf.mxu0
        %v5515 = vadd.f32 0.0, %v5514
        %v5516 = vpop.f32.mrf.mxu0
        %5517 = vmatprep.mubr.bf16.mxu0 %v5226
        %5518 = vmatmul.mubr.bf16.gmra.mxu0 %v5225
        %v5519 = vpop.f32.mrf.mxu0
        %v5520 = vadd.f32 0.0, %v5519
        %v5521 = vpop.f32.mrf.mxu0
        %v5522 = vpop.f32.mrf.mxu0
        %v5523 = vadd.f32 0.0, %v5522
        %v5524 = vpop.f32.mrf.mxu0
        %5525 = vmatprep.mubr.bf16.mxu0 %v5229
        %5526 = vmatmul.mubr.bf16.gmra.mxu0 %v5228
        %v5527 = vpop.f32.mrf.mxu0
        %v5528 = vadd.f32 0.0, %v5527
        %v5529 = vpop.f32.mrf.mxu0
        %v5530 = vpop.f32.mrf.mxu0
        %v5531 = vadd.f32 0.0, %v5530
        %v5532 = vpop.f32.mrf.mxu0
        %5533 = vmatprep.mubr.bf16.mxu0 %v5232
        %5534 = vmatmul.mubr.bf16.gmra.mxu0 %v5231
        %v5535 = vpop.f32.mrf.mxu0
        %v5536 = vadd.f32 0.0, %v5535
        %v5537 = vpop.f32.mrf.mxu0
        %v5538 = vpop.f32.mrf.mxu0
        %v5539 = vadd.f32 0.0, %v5538
        %v5540 = vpop.f32.mrf.mxu0
        %5541 = vmatprep.mubr.bf16.mxu0 %v5235
        %5542 = vmatmul.mubr.bf16.gmra.mxu0 %v5234
        %v5543 = vpop.f32.mrf.mxu0
        %v5544 = vadd.f32 0.0, %v5543
        %v5545 = vpop.f32.mrf.mxu0
        %v5546 = vpop.f32.mrf.mxu0
        %v5547 = vadd.f32 0.0, %v5546
        %v5548 = vpop.f32.mrf.mxu0
        %5549 = vmatprep.mubr.bf16.mxu0 %v5238
        %5550 = vmatmul.mubr.bf16.gmra.mxu0 %v5237
        %v5551 = vpop.f32.mrf.mxu0
        %v5552 = vadd.f32 0.0, %v5551
        %v5553 = vpop.f32.mrf.mxu0
        %v5554 = vpop.f32.mrf.mxu0
        %v5555 = vadd.f32 0.0, %v5554
        %v5556 = vpop.f32.mrf.mxu0
        %5557 = vmatprep.mubr.bf16.mxu0 %v5241
        %5558 = vmatmul.mubr.bf16.gmra.mxu0 %v5240
        %v5559 = vpop.f32.mrf.mxu0
        %v5560 = vadd.f32 0.0, %v5559
        %v5561 = vpop.f32.mrf.mxu0
        %v5562 = vpop.f32.mrf.mxu0
        %v5563 = vadd.f32 0.0, %v5562
        %v5564 = vpop.f32.mrf.mxu0
        %5565 = vmatprep.mubr.bf16.mxu0 %v5244
        %5566 = vmatmul.mubr.bf16.gmra.mxu0 %v5243
        %v5567 = vpop.f32.mrf.mxu0
        %v5568 = vadd.f32 0.0, %v5567
        %v5569 = vpop.f32.mrf.mxu0
        %v5570 = vpop.f32.mrf.mxu0
        %v5571 = vadd.f32 0.0, %v5570
        %v5572 = vpop.f32.mrf.mxu0
        %5573 = vmatprep.mubr.bf16.mxu0 %v5247
        %5574 = vmatmul.mubr.bf16.gmra.mxu0 %v5246
        %v5575 = vpop.f32.mrf.mxu0
        %v5576 = vadd.f32 0.0, %v5575
        %v5577 = vpop.f32.mrf.mxu0
        %v5578 = vpop.f32.mrf.mxu0
        %v5579 = vadd.f32 0.0, %v5578
        %v5580 = vpop.f32.mrf.mxu0
        %5581 = vmatprep.mubr.bf16.mxu0 %v5250
        %5582 = vmatmul.mubr.bf16.gmra.mxu0 %v5249
        %v5583 = vpop.f32.mrf.mxu0
        %v5584 = vadd.f32 0.0, %v5583
        %v5585 = vpop.f32.mrf.mxu0
        %v5586 = vpop.f32.mrf.mxu0
        %v5587 = vadd.f32 0.0, %v5586
        %v5588 = vpop.f32.mrf.mxu0
        %5589 = vmatprep.mubr.bf16.mxu0 %v5253
        %5590 = vmatmul.mubr.bf16.gmra.mxu0 %v5252
        %v5591 = vpop.f32.mrf.mxu0
        %v5592 = vadd.f32 0.0, %v5591
        %v5593 = vpop.f32.mrf.mxu0
        %v5594 = vpop.f32.mrf.mxu0
        %v5595 = vadd.f32 0.0, %v5594
        %v5596 = vpop.f32.mrf.mxu0
        %5597 = vmatprep.mubr.bf16.mxu0 %v5256
        %5598 = vmatmul.mubr.bf16.gmra.mxu0 %v5255
        %v5599 = vpop.f32.mrf.mxu0
        %v5600 = vadd.f32 0.0, %v5599
        %v5601 = vpop.f32.mrf.mxu0
        %v5602 = vpop.f32.mrf.mxu0
        %v5603 = vadd.f32 0.0, %v5602
        %v5604 = vpop.f32.mrf.mxu0
        %5605 = vmatprep.mubr.bf16.mxu0 %v5259
        %5606 = vmatmul.mubr.bf16.gmra.mxu0 %v5258
        %v5607 = vpop.f32.mrf.mxu0
        %v5608 = vadd.f32 0.0, %v5607
        %v5609 = vpop.f32.mrf.mxu0
        %v5610 = vpop.f32.mrf.mxu0
        %v5611 = vadd.f32 0.0, %v5610
        %v5612 = vpop.f32.mrf.mxu0
        %5613 = vdwg.mxu0
        %5614 = vmatprep.subr.bf16.mxu0 0
        %5615 = vmatpush1.bf16.msra.mxu0 %v5428
        %5616 = vmatprep.subr.bf16.mxu0 0
        %5617 = vmatpush1.bf16.msra.mxu0 %v5427
        %5618 = vmatprep.subr.bf16.mxu0 0
        %5619 = vmatpush1.bf16.msra.mxu0 %v5426
        %5620 = vmatprep.subr.bf16.mxu0 0
        %5621 = vmatpush1.bf16.msra.mxu0 %v5425
        %5622 = vmatprep.subr.bf16.mxu0 0
        %5623 = vmatpush1.bf16.msra.mxu0 %v5424
        %5624 = vmatprep.subr.bf16.mxu0 0
        %5625 = vmatpush1.bf16.msra.mxu0 %v5423
        %5626 = vmatprep.subr.bf16.mxu0 0
        %5627 = vmatpush1.bf16.msra.mxu0 %v5422
        %5628 = vmatprep.subr.bf16.mxu0 0
        %5629 = vmatpush1.bf16.msra.mxu0 %v5421
        %5630 = vmatprep.subr.bf16.mxu0 0
        %5631 = vmatpush2.bf16.msra.mxu0 0
        %5632 = vmatprep.subr.bf16.mxu0 0
        %5633 = vmatpush2.bf16.msra.mxu0 0
        %5634 = vmatprep.subr.bf16.mxu0 0
        %5635 = vmatpush2.bf16.msra.mxu0 0
        %5636 = vmatprep.subr.bf16.mxu0 0
        %5637 = vmatpush2.bf16.msra.mxu0 0
        %5638 = vmatprep.subr.bf16.mxu0 0
        %5639 = vmatpush2.bf16.msra.mxu0 0
        %5640 = vmatprep.subr.bf16.mxu0 0
        %5641 = vmatpush2.bf16.msra.mxu0 0
        %5642 = vmatprep.subr.bf16.mxu0 0
        %5643 = vmatpush2.bf16.msra.mxu0 0
        %5644 = vmatprep.subr.bf16.mxu0 0
        %5645 = vmatpush2.bf16.msra.mxu0 0
        %5646 = vmatprep.mubr.bf16.mxu0 0
        %5647 = vmatmul.mubr.bf16.gmra.mxu0 %v5215
        %v5648 = vpop.f32.mrf.mxu0
        %v5649 = vadd.f32 %v5488, %v5648
        %v5650 = vpop.f32.mrf.mxu0
        %v5651 = vpop.f32.mrf.mxu0
        %v5652 = vadd.f32 %v5491, %v5651
        %v5653 = vpop.f32.mrf.mxu0
        %5654 = vmatprep.mubr.bf16.mxu0 0
        %5655 = vmatmul.mubr.bf16.gmra.mxu0 %v5218
        %v5656 = vpop.f32.mrf.mxu0
        %v5657 = vadd.f32 %v5496, %v5656
        %v5658 = vpop.f32.mrf.mxu0
        %v5659 = vpop.f32.mrf.mxu0
        %v5660 = vadd.f32 %v5499, %v5659
        %v5661 = vpop.f32.mrf.mxu0
        %5662 = vmatprep.mubr.bf16.mxu0 0
        %5663 = vmatmul.mubr.bf16.gmra.mxu0 %v5221
        %v5664 = vpop.f32.mrf.mxu0
        %v5665 = vadd.f32 %v5504, %v5664
        %v5666 = vpop.f32.mrf.mxu0
        %v5667 = vpop.f32.mrf.mxu0
        %v5668 = vadd.f32 %v5507, %v5667
        %v5669 = vpop.f32.mrf.mxu0
        %5670 = vmatprep.mubr.bf16.mxu0 0
        %5671 = vmatmul.mubr.bf16.gmra.mxu0 %v5224
        %v5672 = vpop.f32.mrf.mxu0
        %v5673 = vadd.f32 %v5512, %v5672
        %v5674 = vpop.f32.mrf.mxu0
        %v5675 = vpop.f32.mrf.mxu0
        %v5676 = vadd.f32 %v5515, %v5675
        %v5677 = vpop.f32.mrf.mxu0
        %5678 = vmatprep.mubr.bf16.mxu0 0
        %5679 = vmatmul.mubr.bf16.gmra.mxu0 %v5227
        %v5680 = vpop.f32.mrf.mxu0
        %v5681 = vadd.f32 %v5520, %v5680
        %v5682 = vpop.f32.mrf.mxu0
        %v5683 = vpop.f32.mrf.mxu0
        %v5684 = vadd.f32 %v5523, %v5683
        %v5685 = vpop.f32.mrf.mxu0
        %5686 = vmatprep.mubr.bf16.mxu0 0
        %5687 = vmatmul.mubr.bf16.gmra.mxu0 %v5230
        %v5688 = vpop.f32.mrf.mxu0
        %v5689 = vadd.f32 %v5528, %v5688
        %v5690 = vpop.f32.mrf.mxu0
        %v5691 = vpop.f32.mrf.mxu0
        %v5692 = vadd.f32 %v5531, %v5691
        %v5693 = vpop.f32.mrf.mxu0
        %5694 = vmatprep.mubr.bf16.mxu0 0
        %5695 = vmatmul.mubr.bf16.gmra.mxu0 %v5233
        %v5696 = vpop.f32.mrf.mxu0
        %v5697 = vadd.f32 %v5536, %v5696
        %v5698 = vpop.f32.mrf.mxu0
        %v5699 = vpop.f32.mrf.mxu0
        %v5700 = vadd.f32 %v5539, %v5699
        %v5701 = vpop.f32.mrf.mxu0
        %5702 = vmatprep.mubr.bf16.mxu0 0
        %5703 = vmatmul.mubr.bf16.gmra.mxu0 %v5236
        %v5704 = vpop.f32.mrf.mxu0
        %v5705 = vadd.f32 %v5544, %v5704
        %v5706 = vpop.f32.mrf.mxu0
        %v5707 = vpop.f32.mrf.mxu0
        %v5708 = vadd.f32 %v5547, %v5707
        %v5709 = vpop.f32.mrf.mxu0
        %5710 = vmatprep.mubr.bf16.mxu0 0
        %5711 = vmatmul.mubr.bf16.gmra.mxu0 %v5239
        %v5712 = vpop.f32.mrf.mxu0
        %v5713 = vadd.f32 %v5552, %v5712
        %v5714 = vpop.f32.mrf.mxu0
        %v5715 = vpop.f32.mrf.mxu0
        %v5716 = vadd.f32 %v5555, %v5715
        %v5717 = vpop.f32.mrf.mxu0
        %5718 = vmatprep.mubr.bf16.mxu0 0
        %5719 = vmatmul.mubr.bf16.gmra.mxu0 %v5242
        %v5720 = vpop.f32.mrf.mxu0
        %v5721 = vadd.f32 %v5560, %v5720
        %v5722 = vpop.f32.mrf.mxu0
        %v5723 = vpop.f32.mrf.mxu0
        %v5724 = vadd.f32 %v5563, %v5723
        %v5725 = vpop.f32.mrf.mxu0
        %5726 = vmatprep.mubr.bf16.mxu0 0
        %5727 = vmatmul.mubr.bf16.gmra.mxu0 %v5245
        %v5728 = vpop.f32.mrf.mxu0
        %v5729 = vadd.f32 %v5568, %v5728
        %v5730 = vpop.f32.mrf.mxu0
        %v5731 = vpop.f32.mrf.mxu0
        %v5732 = vadd.f32 %v5571, %v5731
        %v5733 = vpop.f32.mrf.mxu0
        %5734 = vmatprep.mubr.bf16.mxu0 0
        %5735 = vmatmul.mubr.bf16.gmra.mxu0 %v5248
        %v5736 = vpop.f32.mrf.mxu0
        %v5737 = vadd.f32 %v5576, %v5736
        %v5738 = vpop.f32.mrf.mxu0
        %v5739 = vpop.f32.mrf.mxu0
        %v5740 = vadd.f32 %v5579, %v5739
        %v5741 = vpop.f32.mrf.mxu0
        %5742 = vmatprep.mubr.bf16.mxu0 0
        %5743 = vmatmul.mubr.bf16.gmra.mxu0 %v5251
        %v5744 = vpop.f32.mrf.mxu0
        %v5745 = vadd.f32 %v5584, %v5744
        %v5746 = vpop.f32.mrf.mxu0
        %v5747 = vpop.f32.mrf.mxu0
        %v5748 = vadd.f32 %v5587, %v5747
        %v5749 = vpop.f32.mrf.mxu0
        %5750 = vmatprep.mubr.bf16.mxu0 0
        %5751 = vmatmul.mubr.bf16.gmra.mxu0 %v5254
        %v5752 = vpop.f32.mrf.mxu0
        %v5753 = vadd.f32 %v5592, %v5752
        %v5754 = vpop.f32.mrf.mxu0
        %v5755 = vpop.f32.mrf.mxu0
        %v5756 = vadd.f32 %v5595, %v5755
        %v5757 = vpop.f32.mrf.mxu0
        %5758 = vmatprep.mubr.bf16.mxu0 0
        %5759 = vmatmul.mubr.bf16.gmra.mxu0 %v5257
        %v5760 = vpop.f32.mrf.mxu0
        %v5761 = vadd.f32 %v5600, %v5760
        %v5762 = vpop.f32.mrf.mxu0
        %v5763 = vpop.f32.mrf.mxu0
        %v5764 = vadd.f32 %v5603, %v5763
        %v5765 = vpop.f32.mrf.mxu0
        %5766 = vmatprep.mubr.bf16.mxu0 0
        %5767 = vmatmul.mubr.bf16.gmra.mxu0 %v5260
        %v5768 = vpop.f32.mrf.mxu0
        %v5769 = vadd.f32 %v5608, %v5768
        %v5770 = vpop.f32.mrf.mxu0
        %v5771 = vpop.f32.mrf.mxu0
        %v5772 = vadd.f32 %v5611, %v5771
        %v5773 = vpop.f32.mrf.mxu0
        %5774 = vdwg.mxu0
        %v5775 = vld [vmem:[%s8] sm:$0x1]
        %v5777 = vlaneseq
        %v5778 = vshrl.u32 %v5777, 7
        %v5779 = vsub.s32 0, %v5778
        %v5780 = vrot.slane %v5775, %v5779
        %v5782 = vadd.f32 %v5649, %v5780
        %v5783 = vadd.f32 %v5652, %v5780
        %v5784 = vadd.f32 %v5657, %v5780
        %v5785 = vadd.f32 %v5660, %v5780
        %v5786 = vadd.f32 %v5665, %v5780
        %v5787 = vadd.f32 %v5668, %v5780
        %v5788 = vadd.f32 %v5673, %v5780
        %v5789 = vadd.f32 %v5676, %v5780
        %v5790 = vadd.f32 %v5681, %v5780
        %v5791 = vadd.f32 %v5684, %v5780
        %v5792 = vadd.f32 %v5689, %v5780
        %v5793 = vadd.f32 %v5692, %v5780
        %v5794 = vadd.f32 %v5697, %v5780
        %v5795 = vadd.f32 %v5700, %v5780
        %v5796 = vadd.f32 %v5705, %v5780
        %v5797 = vadd.f32 %v5708, %v5780
        %v5798 = vadd.f32 %v5713, %v5780
        %v5799 = vadd.f32 %v5716, %v5780
        %v5800 = vadd.f32 %v5721, %v5780
        %v5801 = vadd.f32 %v5724, %v5780
        %v5802 = vadd.f32 %v5729, %v5780
        %v5803 = vadd.f32 %v5732, %v5780
        %v5804 = vadd.f32 %v5737, %v5780
        %v5805 = vadd.f32 %v5740, %v5780
        %v5806 = vadd.f32 %v5745, %v5780
        %v5807 = vadd.f32 %v5748, %v5780
        %v5808 = vadd.f32 %v5753, %v5780
        %v5809 = vadd.f32 %v5756, %v5780
        %v5810 = vadd.f32 %v5761, %v5780
        %v5811 = vadd.f32 %v5764, %v5780
        %v5812 = vadd.f32 %v5769, %v5780
        %v5813 = vadd.f32 %v5772, %v5780
        %v5814 = vadd.f32 %v5782, %v410
        %v5815 = vadd.f32 %v5783, %v411
        %v5816 = vadd.f32 %v5784, %v412
        %v5817 = vadd.f32 %v5785, %v413
        %v5818 = vadd.f32 %v5786, %v414
        %v5819 = vadd.f32 %v5787, %v415
        %v5820 = vadd.f32 %v5788, %v416
        %v5821 = vadd.f32 %v5789, %v417
        %v5822 = vadd.f32 %v5790, %v418
        %v5823 = vadd.f32 %v5791, %v419
        %v5824 = vadd.f32 %v5792, %v420
        %v5825 = vadd.f32 %v5793, %v421
        %v5826 = vadd.f32 %v5794, %v422
        %v5827 = vadd.f32 %v5795, %v423
        %v5828 = vadd.f32 %v5796, %v424
        %v5829 = vadd.f32 %v5797, %v425
        %v5830 = vadd.f32 %v5798, %v426
        %v5831 = vadd.f32 %v5799, %v427
        %v5832 = vadd.f32 %v5800, %v428
        %v5833 = vadd.f32 %v5801, %v429
        %v5834 = vadd.f32 %v5802, %v430
        %v5835 = vadd.f32 %v5803, %v431
        %v5836 = vadd.f32 %v5804, %v432
        %v5837 = vadd.f32 %v5805, %v433
        %v5838 = vadd.f32 %v5806, %v434
        %v5839 = vadd.f32 %v5807, %v435
        %v5840 = vadd.f32 %v5808, %v436
        %v5841 = vadd.f32 %v5809, %v437
        %v5842 = vadd.f32 %v5810, %v438
        %v5843 = vadd.f32 %v5811, %v439
        %v5844 = vadd.f32 %v5812, %v440
        %v5845 = vadd.f32 %v5813, %v441
        %5846 = vst [vmem:[%s408] sm:$0xff] %v5814
        %5847 = vst [vmem:[%s408 + $0x8] sm:$0xff] %v5815
        %5848 = vst [vmem:[%s408 + $0x10] sm:$0xff] %v5816
        %5849 = vst [vmem:[%s408 + $0x18] sm:$0xff] %v5817
        %5850 = vst [vmem:[%s408 + $0x20] sm:$0xff] %v5818
        %5851 = vst [vmem:[%s408 + $0x28] sm:$0xff] %v5819
        %5852 = vst [vmem:[%s408 + $0x30] sm:$0xff] %v5820
        %5853 = vst [vmem:[%s408 + $0x38] sm:$0xff] %v5821
        %5854 = vst [vmem:[%s408 + $0x40] sm:$0xff] %v5822
        %5855 = vst [vmem:[%s408 + $0x48] sm:$0xff] %v5823
        %5856 = vst [vmem:[%s408 + $0x50] sm:$0xff] %v5824
        %5857 = vst [vmem:[%s408 + $0x58] sm:$0xff] %v5825
        %5858 = vst [vmem:[%s408 + $0x60] sm:$0xff] %v5826
        %5859 = vst [vmem:[%s408 + $0x68] sm:$0xff] %v5827
        %5860 = vst [vmem:[%s408 + $0x70] sm:$0xff] %v5828
        %5861 = vst [vmem:[%s408 + $0x78] sm:$0xff] %v5829
        %5862 = vst [vmem:[%s408 + $0x80] sm:$0xff] %v5830
        %5863 = vst [vmem:[%s408 + $0x88] sm:$0xff] %v5831
        %5864 = vst [vmem:[%s408 + $0x90] sm:$0xff] %v5832
        %5865 = vst [vmem:[%s408 + $0x98] sm:$0xff] %v5833
        %5866 = vst [vmem:[%s408 + $0xa0] sm:$0xff] %v5834
        %5867 = vst [vmem:[%s408 + $0xa8] sm:$0xff] %v5835
        %5868 = vst [vmem:[%s408 + $0xb0] sm:$0xff] %v5836
        %5869 = vst [vmem:[%s408 + $0xb8] sm:$0xff] %v5837
        %5870 = vst [vmem:[%s408 + $0xc0] sm:$0xff] %v5838
        %5871 = vst [vmem:[%s408 + $0xc8] sm:$0xff] %v5839
        %5872 = vst [vmem:[%s408 + $0xd0] sm:$0xff] %v5840
        %5873 = vst [vmem:[%s408 + $0xd8] sm:$0xff] %v5841
        %5874 = vst [vmem:[%s408 + $0xe0] sm:$0xff] %v5842
        %5875 = vst [vmem:[%s408 + $0xe8] sm:$0xff] %v5843
        %5876 = vst [vmem:[%s408 + $0xf0] sm:$0xff] %v5844
        %5877 = vst [vmem:[%s408 + $0xf8] sm:$0xff] %v5845
        %s5878 = sand.u32 %s230, 1
        %s5879 = scalar_lea.sflag [#allocation5], %s5878
        %s5880 = sand.u32 %s230, 1
        %s5881 = smul.addr %s5880, 256
        %s5882 = scalar_lea.vmem [#allocation12], %s5881
        // Predicated region
        $region77: #{tpu_custom_call.1} parent=55 // pred_check
          %p5883 = pneg %p240
        $region78: #{tpu_custom_call.1} parent=55 // pred_check_branch
          %5885 = sbr.rel (%p5883) target = $region80
        $region79: #{tpu_custom_call.1} parent=55 // pred_region
          %s5887 = ssub.s32 4096, 4096
          %5888 = vsyncadd %s5879, %s5887
          %s5889 = smul.addr %s28, 32
          %s5890 = smul.addr %s5889, 128
          %s5891 = scalar_lea.hbm %s9, %s5890
          %s5892 = sshll.u32 %s5882, 4
          %s5893 = int_to_ptr.vmem [resolvable:$true] %s5892
          %5898 = dma.vmem_to_hbm [thread:$0]  %s5893, 4096, %s5891, %s5879, 128, 128, 8
        $region80: #{tpu_custom_call.1} parent=55 // pred_fallthru
          _
      $region56: #{tpu_custom_call.1} parent=5 // pred_fallthru
        _
      %p5899 = scmp.le.s32.totalorder 2, %s23
      // Predicated region
      $region81: #{tpu_custom_call.1} parent=5 // pred_check
        %p5900 = pneg %p5899
      $region82: #{tpu_custom_call.1} parent=5 // pred_check_branch
        %5902 = sbr.rel (%p5900) target = $region84
      $region83: #{tpu_custom_call.1} parent=5 // pred_region
        %s5903 = ssub.s32 %s23, 2
        // Predicated region
        $region85: #{tpu_custom_call.1} parent=83 // pred_check
          %p5904 = pneg %p246
        $region86: #{tpu_custom_call.1} parent=83 // pred_check_branch
          %5906 = sbr.rel (%p5904) target = $region88
        $region87: #{tpu_custom_call.1} parent=83 // pred_region
          %s5907 = sand.u32 %s231, 1
          %s5908 = scalar_lea.sflag [#allocation5], %s5907
          %s5909 = sand.u32 %s231, 1
          %s5910 = smul.addr %s5909, 256
          %s5911 = scalar_lea.vmem [#allocation12], %s5910
          %5912 = dma.done %s5908, 4096
        $region88: #{tpu_custom_call.1} parent=83 // pred_fallthru
          _
      $region84: #{tpu_custom_call.1} parent=5 // pred_fallthru
        _
    $region6: #{tpu_custom_call.1} parent=1 // loop_footer
      %s27 = sadd.s32 1, %s23
    $region7: #{tpu_custom_call.1} parent=1 // loop_footer_branch
      %22 = sbr.rel target = $region3
    $region8: #{tpu_custom_call.1} parent=1 // loop_exit
      _
    %5913 = vsyncpa [#allocation4], 1
    %s5914 = scalar_lea.sflag [#allocation4], 1
    %5915 = vsyncpa %s5914, 1
    %5916 = vsyncpa [#allocation7], 1
    %5917 = vsyncpa [#allocation10], 1
    %5918 = vsyncpa [#allocation5], 1
    %s5919 = scalar_lea.sflag [#allocation5], 1
    %5920 = vsyncpa %s5919, 1

</llo_original>
